<compile_context>
chip_gen: v5e
topology: v5e:2x2
jax: 0.10.0
libtpu: 0.0.40
codegen_flags: <defaults>
</compile_context>

<pallas_src>
import functools

import numpy as np
import jax
import jax.numpy as jnp
from jax.experimental import pallas as pl
from jax.experimental.pallas import tpu as pltpu

H, W = 4, 4                  # spatial size required by the initial D block
C = 32                       # latent_size (real model uses 512)
RGB_F = H * W * 3            # flattened RGB features per row
F = H * W * C                # flattened features after FromRGB
TN = 128                     # batch-tile rows per grid step (fills MXU M dim)
BATCH = 256                  # demo batch: 2 tiles -> exercises weight residency


def _leaky(x):
    return jnp.where(x >= 0, x, 0.2 * x)


# ---------------------------------------------------------------------------
# Pass 1: minibatch std over the full batch (cross-batch reduction).
# Accumulates per-feature sum / sum-of-squares of y1 = LeakyReLU(FromRGB(x))
# in VMEM scratch across batch tiles; finalizes the scalar on the last tile.
# ---------------------------------------------------------------------------
def stats_kernel(x_ref, wrgb_ref, brgb_ref, s_ref, sum_ref, sumsq_ref,
                 *, n_real, tile_rows):
    i = pl.program_id(0)

    @pl.when(i == 0)
    def _init():
        sum_ref[...] = jnp.zeros_like(sum_ref)
        sumsq_ref[...] = jnp.zeros_like(sumsq_ref)

    y1 = _leaky(jnp.dot(x_ref[...].astype(jnp.bfloat16), wrgb_ref[...],
                        preferred_element_type=jnp.float32) + brgb_ref[...])

    if n_real % tile_rows != 0:           # static: only emitted if batch is padded
        row = jax.lax.broadcasted_iota(jnp.int32, y1.shape, 0) + i * tile_rows
        y1 = jnp.where(row < n_real, y1, 0.0)

    sum_ref[...] += jnp.sum(y1, axis=0, keepdims=True)
    sumsq_ref[...] += jnp.sum(y1 * y1, axis=0, keepdims=True)

    @pl.when(i == pl.num_programs(0) - 1)
    def _finalize():
        n = float(n_real)
        mean = sum_ref[...] * (1.0 / n)
        var = (sumsq_ref[...] - n * mean * mean) * (1.0 / (n - 1.0))  # unbiased
        var = jnp.maximum(var, 0.0)
        s_ref[...] = jnp.mean(jnp.sqrt(var), axis=1, keepdims=True)


# ---------------------------------------------------------------------------
# Pass 2: batch-tiled main network.  Weights are VMEM-resident (constant
# index maps); activations stream through in 128-row tiles.
# ---------------------------------------------------------------------------
def disc_kernel(s_ref, x_ref, wrgb_ref, brgb_ref, w1_ref, c1_ref, b1_ref,
                w2_ref, b2_ref, wl_ref, bl_ref, o_ref):
    s = s_ref[0, 0]                                   # minibatch-std scalar (SMEM)
    x = x_ref[...]                                    # (TN, 48) f32

    # FromRGB: per-pixel 1x1 equalized conv as one dense matmul + LeakyReLU.
    y1 = jnp.dot(x.astype(jnp.bfloat16), wrgb_ref[...],
                 preferred_element_type=jnp.float32) + brgb_ref[...]
    y1 = _leaky(y1)                                   # (TN, F)

    # conv1 (3x3, pad 1) as dense matmul; std-channel taps folded into s * c1.
    y2 = (jnp.dot(y1.astype(jnp.bfloat16), w1_ref[...],
                  preferred_element_type=jnp.float32)
          + s * c1_ref[...] + b1_ref[...])
    y2 = _leaky(y2)                                   # (TN, F)

    # conv2 (4x4, valid) -> 1x1 spatial, as dense matmul.
    y3 = jnp.dot(y2.astype(jnp.bfloat16), w2_ref[...],
                 preferred_element_type=jnp.float32) + b2_ref[...]
    y3 = _leaky(y3)                                   # (TN, C)

    # Flatten + Linear(C, 1) on the MXU (not a cross-lane reduce).
    o_ref[...] = jnp.dot(y3, wl_ref[...],
                         preferred_element_type=jnp.float32) + bl_ref[...]


# ---------------------------------------------------------------------------
# Parameters (match the PyTorch init) and parameter re-packing glue.
# ---------------------------------------------------------------------------
def make_params(key):
    ks = jax.random.split(key, 5)
    w_rgb = jax.random.normal(ks[0], (C, 3), jnp.float32)             # FromRGB (out,in)
    w1 = jax.random.normal(ks[1], (C, C + 1, 3, 3), jnp.float32)      # conv1 (O,I,kh,kw)
    w2 = jax.random.normal(ks[2], (C, C, 4, 4), jnp.float32)          # conv2 (O,I,kh,kw)
    bound = 1.0 / np.sqrt(C)
    w_lin = jax.random.uniform(ks[3], (1, C), jnp.float32, minval=-bound, maxval=bound)
    b_lin = jax.random.uniform(ks[4], (1,), jnp.float32, minval=-bound, maxval=bound)
    return dict(w_rgb=w_rgb, b_rgb=jnp.zeros((C,), jnp.float32),
                w1=w1, b1=jnp.zeros((C,), jnp.float32),
                w2=w2, b2=jnp.zeros((C,), jnp.float32),
                w_lin=w_lin, b_lin=b_lin)


def pack_params(p):
    """Fold equalized-LR scales and re-pack convs as dense matmuls.

    Heavy matrices go to bf16 (half the resident-weight HBM traffic, native
    MXU input type); biases / small vectors stay f32 for the VPU epilogues.
    """
    scale_rgb = np.sqrt(2.0 / (3 * 1 * 1))
    scale1 = np.sqrt(2.0 / ((C + 1) * 3 * 3))
    scale2 = np.sqrt(2.0 / (C * 4 * 4))

    w_rgb = np.asarray(p["w_rgb"]) * scale_rgb          # (C, 3)
    w1 = np.asarray(p["w1"]) * scale1                   # (C, C+1, 3, 3)
    w2 = np.asarray(p["w2"]) * scale2                   # (C, C, 4, 4)

    # FromRGB 1x1 conv -> block-diagonal (48, F).  Loaded ONCE per call and
    # VMEM-resident, so the structural zeros cost <48 KiB total (negligible
    # next to w1_big); kept dense so FromRGB stays a single K=48 matmul.
    wrgb_big = np.zeros((RGB_F, F), np.float32)
    for px in range(H * W):
        wrgb_big[px * 3:(px + 1) * 3, px * C:(px + 1) * C] = w_rgb.T
    brgb_big = np.tile(np.asarray(p["b_rgb"]), H * W)[None, :]        # (1, F)

    # conv1 3x3 pad 1 -> dense (F, F); std-channel taps -> contribution vector.
    w1_big = np.zeros((F, F), np.float32)
    c1_vec = np.zeros((1, F), np.float32)
    for io in range(H):
        for jo in range(W):
            fo = (io * W + jo) * C
            for kh in range(3):
                for kw in range(3):
                    ii, jj = io + kh - 1, jo + kw - 1
                    if 0 <= ii < H and 0 <= jj < W:
                        fi = (ii * W + jj) * C
                        w1_big[fi:fi + C, fo:fo + C] += w1[:, :C, kh, kw].T
                        c1_vec[0, fo:fo + C] += w1[:, C, kh, kw]
    b1_big = np.tile(np.asarray(p["b1"]), H * W)[None, :]             # (1, F)

    # conv2 4x4 valid over 4x4 -> dense (F, C).
    w2_big = np.zeros((F, C), np.float32)
    for kh in range(H):
        for kw in range(W):
            fi = (kh * W + kw) * C
            w2_big[fi:fi + C, :] = w2[:, :, kh, kw].T
    b2_vec = np.asarray(p["b2"])[None, :]                             # (1, C)

    wl_col = np.asarray(p["w_lin"]).T                                 # (C, 1)
    bl = np.asarray(p["b_lin"])[None, :]                              # (1, 1)

    return (jnp.asarray(wrgb_big, jnp.bfloat16),
            jnp.asarray(brgb_big, jnp.float32),
            jnp.asarray(w1_big, jnp.bfloat16),
            jnp.asarray(c1_vec, jnp.float32),
            jnp.asarray(b1_big, jnp.float32),
            jnp.asarray(w2_big, jnp.bfloat16),
            jnp.asarray(b2_vec, jnp.float32),
            jnp.asarray(wl_col, jnp.float32),
            jnp.asarray(bl, jnp.float32))


# ---------------------------------------------------------------------------
# Wrapper: layout plumbing + the two pallas_calls.
# ---------------------------------------------------------------------------
@jax.jit
def discriminator_forward(x_rgb_nchw, packed):
    wrgb, brgb, w1, c1, b1, w2, b2, wl, bl = packed
    n = x_rgb_nchw.shape[0]
    assert n >= 2, "minibatch std (unbiased) requires batch >= 2"

    # NCHW (PyTorch) -> NHWC -> (N, H*W*3); pad rows to a multiple of TN.
    x = jnp.transpose(x_rgb_nchw, (0, 2, 3, 1)).reshape(n, RGB_F).astype(jnp.float32)
    n_pad = ((n + TN - 1) // TN) * TN
    if n_pad != n:
        x = jnp.pad(x, ((0, n_pad - n), (0, 0)))
    num_tiles = n_pad // TN

    const = lambda i: (0, 0)   # weight blocks: fetched once, VMEM-resident

    # ---- Pass 1: minibatch-std scalar over the full (real) batch ----------
    s = pl.pallas_call(
        functools.partial(stats_kernel, n_real=n, tile_rows=TN),
        out_shape=jax.ShapeDtypeStruct((1, 1), jnp.float32),
        grid=(num_tiles,),
        in_specs=[pl.BlockSpec((TN, RGB_F), lambda i: (i, 0)),   # x tile
                  pl.BlockSpec((RGB_F, F), const),               # FromRGB W
                  pl.BlockSpec((1, F), const)],                  # FromRGB b
        out_specs=pl.BlockSpec((1, 1), const),
        scratch_shapes=[pltpu.VMEM((1, F), jnp.float32),         # sum
                        pltpu.VMEM((1, F), jnp.float32)],        # sum of squares
        compiler_params=pltpu.CompilerParams(
            dimension_semantics=("arbitrary",)),                 # carried accumulators
    )(x, wrgb, brgb)

    # ---- Pass 2: batch-tiled main network, weights VMEM-resident ----------
    out = pl.pallas_call(
        disc_kernel,
        out_shape=jax.ShapeDtypeStruct((n_pad, 1), jnp.float32),
        grid=(num_tiles,),
        in_specs=[pl.BlockSpec(memory_space=pltpu.MemorySpace.SMEM),  # std scalar
                  pl.BlockSpec((TN, RGB_F), lambda i: (i, 0)),        # x tile
                  pl.BlockSpec((RGB_F, F), const),                    # FromRGB W (bf16)
                  pl.BlockSpec((1, F), const),                        # FromRGB b
                  pl.BlockSpec((F, F), const),                        # conv1 W (bf16)
                  pl.BlockSpec((1, F), const),                        # std-channel taps
                  pl.BlockSpec((1, F), const),                        # conv1 b
                  pl.BlockSpec((F, C), const),                        # conv2 W (bf16)
                  pl.BlockSpec((1, C), const),                        # conv2 b
                  pl.BlockSpec((C, 1), const),                        # linear W
                  pl.BlockSpec((1, 1), const)],                       # linear b
        out_specs=pl.BlockSpec((TN, 1), lambda i: (i, 0)),
        compiler_params=pltpu.CompilerParams(
            dimension_semantics=("parallel",)),                  # 2nd TC on v7x
    )(s, x, wrgb, brgb, w1, c1, b1, w2, b2, wl, bl)

    return out[:n]


# ---------------------------------------------------------------------------
# Pure-JAX mirror of the PyTorch module (NCHW, f32) for verification.
# ---------------------------------------------------------------------------
def reference_forward(x, p):
    n = x.shape[0]
    scale_rgb = np.sqrt(2.0 / 3.0)
    scale1 = np.sqrt(2.0 / ((C + 1) * 9))
    scale2 = np.sqrt(2.0 / (C * 16))
    lrelu = lambda v: jnp.where(v >= 0, v, 0.2 * v)

    def conv(v, w, b, pad):
        y = jax.lax.conv_general_dilated(
            v, w, window_strides=(1, 1), padding=pad,
            dimension_numbers=("NCHW", "OIHW", "NCHW"),
            precision=jax.lax.Precision.HIGHEST)
        return y + b[None, :, None, None]

    w_rgb4 = p["w_rgb"].reshape(C, 3, 1, 1)
    y = lrelu(conv(x, scale_rgb * w_rgb4, p["b_rgb"], "VALID"))
    s = jnp.mean(jnp.std(y, axis=0, ddof=1))                          # Minibatch_std
    y = jnp.concatenate([y, jnp.full((n, 1, H, W), s, y.dtype)], axis=1)
    y = lrelu(conv(y, scale1 * p["w1"], p["b1"], ((1, 1), (1, 1))))
    y = lrelu(conv(y, scale2 * p["w2"], p["b2"], "VALID"))
    y = y.reshape(n, C)
    return y @ p["w_lin"].T + p["b_lin"][None, :]


if __name__ == "__main__":
    key = jax.random.PRNGKey(0)
    kx, kp = jax.random.split(key)
    x_rgb = jax.random.normal(kx, (BATCH, 3, H, W), jnp.float32)      # NCHW like PyTorch
    params = make_params(kp)
    packed = pack_params(params)

    out = discriminator_forward(x_rgb, packed)
    out = jax.block_until_ready(out)

    ref = reference_forward(x_rgb, params)
    # bf16 weights widen the error vs the f32 HIGHEST-precision reference
    # (expected, per review), hence the looser tolerance.
    np.testing.assert_allclose(np.asarray(out), np.asarray(ref), rtol=5e-2, atol=5e-2)
    print("KERNEL_OK")
</pallas_src>

<mosaic_0001>
module attributes {stable_mosaic.version = 11 : i64} {
  func.func @stats_kernel(%arg0: i32, %arg1: memref<128x48xf32, #tpu.memory_space<vmem>>, %arg2: memref<48x512xbf16, #tpu.memory_space<vmem>>, %arg3: memref<1x512xf32, #tpu.memory_space<vmem>>, %arg4: memref<1x1xf32, #tpu.memory_space<vmem>>, %arg5: memref<1x512xf32, #tpu.memory_space<vmem>>, %arg6: memref<1x512xf32, #tpu.memory_space<vmem>>) attributes {dimension_semantics = [#tpu.dimension_semantics<arbitrary>], iteration_bounds = array<i64: 2>, scalar_prefetch = 0 : i64, scratch_operands = 2 : i64, tpu.core_type = #tpu.core_type<tc>, window_params = [{transform_indices = @transform_0, window_bounds = array<i64: 128, 48>}, {pipeline_mode = #tpu.pipeline_mode<synchronous>, transform_indices = @transform_1, window_bounds = array<i64: 48, 512>}, {pipeline_mode = #tpu.pipeline_mode<synchronous>, transform_indices = @transform_2, window_bounds = array<i64: 1, 512>}, {pipeline_mode = #tpu.pipeline_mode<synchronous>, transform_indices = @transform_3, window_bounds = array<i64: 1, 1>}]} {
    %c0_i32 = arith.constant 0 : i32
    %0 = arith.cmpi eq, %arg0, %c0_i32 : i32
    %1 = arith.extui %0 : i1 to i32
    %c0_i32_0 = arith.constant 0 : i32
    %2 = arith.cmpi ne, %1, %c0_i32_0 : i32
    scf.if %2 {
      %cst_19 = arith.constant 0.000000e+00 : f32
      %29 = vector.broadcast %cst_19 : f32 to vector<1x512xf32>
      %c0_20 = arith.constant 0 : index
      %c0_21 = arith.constant 0 : index
      %30 = vector.load %arg5[%c0_20, %c0_21] : memref<1x512xf32, #tpu.memory_space<vmem>>, vector<1x512xf32>
      tpu.vector_store %arg5[%c0_20, %c0_21], %29 {strides = array<i32>} : memref<1x512xf32, #tpu.memory_space<vmem>>, vector<1x512xf32>,
      %cst_22 = arith.constant 0.000000e+00 : f32
      %31 = vector.broadcast %cst_22 : f32 to vector<1x512xf32>
      %c0_23 = arith.constant 0 : index
      %c0_24 = arith.constant 0 : index
      %32 = vector.load %arg6[%c0_23, %c0_24] : memref<1x512xf32, #tpu.memory_space<vmem>>, vector<1x512xf32>
      tpu.vector_store %arg6[%c0_23, %c0_24], %31 {strides = array<i32>} : memref<1x512xf32, #tpu.memory_space<vmem>>, vector<1x512xf32>,
    } else {
    }
    %c0 = arith.constant 0 : index
    %c0_1 = arith.constant 0 : index
    %3 = vector.load %arg1[%c0, %c0_1] : memref<128x48xf32, #tpu.memory_space<vmem>>, vector<128x48xf32>
    %4 = arith.truncf %3 : vector<128x48xf32> to vector<128x48xbf16>
    %c0_2 = arith.constant 0 : index
    %c0_3 = arith.constant 0 : index
    %5 = vector.load %arg2[%c0_2, %c0_3] : memref<48x512xbf16, #tpu.memory_space<vmem>>, vector<48x512xbf16>
    %cst = arith.constant dense<0.000000e+00> : vector<128x512xf32>
    %6 = tpu.matmul %4, %5, %cst {dimension_numbers = #tpu.dot_dimension_numbers<[1], [0], [0], [1], [0, 0, 1, 1], [], []>} : vector<128x48xbf16>, vector<48x512xbf16>, vector<128x512xf32> -> vector<128x512xf32>
    %c0_4 = arith.constant 0 : index
    %c0_5 = arith.constant 0 : index
    %7 = vector.load %arg3[%c0_4, %c0_5] : memref<1x512xf32, #tpu.memory_space<vmem>>, vector<1x512xf32>
    %8 = vector.broadcast %7 : vector<1x512xf32> to vector<128x512xf32>
    %9 = arith.addf %6, %8 : vector<128x512xf32>
    %cst_6 = arith.constant 0.000000e+00 : f32
    %10 = vector.broadcast %cst_6 : f32 to vector<128x512xf32>
    %11 = arith.cmpf oge, %9, %10 : vector<128x512xf32>
    %cst_7 = arith.constant 2.000000e-01 : f32
    %12 = vector.broadcast %cst_7 : f32 to vector<128x512xf32>
    %13 = arith.mulf %12, %9 : vector<128x512xf32>
    %14 = arith.select %11, %9, %13 : vector<128x512xi1>, vector<128x512xf32>
    %c0_8 = arith.constant 0 : index
    %c0_9 = arith.constant 0 : index
    %15 = vector.load %arg5[%c0_8, %c0_9] : memref<1x512xf32, #tpu.memory_space<vmem>>, vector<1x512xf32>
    %cst_10 = arith.constant dense<0.000000e+00> : vector<512xf32>
    %16 = vector.multi_reduction <add>, %14, %cst_10 [0] : vector<128x512xf32> to vector<512xf32>
    %17 = vector.shape_cast %16 : vector<512xf32> to vector<1x512xf32>
    %18 = arith.addf %15, %17 : vector<1x512xf32>
    %c0_11 = arith.constant 0 : index
    %c0_12 = arith.constant 0 : index
    %19 = vector.load %arg5[%c0_11, %c0_12] : memref<1x512xf32, #tpu.memory_space<vmem>>, vector<1x512xf32>
    tpu.vector_store %arg5[%c0_11, %c0_12], %18 {strides = array<i32>} : memref<1x512xf32, #tpu.memory_space<vmem>>, vector<1x512xf32>,
    %c0_13 = arith.constant 0 : index
    %c0_14 = arith.constant 0 : index
    %20 = vector.load %arg6[%c0_13, %c0_14] : memref<1x512xf32, #tpu.memory_space<vmem>>, vector<1x512xf32>
    %21 = arith.mulf %14, %14 : vector<128x512xf32>
    %cst_15 = arith.constant dense<0.000000e+00> : vector<512xf32>
    %22 = vector.multi_reduction <add>, %21, %cst_15 [0] : vector<128x512xf32> to vector<512xf32>
    %23 = vector.shape_cast %22 : vector<512xf32> to vector<1x512xf32>
    %24 = arith.addf %20, %23 : vector<1x512xf32>
    %c0_16 = arith.constant 0 : index
    %c0_17 = arith.constant 0 : index
    %25 = vector.load %arg6[%c0_16, %c0_17] : memref<1x512xf32, #tpu.memory_space<vmem>>, vector<1x512xf32>
    tpu.vector_store %arg6[%c0_16, %c0_17], %24 {strides = array<i32>} : memref<1x512xf32, #tpu.memory_space<vmem>>, vector<1x512xf32>,
    %c1_i32 = arith.constant 1 : i32
    %26 = arith.cmpi eq, %arg0, %c1_i32 : i32
    %27 = arith.extui %26 : i1 to i32
    %c0_i32_18 = arith.constant 0 : i32
    %28 = arith.cmpi ne, %27, %c0_i32_18 : i32
    scf.if %28 {
      %c0_19 = arith.constant 0 : index
      %c0_20 = arith.constant 0 : index
      %29 = vector.load %arg5[%c0_19, %c0_20] : memref<1x512xf32, #tpu.memory_space<vmem>>, vector<1x512xf32>
      %cst_21 = arith.constant 3.906250e-03 : f32
      %30 = vector.broadcast %cst_21 : f32 to vector<1x512xf32>
      %31 = arith.mulf %29, %30 : vector<1x512xf32>
      %c0_22 = arith.constant 0 : index
      %c0_23 = arith.constant 0 : index
      %32 = vector.load %arg6[%c0_22, %c0_23] : memref<1x512xf32, #tpu.memory_space<vmem>>, vector<1x512xf32>
      %cst_24 = arith.constant 2.560000e+02 : f32
      %33 = vector.broadcast %cst_24 : f32 to vector<1x512xf32>
      %34 = arith.mulf %33, %31 : vector<1x512xf32>
      %35 = arith.mulf %34, %31 : vector<1x512xf32>
      %36 = arith.subf %32, %35 : vector<1x512xf32>
      %cst_25 = arith.constant 0.00392156886 : f32
      %37 = vector.broadcast %cst_25 : f32 to vector<1x512xf32>
      %38 = arith.mulf %36, %37 : vector<1x512xf32>
      %cst_26 = arith.constant 0.000000e+00 : f32
      %39 = vector.broadcast %cst_26 : f32 to vector<1x512xf32>
      %40 = arith.maximumf %38, %39 : vector<1x512xf32>
      %41 = math.sqrt %40 : vector<1x512xf32>
      %cst_27 = arith.constant dense<0.000000e+00> : vector<1xf32>
      %42 = vector.multi_reduction <add>, %41, %cst_27 [1] : vector<1x512xf32> to vector<1xf32>
      %43 = vector.shape_cast %42 : vector<1xf32> to vector<1x1xf32>
      %cst_28 = arith.constant 5.120000e+02 : f32
      %44 = vector.broadcast %cst_28 : f32 to vector<1x1xf32>
      %45 = arith.divf %43, %44 : vector<1x1xf32>
      %c0_29 = arith.constant 0 : index
      %c0_30 = arith.constant 0 : index
      %46 = vector.load %arg4[%c0_29, %c0_30] : memref<1x1xf32, #tpu.memory_space<vmem>>, vector<1x1xf32>
      tpu.vector_store %arg4[%c0_29, %c0_30], %45 {strides = array<i32>} : memref<1x1xf32, #tpu.memory_space<vmem>>, vector<1x1xf32>,
    } else {
    }
    return
  }
  func.func @transform_0(%arg0: i32) -> (i32, i32) {
    %c0_i32 = arith.constant 0 : i32
    %c0_i32_0 = arith.constant 0 : i32
    return %arg0, %c0_i32 : i32, i32
  }
  func.func @transform_1(%arg0: i32) -> (i32, i32) {
    %c0_i32 = arith.constant 0 : i32
    %c0_i32_0 = arith.constant 0 : i32
    %c0_i32_1 = arith.constant 0 : i32
    return %c0_i32, %c0_i32_0 : i32, i32
  }
  func.func @transform_2(%arg0: i32) -> (i32, i32) {
    %c0_i32 = arith.constant 0 : i32
    %c0_i32_0 = arith.constant 0 : i32
    %c0_i32_1 = arith.constant 0 : i32
    return %c0_i32, %c0_i32_0 : i32, i32
  }
  func.func @transform_3(%arg0: i32) -> (i32, i32) {
    %c0_i32 = arith.constant 0 : i32
    %c0_i32_0 = arith.constant 0 : i32
    %c0_i32_1 = arith.constant 0 : i32
    return %c0_i32, %c0_i32_0 : i32, i32
  }
}

module attributes {stable_mosaic.version = 11 : i64} {
  func.func @disc_kernel(%arg0: i32, %arg1: memref<1x1xf32, #tpu.memory_space<smem>>, %arg2: memref<128x48xf32, #tpu.memory_space<vmem>>, %arg3: memref<48x512xbf16, #tpu.memory_space<vmem>>, %arg4: memref<1x512xf32, #tpu.memory_space<vmem>>, %arg5: memref<512x512xbf16, #tpu.memory_space<vmem>>, %arg6: memref<1x512xf32, #tpu.memory_space<vmem>>, %arg7: memref<1x512xf32, #tpu.memory_space<vmem>>, %arg8: memref<512x32xbf16, #tpu.memory_space<vmem>>, %arg9: memref<1x32xf32, #tpu.memory_space<vmem>>, %arg10: memref<32x1xf32, #tpu.memory_space<vmem>>, %arg11: memref<1x1xf32, #tpu.memory_space<vmem>>, %arg12: memref<128x1xf32, #tpu.memory_space<vmem>>) attributes {dimension_semantics = [#tpu.dimension_semantics<parallel>], iteration_bounds = array<i64: 2>, scalar_prefetch = 0 : i64, scratch_operands = 0 : i64, tpu.core_type = #tpu.core_type<tc>, window_params = [{transform_indices = @transform_0, window_bounds = array<i64: 1, 1>}, {transform_indices = @transform_1, window_bounds = array<i64: 128, 48>}, {pipeline_mode = #tpu.pipeline_mode<synchronous>, transform_indices = @transform_2, window_bounds = array<i64: 48, 512>}, {pipeline_mode = #tpu.pipeline_mode<synchronous>, transform_indices = @transform_3, window_bounds = array<i64: 1, 512>}, {pipeline_mode = #tpu.pipeline_mode<synchronous>, transform_indices = @transform_4, window_bounds = array<i64: 512, 512>}, {pipeline_mode = #tpu.pipeline_mode<synchronous>, transform_indices = @transform_5, window_bounds = array<i64: 1, 512>}, {pipeline_mode = #tpu.pipeline_mode<synchronous>, transform_indices = @transform_6, window_bounds = array<i64: 1, 512>}, {pipeline_mode = #tpu.pipeline_mode<synchronous>, transform_indices = @transform_7, window_bounds = array<i64: 512, 32>}, {pipeline_mode = #tpu.pipeline_mode<synchronous>, transform_indices = @transform_8, window_bounds = array<i64: 1, 32>}, {pipeline_mode = #tpu.pipeline_mode<synchronous>, transform_indices = @transform_9, window_bounds = array<i64: 32, 1>}, {pipeline_mode = #tpu.pipeline_mode<synchronous>, transform_indices = @transform_10, window_bounds = array<i64: 1, 1>}, {transform_indices = @transform_11, window_bounds = array<i64: 128, 1>}]} {
    %c0 = arith.constant 0 : index
    %c0_0 = arith.constant 0 : index
    %0 = memref.load %arg1[%c0, %c0_0] : memref<1x1xf32, #tpu.memory_space<smem>>
    %c0_1 = arith.constant 0 : index
    %c0_2 = arith.constant 0 : index
    %1 = vector.load %arg2[%c0_1, %c0_2] : memref<128x48xf32, #tpu.memory_space<vmem>>, vector<128x48xf32>
    %2 = arith.truncf %1 : vector<128x48xf32> to vector<128x48xbf16>
    %c0_3 = arith.constant 0 : index
    %c0_4 = arith.constant 0 : index
    %3 = vector.load %arg3[%c0_3, %c0_4] : memref<48x512xbf16, #tpu.memory_space<vmem>>, vector<48x512xbf16>
    %cst = arith.constant dense<0.000000e+00> : vector<128x512xf32>
    %4 = tpu.matmul %2, %3, %cst {dimension_numbers = #tpu.dot_dimension_numbers<[1], [0], [0], [1], [0, 0, 1, 1], [], []>} : vector<128x48xbf16>, vector<48x512xbf16>, vector<128x512xf32> -> vector<128x512xf32>
    %c0_5 = arith.constant 0 : index
    %c0_6 = arith.constant 0 : index
    %5 = vector.load %arg4[%c0_5, %c0_6] : memref<1x512xf32, #tpu.memory_space<vmem>>, vector<1x512xf32>
    %6 = vector.broadcast %5 : vector<1x512xf32> to vector<128x512xf32>
    %7 = arith.addf %4, %6 : vector<128x512xf32>
    %cst_7 = arith.constant 0.000000e+00 : f32
    %8 = vector.broadcast %cst_7 : f32 to vector<128x512xf32>
    %9 = arith.cmpf oge, %7, %8 : vector<128x512xf32>
    %cst_8 = arith.constant 2.000000e-01 : f32
    %10 = vector.broadcast %cst_8 : f32 to vector<128x512xf32>
    %11 = arith.mulf %10, %7 : vector<128x512xf32>
    %12 = arith.select %9, %7, %11 : vector<128x512xi1>, vector<128x512xf32>
    %13 = arith.truncf %12 : vector<128x512xf32> to vector<128x512xbf16>
    %c0_9 = arith.constant 0 : index
    %c0_10 = arith.constant 0 : index
    %14 = vector.load %arg5[%c0_9, %c0_10] : memref<512x512xbf16, #tpu.memory_space<vmem>>, vector<512x512xbf16>
    %cst_11 = arith.constant dense<0.000000e+00> : vector<128x512xf32>
    %15 = tpu.matmul %13, %14, %cst_11 {dimension_numbers = #tpu.dot_dimension_numbers<[1], [0], [0], [1], [0, 0, 1, 1], [], []>} : vector<128x512xbf16>, vector<512x512xbf16>, vector<128x512xf32> -> vector<128x512xf32>
    %c0_12 = arith.constant 0 : index
    %c0_13 = arith.constant 0 : index
    %16 = vector.load %arg6[%c0_12, %c0_13] : memref<1x512xf32, #tpu.memory_space<vmem>>, vector<1x512xf32>
    %17 = vector.broadcast %0 : f32 to vector<1x512xf32>
    %18 = arith.mulf %17, %16 : vector<1x512xf32>
    %19 = vector.broadcast %18 : vector<1x512xf32> to vector<128x512xf32>
    %20 = arith.addf %15, %19 : vector<128x512xf32>
    %c0_14 = arith.constant 0 : index
    %c0_15 = arith.constant 0 : index
    %21 = vector.load %arg7[%c0_14, %c0_15] : memref<1x512xf32, #tpu.memory_space<vmem>>, vector<1x512xf32>
    %22 = vector.broadcast %21 : vector<1x512xf32> to vector<128x512xf32>
    %23 = arith.addf %20, %22 : vector<128x512xf32>
    %cst_16 = arith.constant 0.000000e+00 : f32
    %24 = vector.broadcast %cst_16 : f32 to vector<128x512xf32>
    %25 = arith.cmpf oge, %23, %24 : vector<128x512xf32>
    %cst_17 = arith.constant 2.000000e-01 : f32
    %26 = vector.broadcast %cst_17 : f32 to vector<128x512xf32>
    %27 = arith.mulf %26, %23 : vector<128x512xf32>
    %28 = arith.select %25, %23, %27 : vector<128x512xi1>, vector<128x512xf32>
    %29 = arith.truncf %28 : vector<128x512xf32> to vector<128x512xbf16>
    %c0_18 = arith.constant 0 : index
    %c0_19 = arith.constant 0 : index
    %30 = vector.load %arg8[%c0_18, %c0_19] : memref<512x32xbf16, #tpu.memory_space<vmem>>, vector<512x32xbf16>
    %cst_20 = arith.constant dense<0.000000e+00> : vector<128x32xf32>
    %31 = tpu.matmul %29, %30, %cst_20 {dimension_numbers = #tpu.dot_dimension_numbers<[1], [0], [0], [1], [0, 0, 1, 1], [], []>} : vector<128x512xbf16>, vector<512x32xbf16>, vector<128x32xf32> -> vector<128x32xf32>
    %c0_21 = arith.constant 0 : index
    %c0_22 = arith.constant 0 : index
    %32 = vector.load %arg9[%c0_21, %c0_22] : memref<1x32xf32, #tpu.memory_space<vmem>>, vector<1x32xf32>
    %33 = vector.broadcast %32 : vector<1x32xf32> to vector<128x32xf32>
    %34 = arith.addf %31, %33 : vector<128x32xf32>
    %cst_23 = arith.constant 0.000000e+00 : f32
    %35 = vector.broadcast %cst_23 : f32 to vector<128x32xf32>
    %36 = arith.cmpf oge, %34, %35 : vector<128x32xf32>
    %cst_24 = arith.constant 2.000000e-01 : f32
    %37 = vector.broadcast %cst_24 : f32 to vector<128x32xf32>
    %38 = arith.mulf %37, %34 : vector<128x32xf32>
    %39 = arith.select %36, %34, %38 : vector<128x32xi1>, vector<128x32xf32>
    %c0_25 = arith.constant 0 : index
    %c0_26 = arith.constant 0 : index
    %40 = vector.load %arg10[%c0_25, %c0_26] : memref<32x1xf32, #tpu.memory_space<vmem>>, vector<32x1xf32>
    %cst_27 = arith.constant dense<0.000000e+00> : vector<128x1xf32>
    %41 = tpu.matmul %39, %40, %cst_27 {dimension_numbers = #tpu.dot_dimension_numbers<[1], [0], [0], [1], [0, 0, 1, 1], [], []>} : vector<128x32xf32>, vector<32x1xf32>, vector<128x1xf32> -> vector<128x1xf32>
    %c0_28 = arith.constant 0 : index
    %c0_29 = arith.constant 0 : index
    %42 = vector.load %arg11[%c0_28, %c0_29] : memref<1x1xf32, #tpu.memory_space<vmem>>, vector<1x1xf32>
    %43 = vector.broadcast %42 : vector<1x1xf32> to vector<128x1xf32>
    %44 = arith.addf %41, %43 : vector<128x1xf32>
    %c0_30 = arith.constant 0 : index
    %c0_31 = arith.constant 0 : index
    %45 = vector.load %arg12[%c0_30, %c0_31] : memref<128x1xf32, #tpu.memory_space<vmem>>, vector<128x1xf32>
    tpu.vector_store %arg12[%c0_30, %c0_31], %44 {strides = array<i32>} : memref<128x1xf32, #tpu.memory_space<vmem>>, vector<128x1xf32>,
    return
  }
  func.func @transform_0(%arg0: i32) -> (i32, i32) {
    %c0_i32 = arith.constant 0 : i32
    %c0_i32_0 = arith.constant 0 : i32
    %c0_i32_1 = arith.constant 0 : i32
    return %c0_i32, %c0_i32_0 : i32, i32
  }
  func.func @transform_1(%arg0: i32) -> (i32, i32) {
    %c0_i32 = arith.constant 0 : i32
    %c0_i32_0 = arith.constant 0 : i32
    return %arg0, %c0_i32 : i32, i32
  }
  func.func @transform_2(%arg0: i32) -> (i32, i32) {
    %c0_i32 = arith.constant 0 : i32
    %c0_i32_0 = arith.constant 0 : i32
    %c0_i32_1 = arith.constant 0 : i32
    return %c0_i32, %c0_i32_0 : i32, i32
  }
  func.func @transform_3(%arg0: i32) -> (i32, i32) {
    %c0_i32 = arith.constant 0 : i32
    %c0_i32_0 = arith.constant 0 : i32
    %c0_i32_1 = arith.constant 0 : i32
    return %c0_i32, %c0_i32_0 : i32, i32
  }
  func.func @transform_4(%arg0: i32) -> (i32, i32) {
    %c0_i32 = arith.constant 0 : i32
    %c0_i32_0 = arith.constant 0 : i32
    %c0_i32_1 = arith.constant 0 : i32
    return %c0_i32, %c0_i32_0 : i32, i32
  }
  func.func @transform_5(%arg0: i32) -> (i32, i32) {
    %c0_i32 = arith.constant 0 : i32
    %c0_i32_0 = arith.constant 0 : i32
    %c0_i32_1 = arith.constant 0 : i32
    return %c0_i32, %c0_i32_0 : i32, i32
  }
  func.func @transform_6(%arg0: i32) -> (i32, i32) {
    %c0_i32 = arith.constant 0 : i32
    %c0_i32_0 = arith.constant 0 : i32
    %c0_i32_1 = arith.constant 0 : i32
    return %c0_i32, %c0_i32_0 : i32, i32
  }
  func.func @transform_7(%arg0: i32) -> (i32, i32) {
    %c0_i32 = arith.constant 0 : i32
    %c0_i32_0 = arith.constant 0 : i32
    %c0_i32_1 = arith.constant 0 : i32
    return %c0_i32, %c0_i32_0 : i32, i32
  }
  func.func @transform_8(%arg0: i32) -> (i32, i32) {
    %c0_i32 = arith.constant 0 : i32
    %c0_i32_0 = arith.constant 0 : i32
    %c0_i32_1 = arith.constant 0 : i32
    return %c0_i32, %c0_i32_0 : i32, i32
  }
  func.func @transform_9(%arg0: i32) -> (i32, i32) {
    %c0_i32 = arith.constant 0 : i32
    %c0_i32_0 = arith.constant 0 : i32
    %c0_i32_1 = arith.constant 0 : i32
    return %c0_i32, %c0_i32_0 : i32, i32
  }
  func.func @transform_10(%arg0: i32) -> (i32, i32) {
    %c0_i32 = arith.constant 0 : i32
    %c0_i32_0 = arith.constant 0 : i32
    %c0_i32_1 = arith.constant 0 : i32
    return %c0_i32, %c0_i32_0 : i32, i32
  }
  func.func @transform_11(%arg0: i32) -> (i32, i32) {
    %c0_i32 = arith.constant 0 : i32
    %c0_i32_0 = arith.constant 0 : i32
    return %arg0, %c0_i32 : i32, i32
  }
}

</mosaic_0001>

<llo_original>
// kernel: discriminator_forward.2
$region0: #{discriminator_forward.2}
  #allocation0 [shape = 'u32[]', space=smem, size = 0x4, offset = 0x4, fixed_abs, tag = 'smem constant byte address 0x4 - core index']
  #allocation1 [shape = 'u32[72,128]{1,0:T(1,128)}', space=vmem, size = 0x9000, scoped, tag = 'internal scratch']
  #allocation2 [shape = 'f32[1,512]{1,0:T(1,128)}', space=vmem, size = 0x800, scoped, tag = 'scratch operand']
  #allocation3 [shape = 'f32[1,512]{1,0:T(1,128)}', space=vmem, size = 0x800, scoped, tag = 'scratch operand']
  %s0 = inlined_call_operand.vmem [shape: f32[256,48], index: 0, kind: input, shape index: {}]
  %s1 = inlined_call_operand.vmem [shape: bf16[48,512], index: 1, kind: input, shape index: {}]
  %s2 = inlined_call_operand.vmem [shape: f32[1,512], index: 2, kind: input, shape index: {}]
  %s3 = inlined_call_operand.hbm [shape: f32[1,1], index: 3, kind: output, shape index: {}]
  %s4 = sld [smem:[#allocation0]]
  $region53: #{discriminator_forward.2} parent=0
    _
  %s6 = ssub.s32 1, %s4
  %s7 = scalar_select 0, %s6, %s4
  $region1: #{discriminator_forward.2} parent=0
    #allocation4 [shape = 'u8[512]{0}', space=vmem, size = 0x400, scoped, tag = 'output window, operand 0, single buffered']
    #allocation5 [shape = 's32[2]{0}', space=sflag, size = 0x8, scoped, tag = 'scoped memory for discriminator_forward.2']
    %8 = vsyncpa [#allocation5], 0
    loop: start=0, step=1, limit=4
    $region2: #{discriminator_forward.2} parent=1 // loop_pre_header
      _
    $region3: #{discriminator_forward.2} parent=1 // loop_header
      %s10 = sphi 0, %s14
      %p11 = scmp.ge.s32.totalorder %s10, 4
      %s20 = sphi 0, %s22
      %s23 = sphi 0, %s20
      %s24 = sphi 0, %s23
      %s40 = sphi 0, %s24
      %s44 = sphi 0, %s44
      %s46 = sphi 0, %s44
      %s47 = sphi 0, %s46
      %s61 = sphi 0, %s47
      %s65 = sphi 0, %s65
      %s67 = sphi 0, %s65
      %s68 = sphi 0, %s67
      %s82 = sphi 0, %s68
      %s86 = sphi 0, %s86
      %s88 = sphi 0, %s86
      %s89 = sphi 0, %s88
      %s103 = sphi 0, %s89
    $region4: #{discriminator_forward.2} parent=1 // loop_header_branch
      %13 = sbr.rel (%p11) target = $region8
    $region5: #{discriminator_forward.2} parent=1 // loop_body
      %s15 = ssub.s32 %s10, 1
      %s16 = ssub.s32 %s10, 2
      %s17 = sadd.s32 %s10, 1
      %s18 = ssub.s32 %s10, %s17
      %p19 = scmp.eq.s32.totalorder %s18, 0
      %s21 = sadd.s32 %s20, 1
      %s22 = scalar_select %p19, %s20, %s21
      %p25 = pneg %p19
      %p26 = scmp.eq.s32.totalorder %s10, 1
      %p27 = por %p25, %p26
      %p28 = scmp.ne.s32.totalorder %s20, %s23
      %p29 = scmp.eq.s32.totalorder %s10, 0
      %p30 = por %p28, %p29
      %p31 = scmp.ne.s32.totalorder %s20, %s23
      %p32 = scmp.eq.s32.totalorder %s15, 1
      %p33 = por %p31, %p32
      %p34 = scmp.ne.s32.totalorder %s23, %s24
      %p35 = scmp.eq.s32.totalorder %s15, 0
      %p36 = por %p34, %p35
      %p37 = scmp.ne.s32.totalorder %s23, %s24
      %p38 = scmp.eq.s32.totalorder %s16, 1
      %p39 = por %p37, %p38
      %p41 = scmp.ne.s32.totalorder %s24, %s40
      %p42 = scmp.eq.s32.totalorder %s16, 0
      %p43 = por %p41, %p42
      %s45 = sadd.s32 %s44, 1
      %p48 = scmp.eq.s32.totalorder %s10, 1
      %p49 = scmp.ne.s32.totalorder %s44, %s46
      %p50 = scmp.eq.s32.totalorder %s10, 0
      %p51 = por %p49, %p50
      %p52 = scmp.ne.s32.totalorder %s44, %s46
      %p53 = scmp.eq.s32.totalorder %s15, 1
      %p54 = por %p52, %p53
      %p55 = scmp.ne.s32.totalorder %s46, %s47
      %p56 = scmp.eq.s32.totalorder %s15, 0
      %p57 = por %p55, %p56
      %p58 = scmp.ne.s32.totalorder %s46, %s47
      %p59 = scmp.eq.s32.totalorder %s16, 1
      %p60 = por %p58, %p59
      %p62 = scmp.ne.s32.totalorder %s47, %s61
      %p63 = scmp.eq.s32.totalorder %s16, 0
      %p64 = por %p62, %p63
      %s66 = sadd.s32 %s65, 1
      %p69 = scmp.eq.s32.totalorder %s10, 1
      %p70 = scmp.ne.s32.totalorder %s65, %s67
      %p71 = scmp.eq.s32.totalorder %s10, 0
      %p72 = por %p70, %p71
      %p73 = scmp.ne.s32.totalorder %s65, %s67
      %p74 = scmp.eq.s32.totalorder %s15, 1
      %p75 = por %p73, %p74
      %p76 = scmp.ne.s32.totalorder %s67, %s68
      %p77 = scmp.eq.s32.totalorder %s15, 0
      %p78 = por %p76, %p77
      %p79 = scmp.ne.s32.totalorder %s67, %s68
      %p80 = scmp.eq.s32.totalorder %s16, 1
      %p81 = por %p79, %p80
      %p83 = scmp.ne.s32.totalorder %s68, %s82
      %p84 = scmp.eq.s32.totalorder %s16, 0
      %p85 = por %p83, %p84
      %s87 = sadd.s32 %s86, 1
      %p90 = scmp.eq.s32.totalorder %s10, 1
      %p91 = scmp.ne.s32.totalorder %s86, %s88
      %p92 = scmp.eq.s32.totalorder %s10, 0
      %p93 = por %p91, %p92
      %p94 = scmp.ne.s32.totalorder %s86, %s88
      %p95 = scmp.eq.s32.totalorder %s15, 1
      %p96 = por %p94, %p95
      %p97 = scmp.ne.s32.totalorder %s88, %s89
      %p98 = scmp.eq.s32.totalorder %s15, 0
      %p99 = por %p97, %p98
      %p100 = scmp.ne.s32.totalorder %s88, %s89
      %p101 = scmp.eq.s32.totalorder %s16, 1
      %p102 = por %p100, %p101
      %p104 = scmp.ne.s32.totalorder %s89, %s103
      %p105 = scmp.eq.s32.totalorder %s16, 0
      %p106 = por %p104, %p105
      %p107 = scmp.le.s32.totalorder 1, %s10
      %p108 = scmp.lt.s32.totalorder %s10, 3
      %p109 = pnand %p107, %p108
      %p110 = pneg %p109
      // Predicated region
      $region9: #{discriminator_forward.2} parent=5 // pred_check
        _
      $region10: #{discriminator_forward.2} parent=5 // pred_check_branch
        %112 = sbr.rel (%p109) target = $region12
      $region11: #{discriminator_forward.2} parent=5 // pred_region
        %s113 = ssub.s32 %s10, 1
        // Predicated region
        $region13: #{discriminator_forward.2} parent=11 // pred_check
          %p114 = pneg %p57
        $region14: #{discriminator_forward.2} parent=11 // pred_check_branch
          %116 = sbr.rel (%p114) target = $region16
        $region15: #{discriminator_forward.2} parent=11 // pred_region
          _
        $region16: #{discriminator_forward.2} parent=11 // pred_fallthru
          _
        // Predicated region
        $region17: #{discriminator_forward.2} parent=11 // pred_check
          %p117 = pneg %p78
        $region18: #{discriminator_forward.2} parent=11 // pred_check_branch
          %119 = sbr.rel (%p117) target = $region20
        $region19: #{discriminator_forward.2} parent=11 // pred_region
          _
        $region20: #{discriminator_forward.2} parent=11 // pred_fallthru
          _
      $region12: #{discriminator_forward.2} parent=5 // pred_fallthru
        _
      %p120 = scmp.lt.s32.totalorder %s10, 2
      // Predicated region
      $region21: #{discriminator_forward.2} parent=5 // pred_check
        %p121 = pneg %p120
      $region22: #{discriminator_forward.2} parent=5 // pred_check_branch
        %123 = sbr.rel (%p121) target = $region24
      $region23: #{discriminator_forward.2} parent=5 // pred_region
        // Predicated region
        $region25: #{discriminator_forward.2} parent=23 // pred_check
          %p124 = pneg %p30
        $region26: #{discriminator_forward.2} parent=23 // pred_check_branch
          %126 = sbr.rel (%p124) target = $region28
        $region27: #{discriminator_forward.2} parent=23 // pred_region
          %s127 = smul.u32 16, %s10
          %p128 = scmp.lt.s32.totalorder %s127, 31
          %s129 = scalar_select %p128, %s127, 31
          %s130 = smul.addr %s129, 8
          %s131 = scalar_lea.vmem %s0, %s130
          %s132 = smul.u32 16, %s10
        $region28: #{discriminator_forward.2} parent=23 // pred_fallthru
          _
      $region24: #{discriminator_forward.2} parent=5 // pred_fallthru
        _
      %p133 = scmp.le.s32.totalorder 1, %s10
      %p134 = scmp.lt.s32.totalorder %s10, 3
      %p135 = pnand %p133, %p134
      %p136 = pneg %p135
      // Predicated region
      $region29: #{discriminator_forward.2} parent=5 // pred_check
        _
      $region30: #{discriminator_forward.2} parent=5 // pred_check_branch
        %138 = sbr.rel (%p135) target = $region32
      $region31: #{discriminator_forward.2} parent=5 // pred_region
        %s139 = ssub.s32 %s10, 1
        %s140 = smul.u32 16, %s15
        %p141 = scmp.lt.s32.totalorder %s140, 31
        %s142 = scalar_select %p141, %s140, 31
        %s143 = smul.addr %s142, 8
        %s144 = scalar_lea.vmem %s0, %s143
        %p145 = pneg %p36
        %p146 = pneg %p33
        %p147 = pneg %p57
        %p148 = pneg %p54
        %p149 = pneg %p78
        %p150 = pneg %p75
        %p151 = pneg %p99
        %p152 = pneg %p96
        %s153 = smul.u32 16, %s15
        %p154 = scmp.lt.s32.totalorder %s153, 31
        %s155 = scalar_select %p154, %s153, 31
        %s156 = smul.addr %s155, 8
        %s157 = scalar_lea.vmem %s0, %s156
        %s158 = smul.u32 16, %s15
        %p160 = scmp.eq.s32.totalorder %s15, 0
        // Predicated region
        $region33: #{discriminator_forward.2} parent=31 // pred_check
          %p161 = pneg %p160
        $region34: #{discriminator_forward.2} parent=31 // pred_check_branch
          %163 = sbr.rel (%p161) target = $region36
        $region35: #{discriminator_forward.2} parent=31 // pred_region
          %v164 = vlaneseq
          %vm165 = vcmp.ge.s32.totalorder %v164, 0
          %vm166 = vcmp.lt.s32.totalorder %v164, 512
          %vm167 = vmand %vm165, %vm166
          %168 = vst.msk [vmem:[#allocation2] sm:$0xf] %vm167, 0.0
          %169 = vst.msk [vmem:[#allocation3] sm:$0xf] %vm167, 0.0
        $region36: #{discriminator_forward.2} parent=31 // pred_fallthru
          _
        %v170 = vld [vmem:[%s157] sm:$0xff]
        %v171 = vld [vmem:[%s157 + $0x8] sm:$0xff]
        %v172 = vld [vmem:[%s157 + $0x10] sm:$0xff]
        %v173 = vld [vmem:[%s157 + $0x18] sm:$0xff]
        %v174 = vld [vmem:[%s157 + $0x20] sm:$0xff]
        %v175 = vld [vmem:[%s157 + $0x28] sm:$0xff]
        %v176 = vld [vmem:[%s157 + $0x30] sm:$0xff]
        %v177 = vld [vmem:[%s157 + $0x38] sm:$0xff]
        %v178 = vld [vmem:[%s157 + $0x40] sm:$0xff]
        %v179 = vld [vmem:[%s157 + $0x48] sm:$0xff]
        %v180 = vld [vmem:[%s157 + $0x50] sm:$0xff]
        %v181 = vld [vmem:[%s157 + $0x58] sm:$0xff]
        %v182 = vld [vmem:[%s157 + $0x60] sm:$0xff]
        %v183 = vld [vmem:[%s157 + $0x68] sm:$0xff]
        %v184 = vld [vmem:[%s157 + $0x70] sm:$0xff]
        %v185 = vld [vmem:[%s157 + $0x78] sm:$0xff]
        %v186 = vpack.c.bf16 %v171, %v170
        %v187 = vpack.c.bf16 %v173, %v172
        %v188 = vpack.c.bf16 %v175, %v174
        %v189 = vpack.c.bf16 %v177, %v176
        %v190 = vpack.c.bf16 %v179, %v178
        %v191 = vpack.c.bf16 %v181, %v180
        %v192 = vpack.c.bf16 %v183, %v182
        %v193 = vpack.c.bf16 %v185, %v184
        %v194 = vld [vmem:[%s1] sm:$0xff]
        %v195 = vld [vmem:[%s1 + $0x8] sm:$0xff]
        %v196 = vld [vmem:[%s1 + $0x10] sm:$0xff]
        %v197 = vld [vmem:[%s1 + $0x18] sm:$0xff]
        %v198 = vld [vmem:[%s1 + $0x20] sm:$0xff]
        %v199 = vld [vmem:[%s1 + $0x28] sm:$0xff]
        %v200 = vld [vmem:[%s1 + $0x30] sm:$0xff]
        %v201 = vld [vmem:[%s1 + $0x38] sm:$0xff]
        %v202 = vld [vmem:[%s1 + $0x40] sm:$0xff]
        %v203 = vld [vmem:[%s1 + $0x48] sm:$0xff]
        %v204 = vld [vmem:[%s1 + $0x50] sm:$0xff]
        %v205 = vld [vmem:[%s1 + $0x58] sm:$0xff]
        %v206 = vld [vmem:[%s2] sm:$0xf]
        %v208 = vperm.slane %v206, 0
        %v209 = vperm.slane %v206, 1
        %v210 = vperm.slane %v206, 2
        %v211 = vperm.slane %v206, 3
        %v228 = vunpack.c.l.b16 %v194
        %v229 = vunpack.c.h.b16 %v194
        %v230 = vunpack.c.l.b16 %v195
        %v231 = vunpack.c.h.b16 %v195
        %v232 = vunpack.c.l.b16 %v196
        %v233 = vunpack.c.h.b16 %v196
        %v234 = vunpack.c.l.b16 %v197
        %v235 = vunpack.c.h.b16 %v197
        %v236 = vunpack.c.l.b16 %v198
        %v237 = vunpack.c.h.b16 %v198
        %v238 = vunpack.c.l.b16 %v199
        %v239 = vunpack.c.h.b16 %v199
        %v240 = vunpack.c.l.b16 %v200
        %v241 = vunpack.c.h.b16 %v200
        %v242 = vunpack.c.l.b16 %v201
        %v243 = vunpack.c.h.b16 %v201
        %v244 = vunpack.c.l.b16 %v202
        %v245 = vunpack.c.h.b16 %v202
        %v246 = vunpack.c.l.b16 %v203
        %v247 = vunpack.c.h.b16 %v203
        %v248 = vunpack.c.l.b16 %v204
        %v249 = vunpack.c.h.b16 %v204
        %v250 = vunpack.c.l.b16 %v205
        %v251 = vunpack.c.h.b16 %v205
        %v252 = vpack.c.b16 %v232, %v228
        %v253 = vpack.c.b16 %v233, %v229
        %v254 = vpack.c.b16 %v234, %v230
        %v255 = vpack.c.b16 %v235, %v231
        %v256 = vpack.c.b16 %v240, %v236
        %v257 = vpack.c.b16 %v241, %v237
        %v258 = vpack.c.b16 %v242, %v238
        %v259 = vpack.c.b16 %v243, %v239
        %v260 = vpack.c.b16 %v248, %v244
        %v261 = vpack.c.b16 %v249, %v245
        %v262 = vpack.c.b16 %v250, %v246
        %v263 = vpack.c.b16 %v251, %v247
        %vm276 = vcmask 392192
        %v278 = vsel %vm276, %v186, 0
        %v281 = vsel %vm276, %v187, 0
        %v284 = vsel %vm276, %v188, 0
        %v287 = vsel %vm276, %v189, 0
        %v290 = vsel %vm276, %v190, 0
        %v293 = vsel %vm276, %v191, 0
        %v296 = vsel %vm276, %v192, 0
        %v299 = vsel %vm276, %v193, 0
        %301 = vmatpush.bf16.msra.mxu0 0
        %302 = vmatpush.bf16.msra.mxu0 0
        %303 = vmatpush.bf16.msra.mxu0 0
        %304 = vmatpush.bf16.msra.mxu0 0
        %305 = vmatpush.bf16.msra.mxu0 0
        %306 = vmatpush.bf16.msra.mxu0 %v260
        %307 = vmatpush.bf16.msra.mxu0 %v256
        %308 = vmatpush.bf16.msra.mxu0 %v252
        %309 = vmatmul.bf16.gmra.mxu0 %v278
        %v310 = vpop.f32.mrf.mxu0
        %v311 = vadd.f32 %v208, %v310
        %v312 = vpop.f32.mrf.mxu0
        %v313 = vadd.f32 %v208, %v312
        %314 = vmatmul.bf16.gmra.mxu0 %v281
        %v315 = vpop.f32.mrf.mxu0
        %v316 = vadd.f32 %v208, %v315
        %v317 = vpop.f32.mrf.mxu0
        %v318 = vadd.f32 %v208, %v317
        %319 = vmatmul.bf16.gmra.mxu0 %v284
        %v320 = vpop.f32.mrf.mxu0
        %v321 = vadd.f32 %v208, %v320
        %v322 = vpop.f32.mrf.mxu0
        %v323 = vadd.f32 %v208, %v322
        %324 = vmatmul.bf16.gmra.mxu0 %v287
        %v325 = vpop.f32.mrf.mxu0
        %v326 = vadd.f32 %v208, %v325
        %v327 = vpop.f32.mrf.mxu0
        %v328 = vadd.f32 %v208, %v327
        %329 = vmatmul.bf16.gmra.mxu0 %v290
        %v330 = vpop.f32.mrf.mxu0
        %v331 = vadd.f32 %v208, %v330
        %v332 = vpop.f32.mrf.mxu0
        %v333 = vadd.f32 %v208, %v332
        %334 = vmatmul.bf16.gmra.mxu0 %v293
        %v335 = vpop.f32.mrf.mxu0
        %v336 = vadd.f32 %v208, %v335
        %v337 = vpop.f32.mrf.mxu0
        %v338 = vadd.f32 %v208, %v337
        %339 = vmatmul.bf16.gmra.mxu0 %v296
        %v340 = vpop.f32.mrf.mxu0
        %v341 = vadd.f32 %v208, %v340
        %v342 = vpop.f32.mrf.mxu0
        %v343 = vadd.f32 %v208, %v342
        %344 = vmatmul.bf16.gmra.mxu0 %v299
        %v345 = vpop.f32.mrf.mxu0
        %v346 = vadd.f32 %v208, %v345
        %v347 = vpop.f32.mrf.mxu0
        %v348 = vadd.f32 %v208, %v347
        %349 = vdwg.mxu0
        %350 = vmatpush.bf16.msra.mxu0 0
        %351 = vmatpush.bf16.msra.mxu0 0
        %352 = vmatpush.bf16.msra.mxu0 0
        %353 = vmatpush.bf16.msra.mxu0 0
        %354 = vmatpush.bf16.msra.mxu0 0
        %355 = vmatpush.bf16.msra.mxu0 %v261
        %356 = vmatpush.bf16.msra.mxu0 %v257
        %357 = vmatpush.bf16.msra.mxu0 %v253
        %358 = vmatmul.bf16.gmra.mxu0 %v278
        %v359 = vpop.f32.mrf.mxu0
        %v360 = vadd.f32 %v209, %v359
        %v361 = vpop.f32.mrf.mxu0
        %v362 = vadd.f32 %v209, %v361
        %363 = vmatmul.bf16.gmra.mxu0 %v281
        %v364 = vpop.f32.mrf.mxu0
        %v365 = vadd.f32 %v209, %v364
        %v366 = vpop.f32.mrf.mxu0
        %v367 = vadd.f32 %v209, %v366
        %368 = vmatmul.bf16.gmra.mxu0 %v284
        %v369 = vpop.f32.mrf.mxu0
        %v370 = vadd.f32 %v209, %v369
        %v371 = vpop.f32.mrf.mxu0
        %v372 = vadd.f32 %v209, %v371
        %373 = vmatmul.bf16.gmra.mxu0 %v287
        %v374 = vpop.f32.mrf.mxu0
        %v375 = vadd.f32 %v209, %v374
        %v376 = vpop.f32.mrf.mxu0
        %v377 = vadd.f32 %v209, %v376
        %378 = vmatmul.bf16.gmra.mxu0 %v290
        %v379 = vpop.f32.mrf.mxu0
        %v380 = vadd.f32 %v209, %v379
        %v381 = vpop.f32.mrf.mxu0
        %v382 = vadd.f32 %v209, %v381
        %383 = vmatmul.bf16.gmra.mxu0 %v293
        %v384 = vpop.f32.mrf.mxu0
        %v385 = vadd.f32 %v209, %v384
        %v386 = vpop.f32.mrf.mxu0
        %v387 = vadd.f32 %v209, %v386
        %388 = vmatmul.bf16.gmra.mxu0 %v296
        %v389 = vpop.f32.mrf.mxu0
        %v390 = vadd.f32 %v209, %v389
        %v391 = vpop.f32.mrf.mxu0
        %v392 = vadd.f32 %v209, %v391
        %393 = vmatmul.bf16.gmra.mxu0 %v299
        %v394 = vpop.f32.mrf.mxu0
        %v395 = vadd.f32 %v209, %v394
        %v396 = vpop.f32.mrf.mxu0
        %v397 = vadd.f32 %v209, %v396
        %398 = vdwg.mxu0
        %399 = vmatpush.bf16.msra.mxu0 0
        %400 = vmatpush.bf16.msra.mxu0 0
        %401 = vmatpush.bf16.msra.mxu0 0
        %402 = vmatpush.bf16.msra.mxu0 0
        %403 = vmatpush.bf16.msra.mxu0 0
        %404 = vmatpush.bf16.msra.mxu0 %v262
        %405 = vmatpush.bf16.msra.mxu0 %v258
        %406 = vmatpush.bf16.msra.mxu0 %v254
        %407 = vmatmul.bf16.gmra.mxu0 %v278
        %v408 = vpop.f32.mrf.mxu0
        %v409 = vadd.f32 %v210, %v408
        %v410 = vpop.f32.mrf.mxu0
        %v411 = vadd.f32 %v210, %v410
        %412 = vmatmul.bf16.gmra.mxu0 %v281
        %v413 = vpop.f32.mrf.mxu0
        %v414 = vadd.f32 %v210, %v413
        %v415 = vpop.f32.mrf.mxu0
        %v416 = vadd.f32 %v210, %v415
        %417 = vmatmul.bf16.gmra.mxu0 %v284
        %v418 = vpop.f32.mrf.mxu0
        %v419 = vadd.f32 %v210, %v418
        %v420 = vpop.f32.mrf.mxu0
        %v421 = vadd.f32 %v210, %v420
        %422 = vmatmul.bf16.gmra.mxu0 %v287
        %v423 = vpop.f32.mrf.mxu0
        %v424 = vadd.f32 %v210, %v423
        %v425 = vpop.f32.mrf.mxu0
        %v426 = vadd.f32 %v210, %v425
        %427 = vmatmul.bf16.gmra.mxu0 %v290
        %v428 = vpop.f32.mrf.mxu0
        %v429 = vadd.f32 %v210, %v428
        %v430 = vpop.f32.mrf.mxu0
        %v431 = vadd.f32 %v210, %v430
        %432 = vmatmul.bf16.gmra.mxu0 %v293
        %v433 = vpop.f32.mrf.mxu0
        %v434 = vadd.f32 %v210, %v433
        %v435 = vpop.f32.mrf.mxu0
        %v436 = vadd.f32 %v210, %v435
        %437 = vmatmul.bf16.gmra.mxu0 %v296
        %v438 = vpop.f32.mrf.mxu0
        %v439 = vadd.f32 %v210, %v438
        %v440 = vpop.f32.mrf.mxu0
        %v441 = vadd.f32 %v210, %v440
        %442 = vmatmul.bf16.gmra.mxu0 %v299
        %v443 = vpop.f32.mrf.mxu0
        %v444 = vadd.f32 %v210, %v443
        %v445 = vpop.f32.mrf.mxu0
        %v446 = vadd.f32 %v210, %v445
        %447 = vdwg.mxu0
        %448 = vmatpush.bf16.msra.mxu0 0
        %449 = vmatpush.bf16.msra.mxu0 0
        %450 = vmatpush.bf16.msra.mxu0 0
        %451 = vmatpush.bf16.msra.mxu0 0
        %452 = vmatpush.bf16.msra.mxu0 0
        %453 = vmatpush.bf16.msra.mxu0 %v263
        %454 = vmatpush.bf16.msra.mxu0 %v259
        %455 = vmatpush.bf16.msra.mxu0 %v255
        %456 = vmatmul.bf16.gmra.mxu0 %v278
        %v457 = vpop.f32.mrf.mxu0
        %v458 = vadd.f32 %v211, %v457
        %v459 = vpop.f32.mrf.mxu0
        %v460 = vadd.f32 %v211, %v459
        %461 = vmatmul.bf16.gmra.mxu0 %v281
        %v462 = vpop.f32.mrf.mxu0
        %v463 = vadd.f32 %v211, %v462
        %v464 = vpop.f32.mrf.mxu0
        %v465 = vadd.f32 %v211, %v464
        %466 = vmatmul.bf16.gmra.mxu0 %v284
        %v467 = vpop.f32.mrf.mxu0
        %v468 = vadd.f32 %v211, %v467
        %v469 = vpop.f32.mrf.mxu0
        %v470 = vadd.f32 %v211, %v469
        %471 = vmatmul.bf16.gmra.mxu0 %v287
        %v472 = vpop.f32.mrf.mxu0
        %v473 = vadd.f32 %v211, %v472
        %v474 = vpop.f32.mrf.mxu0
        %v475 = vadd.f32 %v211, %v474
        %476 = vmatmul.bf16.gmra.mxu0 %v290
        %v477 = vpop.f32.mrf.mxu0
        %v478 = vadd.f32 %v211, %v477
        %v479 = vpop.f32.mrf.mxu0
        %v480 = vadd.f32 %v211, %v479
        %481 = vmatmul.bf16.gmra.mxu0 %v293
        %v482 = vpop.f32.mrf.mxu0
        %v483 = vadd.f32 %v211, %v482
        %v484 = vpop.f32.mrf.mxu0
        %v485 = vadd.f32 %v211, %v484
        %486 = vmatmul.bf16.gmra.mxu0 %v296
        %v487 = vpop.f32.mrf.mxu0
        %v488 = vadd.f32 %v211, %v487
        %v489 = vpop.f32.mrf.mxu0
        %v490 = vadd.f32 %v211, %v489
        %491 = vmatmul.bf16.gmra.mxu0 %v299
        %v492 = vpop.f32.mrf.mxu0
        %v493 = vadd.f32 %v211, %v492
        %v494 = vpop.f32.mrf.mxu0
        %v495 = vadd.f32 %v211, %v494
        %496 = vdwg.mxu0
        %vm497 = vcmp.ge.f32.partialorder %v311, 0.0
        %vm498 = vcmp.ge.f32.partialorder %v360, 0.0
        %vm499 = vcmp.ge.f32.partialorder %v409, 0.0
        %vm500 = vcmp.ge.f32.partialorder %v458, 0.0
        %vm501 = vcmp.ge.f32.partialorder %v313, 0.0
        %vm502 = vcmp.ge.f32.partialorder %v362, 0.0
        %vm503 = vcmp.ge.f32.partialorder %v411, 0.0
        %vm504 = vcmp.ge.f32.partialorder %v460, 0.0
        %vm505 = vcmp.ge.f32.partialorder %v316, 0.0
        %vm506 = vcmp.ge.f32.partialorder %v365, 0.0
        %vm507 = vcmp.ge.f32.partialorder %v414, 0.0
        %vm508 = vcmp.ge.f32.partialorder %v463, 0.0
        %vm509 = vcmp.ge.f32.partialorder %v318, 0.0
        %vm510 = vcmp.ge.f32.partialorder %v367, 0.0
        %vm511 = vcmp.ge.f32.partialorder %v416, 0.0
        %vm512 = vcmp.ge.f32.partialorder %v465, 0.0
        %vm513 = vcmp.ge.f32.partialorder %v321, 0.0
        %vm514 = vcmp.ge.f32.partialorder %v370, 0.0
        %vm515 = vcmp.ge.f32.partialorder %v419, 0.0
        %vm516 = vcmp.ge.f32.partialorder %v468, 0.0
        %vm517 = vcmp.ge.f32.partialorder %v323, 0.0
        %vm518 = vcmp.ge.f32.partialorder %v372, 0.0
        %vm519 = vcmp.ge.f32.partialorder %v421, 0.0
        %vm520 = vcmp.ge.f32.partialorder %v470, 0.0
        %vm521 = vcmp.ge.f32.partialorder %v326, 0.0
        %vm522 = vcmp.ge.f32.partialorder %v375, 0.0
        %vm523 = vcmp.ge.f32.partialorder %v424, 0.0
        %vm524 = vcmp.ge.f32.partialorder %v473, 0.0
        %vm525 = vcmp.ge.f32.partialorder %v328, 0.0
        %vm526 = vcmp.ge.f32.partialorder %v377, 0.0
        %vm527 = vcmp.ge.f32.partialorder %v426, 0.0
        %vm528 = vcmp.ge.f32.partialorder %v475, 0.0
        %vm529 = vcmp.ge.f32.partialorder %v331, 0.0
        %vm530 = vcmp.ge.f32.partialorder %v380, 0.0
        %vm531 = vcmp.ge.f32.partialorder %v429, 0.0
        %vm532 = vcmp.ge.f32.partialorder %v478, 0.0
        %vm533 = vcmp.ge.f32.partialorder %v333, 0.0
        %vm534 = vcmp.ge.f32.partialorder %v382, 0.0
        %vm535 = vcmp.ge.f32.partialorder %v431, 0.0
        %vm536 = vcmp.ge.f32.partialorder %v480, 0.0
        %vm537 = vcmp.ge.f32.partialorder %v336, 0.0
        %vm538 = vcmp.ge.f32.partialorder %v385, 0.0
        %vm539 = vcmp.ge.f32.partialorder %v434, 0.0
        %vm540 = vcmp.ge.f32.partialorder %v483, 0.0
        %vm541 = vcmp.ge.f32.partialorder %v338, 0.0
        %vm542 = vcmp.ge.f32.partialorder %v387, 0.0
        %vm543 = vcmp.ge.f32.partialorder %v436, 0.0
        %vm544 = vcmp.ge.f32.partialorder %v485, 0.0
        %vm545 = vcmp.ge.f32.partialorder %v341, 0.0
        %vm546 = vcmp.ge.f32.partialorder %v390, 0.0
        %vm547 = vcmp.ge.f32.partialorder %v439, 0.0
        %vm548 = vcmp.ge.f32.partialorder %v488, 0.0
        %vm549 = vcmp.ge.f32.partialorder %v343, 0.0
        %vm550 = vcmp.ge.f32.partialorder %v392, 0.0
        %vm551 = vcmp.ge.f32.partialorder %v441, 0.0
        %vm552 = vcmp.ge.f32.partialorder %v490, 0.0
        %vm553 = vcmp.ge.f32.partialorder %v346, 0.0
        %vm554 = vcmp.ge.f32.partialorder %v395, 0.0
        %vm555 = vcmp.ge.f32.partialorder %v444, 0.0
        %vm556 = vcmp.ge.f32.partialorder %v493, 0.0
        %vm557 = vcmp.ge.f32.partialorder %v348, 0.0
        %vm558 = vcmp.ge.f32.partialorder %v397, 0.0
        %vm559 = vcmp.ge.f32.partialorder %v446, 0.0
        %vm560 = vcmp.ge.f32.partialorder %v495, 0.0
        %v561 = vmul.f32 %v311, 0.2
        %v562 = vmul.f32 %v360, 0.2
        %v563 = vmul.f32 %v409, 0.2
        %v564 = vmul.f32 %v458, 0.2
        %v565 = vmul.f32 %v313, 0.2
        %v566 = vmul.f32 %v362, 0.2
        %v567 = vmul.f32 %v411, 0.2
        %v568 = vmul.f32 %v460, 0.2
        %v569 = vmul.f32 %v316, 0.2
        %v570 = vmul.f32 %v365, 0.2
        %v571 = vmul.f32 %v414, 0.2
        %v572 = vmul.f32 %v463, 0.2
        %v573 = vmul.f32 %v318, 0.2
        %v574 = vmul.f32 %v367, 0.2
        %v575 = vmul.f32 %v416, 0.2
        %v576 = vmul.f32 %v465, 0.2
        %v577 = vmul.f32 %v321, 0.2
        %v578 = vmul.f32 %v370, 0.2
        %v579 = vmul.f32 %v419, 0.2
        %v580 = vmul.f32 %v468, 0.2
        %v581 = vmul.f32 %v323, 0.2
        %v582 = vmul.f32 %v372, 0.2
        %v583 = vmul.f32 %v421, 0.2
        %v584 = vmul.f32 %v470, 0.2
        %v585 = vmul.f32 %v326, 0.2
        %v586 = vmul.f32 %v375, 0.2
        %v587 = vmul.f32 %v424, 0.2
        %v588 = vmul.f32 %v473, 0.2
        %v589 = vmul.f32 %v328, 0.2
        %v590 = vmul.f32 %v377, 0.2
        %v591 = vmul.f32 %v426, 0.2
        %v592 = vmul.f32 %v475, 0.2
        %v593 = vmul.f32 %v331, 0.2
        %v594 = vmul.f32 %v380, 0.2
        %v595 = vmul.f32 %v429, 0.2
        %v596 = vmul.f32 %v478, 0.2
        %v597 = vmul.f32 %v333, 0.2
        %v598 = vmul.f32 %v382, 0.2
        %v599 = vmul.f32 %v431, 0.2
        %v600 = vmul.f32 %v480, 0.2
        %v601 = vmul.f32 %v336, 0.2
        %v602 = vmul.f32 %v385, 0.2
        %v603 = vmul.f32 %v434, 0.2
        %v604 = vmul.f32 %v483, 0.2
        %v605 = vmul.f32 %v338, 0.2
        %v606 = vmul.f32 %v387, 0.2
        %v607 = vmul.f32 %v436, 0.2
        %v608 = vmul.f32 %v485, 0.2
        %v609 = vmul.f32 %v341, 0.2
        %v610 = vmul.f32 %v390, 0.2
        %v611 = vmul.f32 %v439, 0.2
        %v612 = vmul.f32 %v488, 0.2
        %v613 = vmul.f32 %v343, 0.2
        %v614 = vmul.f32 %v392, 0.2
        %v615 = vmul.f32 %v441, 0.2
        %v616 = vmul.f32 %v490, 0.2
        %v617 = vmul.f32 %v346, 0.2
        %v618 = vmul.f32 %v395, 0.2
        %v619 = vmul.f32 %v444, 0.2
        %v620 = vmul.f32 %v493, 0.2
        %v621 = vmul.f32 %v348, 0.2
        %v622 = vmul.f32 %v397, 0.2
        %v623 = vmul.f32 %v446, 0.2
        %v624 = vmul.f32 %v495, 0.2
        %v625 = vsel %vm497, %v311, %v561
        %v626 = vsel %vm498, %v360, %v562
        %v627 = vsel %vm499, %v409, %v563
        %v628 = vsel %vm500, %v458, %v564
        %v629 = vsel %vm501, %v313, %v565
        %v630 = vsel %vm502, %v362, %v566
        %v631 = vsel %vm503, %v411, %v567
        %v632 = vsel %vm504, %v460, %v568
        %v633 = vsel %vm505, %v316, %v569
        %v634 = vsel %vm506, %v365, %v570
        %v635 = vsel %vm507, %v414, %v571
        %v636 = vsel %vm508, %v463, %v572
        %v637 = vsel %vm509, %v318, %v573
        %v638 = vsel %vm510, %v367, %v574
        %v639 = vsel %vm511, %v416, %v575
        %v640 = vsel %vm512, %v465, %v576
        %v641 = vsel %vm513, %v321, %v577
        %v642 = vsel %vm514, %v370, %v578
        %v643 = vsel %vm515, %v419, %v579
        %v644 = vsel %vm516, %v468, %v580
        %v645 = vsel %vm517, %v323, %v581
        %v646 = vsel %vm518, %v372, %v582
        %v647 = vsel %vm519, %v421, %v583
        %v648 = vsel %vm520, %v470, %v584
        %v649 = vsel %vm521, %v326, %v585
        %v650 = vsel %vm522, %v375, %v586
        %v651 = vsel %vm523, %v424, %v587
        %v652 = vsel %vm524, %v473, %v588
        %v653 = vsel %vm525, %v328, %v589
        %v654 = vsel %vm526, %v377, %v590
        %v655 = vsel %vm527, %v426, %v591
        %v656 = vsel %vm528, %v475, %v592
        %v657 = vsel %vm529, %v331, %v593
        %v658 = vsel %vm530, %v380, %v594
        %v659 = vsel %vm531, %v429, %v595
        %v660 = vsel %vm532, %v478, %v596
        %v661 = vsel %vm533, %v333, %v597
        %v662 = vsel %vm534, %v382, %v598
        %v663 = vsel %vm535, %v431, %v599
        %v664 = vsel %vm536, %v480, %v600
        %v665 = vsel %vm537, %v336, %v601
        %v666 = vsel %vm538, %v385, %v602
        %v667 = vsel %vm539, %v434, %v603
        %v668 = vsel %vm540, %v483, %v604
        %v669 = vsel %vm541, %v338, %v605
        %v670 = vsel %vm542, %v387, %v606
        %v671 = vsel %vm543, %v436, %v607
        %v672 = vsel %vm544, %v485, %v608
        %v673 = vsel %vm545, %v341, %v609
        %v674 = vsel %vm546, %v390, %v610
        %v675 = vsel %vm547, %v439, %v611
        %v676 = vsel %vm548, %v488, %v612
        %v677 = vsel %vm549, %v343, %v613
        %v678 = vsel %vm550, %v392, %v614
        %v679 = vsel %vm551, %v441, %v615
        %v680 = vsel %vm552, %v490, %v616
        %v681 = vsel %vm553, %v346, %v617
        %v682 = vsel %vm554, %v395, %v618
        %v683 = vsel %vm555, %v444, %v619
        %v684 = vsel %vm556, %v493, %v620
        %v685 = vsel %vm557, %v348, %v621
        %v686 = vsel %vm558, %v397, %v622
        %v687 = vsel %vm559, %v446, %v623
        %v688 = vsel %vm560, %v495, %v624
        %v689 = vld [vmem:[#allocation2] sm:$0xf]
        %v690 = vadd.f32 %v625, %v629
        %v691 = vadd.f32 %v690, %v633
        %v692 = vadd.f32 %v691, %v637
        %v693 = vadd.f32 %v692, %v641
        %v694 = vadd.f32 %v693, %v645
        %v695 = vadd.f32 %v694, %v649
        %v696 = vadd.f32 %v695, %v653
        %v697 = vadd.f32 %v696, %v657
        %v698 = vadd.f32 %v697, %v661
        %v699 = vadd.f32 %v698, %v665
        %v700 = vadd.f32 %v699, %v669
        %v701 = vadd.f32 %v700, %v673
        %v702 = vadd.f32 %v701, %v677
        %v703 = vadd.f32 %v702, %v681
        %v704 = vadd.f32 %v703, %v685
        %v705 = vrot.slane %v704, 4
        %v706 = vadd.f32 %v704, %v705
        %v707 = vrot.slane %v706, 2
        %v708 = vadd.f32 %v706, %v707
        %v709 = vrot.slane %v708, 1
        %v710 = vadd.f32 %v708, %v709
        %v711 = vadd.f32 %v626, %v630
        %v712 = vadd.f32 %v711, %v634
        %v713 = vadd.f32 %v712, %v638
        %v714 = vadd.f32 %v713, %v642
        %v715 = vadd.f32 %v714, %v646
        %v716 = vadd.f32 %v715, %v650
        %v717 = vadd.f32 %v716, %v654
        %v718 = vadd.f32 %v717, %v658
        %v719 = vadd.f32 %v718, %v662
        %v720 = vadd.f32 %v719, %v666
        %v721 = vadd.f32 %v720, %v670
        %v722 = vadd.f32 %v721, %v674
        %v723 = vadd.f32 %v722, %v678
        %v724 = vadd.f32 %v723, %v682
        %v725 = vadd.f32 %v724, %v686
        %v726 = vrot.slane %v725, 4
        %v727 = vadd.f32 %v725, %v726
        %v728 = vrot.slane %v727, 2
        %v729 = vadd.f32 %v727, %v728
        %v730 = vrot.slane %v729, 1
        %v731 = vadd.f32 %v729, %v730
        %v732 = vadd.f32 %v627, %v631
        %v733 = vadd.f32 %v732, %v635
        %v734 = vadd.f32 %v733, %v639
        %v735 = vadd.f32 %v734, %v643
        %v736 = vadd.f32 %v735, %v647
        %v737 = vadd.f32 %v736, %v651
        %v738 = vadd.f32 %v737, %v655
        %v739 = vadd.f32 %v738, %v659
        %v740 = vadd.f32 %v739, %v663
        %v741 = vadd.f32 %v740, %v667
        %v742 = vadd.f32 %v741, %v671
        %v743 = vadd.f32 %v742, %v675
        %v744 = vadd.f32 %v743, %v679
        %v745 = vadd.f32 %v744, %v683
        %v746 = vadd.f32 %v745, %v687
        %v747 = vrot.slane %v746, 4
        %v748 = vadd.f32 %v746, %v747
        %v749 = vrot.slane %v748, 2
        %v750 = vadd.f32 %v748, %v749
        %v751 = vrot.slane %v750, 1
        %v752 = vadd.f32 %v750, %v751
        %v753 = vadd.f32 %v628, %v632
        %v754 = vadd.f32 %v753, %v636
        %v755 = vadd.f32 %v754, %v640
        %v756 = vadd.f32 %v755, %v644
        %v757 = vadd.f32 %v756, %v648
        %v758 = vadd.f32 %v757, %v652
        %v759 = vadd.f32 %v758, %v656
        %v760 = vadd.f32 %v759, %v660
        %v761 = vadd.f32 %v760, %v664
        %v762 = vadd.f32 %v761, %v668
        %v763 = vadd.f32 %v762, %v672
        %v764 = vadd.f32 %v763, %v676
        %v765 = vadd.f32 %v764, %v680
        %v766 = vadd.f32 %v765, %v684
        %v767 = vadd.f32 %v766, %v688
        %v768 = vrot.slane %v767, 4
        %v769 = vadd.f32 %v767, %v768
        %v770 = vrot.slane %v769, 2
        %v771 = vadd.f32 %v769, %v770
        %v772 = vrot.slane %v771, 1
        %v773 = vadd.f32 %v771, %v772
        %v778 = vrot.slane %v731, 7
        %v779 = vrot.slane %v752, 6
        %v780 = vrot.slane %v773, 5
        %vm781 = vcmask 1040384
        %v782 = vsel %vm781, %v710, %v778
        %vm783 = vcmask 1042434
        %v784 = vsel %vm783, %v779, %v780
        %vm785 = vcmask 1041408
        %v786 = vsel %vm785, %v782, %v784
        %v788 = vadd.f32 %v689, %v786
        %v789 = vlaneseq
        %vm790 = vcmp.ge.s32.totalorder %v789, 0
        %vm791 = vcmp.lt.s32.totalorder %v789, 512
        %vm792 = vmand %vm790, %vm791
        %793 = vst.msk [vmem:[#allocation2] sm:$0xf] %vm792, %v788
        %v794 = vld [vmem:[#allocation3] sm:$0xf]
        %v795 = vmul.f32 %v625, %v625
        %v796 = vmul.f32 %v626, %v626
        %v797 = vmul.f32 %v627, %v627
        %v798 = vmul.f32 %v628, %v628
        %v799 = vmul.f32 %v629, %v629
        %v800 = vmul.f32 %v630, %v630
        %v801 = vmul.f32 %v631, %v631
        %v802 = vmul.f32 %v632, %v632
        %v803 = vmul.f32 %v633, %v633
        %v804 = vmul.f32 %v634, %v634
        %v805 = vmul.f32 %v635, %v635
        %v806 = vmul.f32 %v636, %v636
        %v807 = vmul.f32 %v637, %v637
        %v808 = vmul.f32 %v638, %v638
        %v809 = vmul.f32 %v639, %v639
        %v810 = vmul.f32 %v640, %v640
        %v811 = vmul.f32 %v641, %v641
        %v812 = vmul.f32 %v642, %v642
        %v813 = vmul.f32 %v643, %v643
        %v814 = vmul.f32 %v644, %v644
        %v815 = vmul.f32 %v645, %v645
        %v816 = vmul.f32 %v646, %v646
        %v817 = vmul.f32 %v647, %v647
        %v818 = vmul.f32 %v648, %v648
        %v819 = vmul.f32 %v649, %v649
        %v820 = vmul.f32 %v650, %v650
        %v821 = vmul.f32 %v651, %v651
        %v822 = vmul.f32 %v652, %v652
        %v823 = vmul.f32 %v653, %v653
        %v824 = vmul.f32 %v654, %v654
        %v825 = vmul.f32 %v655, %v655
        %v826 = vmul.f32 %v656, %v656
        %v827 = vmul.f32 %v657, %v657
        %v828 = vmul.f32 %v658, %v658
        %v829 = vmul.f32 %v659, %v659
        %v830 = vmul.f32 %v660, %v660
        %v831 = vmul.f32 %v661, %v661
        %v832 = vmul.f32 %v662, %v662
        %v833 = vmul.f32 %v663, %v663
        %v834 = vmul.f32 %v664, %v664
        %v835 = vmul.f32 %v665, %v665
        %v836 = vmul.f32 %v666, %v666
        %v837 = vmul.f32 %v667, %v667
        %v838 = vmul.f32 %v668, %v668
        %v839 = vmul.f32 %v669, %v669
        %v840 = vmul.f32 %v670, %v670
        %v841 = vmul.f32 %v671, %v671
        %v842 = vmul.f32 %v672, %v672
        %v843 = vmul.f32 %v673, %v673
        %v844 = vmul.f32 %v674, %v674
        %v845 = vmul.f32 %v675, %v675
        %v846 = vmul.f32 %v676, %v676
        %v847 = vmul.f32 %v677, %v677
        %v848 = vmul.f32 %v678, %v678
        %v849 = vmul.f32 %v679, %v679
        %v850 = vmul.f32 %v680, %v680
        %v851 = vmul.f32 %v681, %v681
        %v852 = vmul.f32 %v682, %v682
        %v853 = vmul.f32 %v683, %v683
        %v854 = vmul.f32 %v684, %v684
        %v855 = vmul.f32 %v685, %v685
        %v856 = vmul.f32 %v686, %v686
        %v857 = vmul.f32 %v687, %v687
        %v858 = vmul.f32 %v688, %v688
        %v859 = vadd.f32 %v795, %v799
        %v860 = vadd.f32 %v859, %v803
        %v861 = vadd.f32 %v860, %v807
        %v862 = vadd.f32 %v861, %v811
        %v863 = vadd.f32 %v862, %v815
        %v864 = vadd.f32 %v863, %v819
        %v865 = vadd.f32 %v864, %v823
        %v866 = vadd.f32 %v865, %v827
        %v867 = vadd.f32 %v866, %v831
        %v868 = vadd.f32 %v867, %v835
        %v869 = vadd.f32 %v868, %v839
        %v870 = vadd.f32 %v869, %v843
        %v871 = vadd.f32 %v870, %v847
        %v872 = vadd.f32 %v871, %v851
        %v873 = vadd.f32 %v872, %v855
        %v874 = vrot.slane %v873, 4
        %v875 = vadd.f32 %v873, %v874
        %v876 = vrot.slane %v875, 2
        %v877 = vadd.f32 %v875, %v876
        %v878 = vrot.slane %v877, 1
        %v879 = vadd.f32 %v877, %v878
        %v880 = vadd.f32 %v796, %v800
        %v881 = vadd.f32 %v880, %v804
        %v882 = vadd.f32 %v881, %v808
        %v883 = vadd.f32 %v882, %v812
        %v884 = vadd.f32 %v883, %v816
        %v885 = vadd.f32 %v884, %v820
        %v886 = vadd.f32 %v885, %v824
        %v887 = vadd.f32 %v886, %v828
        %v888 = vadd.f32 %v887, %v832
        %v889 = vadd.f32 %v888, %v836
        %v890 = vadd.f32 %v889, %v840
        %v891 = vadd.f32 %v890, %v844
        %v892 = vadd.f32 %v891, %v848
        %v893 = vadd.f32 %v892, %v852
        %v894 = vadd.f32 %v893, %v856
        %v895 = vrot.slane %v894, 4
        %v896 = vadd.f32 %v894, %v895
        %v897 = vrot.slane %v896, 2
        %v898 = vadd.f32 %v896, %v897
        %v899 = vrot.slane %v898, 1
        %v900 = vadd.f32 %v898, %v899
        %v901 = vadd.f32 %v797, %v801
        %v902 = vadd.f32 %v901, %v805
        %v903 = vadd.f32 %v902, %v809
        %v904 = vadd.f32 %v903, %v813
        %v905 = vadd.f32 %v904, %v817
        %v906 = vadd.f32 %v905, %v821
        %v907 = vadd.f32 %v906, %v825
        %v908 = vadd.f32 %v907, %v829
        %v909 = vadd.f32 %v908, %v833
        %v910 = vadd.f32 %v909, %v837
        %v911 = vadd.f32 %v910, %v841
        %v912 = vadd.f32 %v911, %v845
        %v913 = vadd.f32 %v912, %v849
        %v914 = vadd.f32 %v913, %v853
        %v915 = vadd.f32 %v914, %v857
        %v916 = vrot.slane %v915, 4
        %v917 = vadd.f32 %v915, %v916
        %v918 = vrot.slane %v917, 2
        %v919 = vadd.f32 %v917, %v918
        %v920 = vrot.slane %v919, 1
        %v921 = vadd.f32 %v919, %v920
        %v922 = vadd.f32 %v798, %v802
        %v923 = vadd.f32 %v922, %v806
        %v924 = vadd.f32 %v923, %v810
        %v925 = vadd.f32 %v924, %v814
        %v926 = vadd.f32 %v925, %v818
        %v927 = vadd.f32 %v926, %v822
        %v928 = vadd.f32 %v927, %v826
        %v929 = vadd.f32 %v928, %v830
        %v930 = vadd.f32 %v929, %v834
        %v931 = vadd.f32 %v930, %v838
        %v932 = vadd.f32 %v931, %v842
        %v933 = vadd.f32 %v932, %v846
        %v934 = vadd.f32 %v933, %v850
        %v935 = vadd.f32 %v934, %v854
        %v936 = vadd.f32 %v935, %v858
        %v937 = vrot.slane %v936, 4
        %v938 = vadd.f32 %v936, %v937
        %v939 = vrot.slane %v938, 2
        %v940 = vadd.f32 %v938, %v939
        %v941 = vrot.slane %v940, 1
        %v942 = vadd.f32 %v940, %v941
        %v947 = vrot.slane %v900, 7
        %v948 = vrot.slane %v921, 6
        %v949 = vrot.slane %v942, 5
        %v950 = vsel %vm781, %v879, %v947
        %v951 = vsel %vm783, %v948, %v949
        %v952 = vsel %vm785, %v950, %v951
        %v954 = vadd.f32 %v794, %v952
        %955 = vst.msk [vmem:[#allocation3] sm:$0xf] %vm792, %v954
        %p956 = scmp.eq.s32.totalorder %s15, 1
        // Predicated region
        $region37: #{discriminator_forward.2} parent=31 // pred_check
          %p957 = pneg %p956
        $region38: #{discriminator_forward.2} parent=31 // pred_check_branch
          %959 = sbr.rel (%p957) target = $region40
        $region39: #{discriminator_forward.2} parent=31 // pred_region
          %v960 = vld [vmem:[#allocation2] sm:$0xf]
          %v961 = vmul.f32 %v960, 0.00390625
          %v962 = vld [vmem:[#allocation3] sm:$0xf]
          %v963 = vmul.f32 %v961, 256.0
          %v964 = vmul.f32 %v963, %v961
          %v965 = vsub.f32 %v962, %v964
          %v966 = vmul.f32 %v965, 0.003921569
          %v967 = vmax.f32 %v966, 0.0
          %v968 = vrsqrt.pop %v967
          %v969 = vmul.f32 %v968, %v967
          %v970 = vmul.f32 %v969, %v968
          %v971 = vmul.f32 0.5, %v970
          %v972 = vsub.f32 1.5, %v971
          %v973 = vmul.f32 %v968, %v972
          %v974 = vmul.f32 %v967, %v973
          %vm975 = vcmp.eq.f32.partialorder %v967, inf
          %v976 = vsel %vm975, %v967, %v974
          %vm977 = vcmp.eq.f32.partialorder %v967, 0.0
          %v978 = vand.u32 %v967, 2147483648
          %v979 = vsel %vm977, %v978, %v976
          %v981 = vperm.slane %v979, 0
          %v982 = vperm.slane %v979, 1
          %v983 = vperm.slane %v979, 2
          %v984 = vperm.slane %v979, 3
          %v989 = vsel %vm781, %v981, 0.0
          %v990 = vsel %vm781, %v982, 0.0
          %v991 = vadd.f32 %v989, %v990
          %v992 = vsel %vm781, %v983, 0.0
          %v993 = vadd.f32 %v991, %v992
          %v994 = vsel %vm781, %v984, 0.0
          %v995 = vadd.f32 %v993, %v994
          %996 = vadd.xlane.f32.xlu0 %v995
          %v997 = vpop.xlane.xlu0 %996
          %v998 = vrcp.pop 512.0
          %v999 = vmul.f32 512.0, %v998
          %v1000 = vsub.f32 1.0, %v999
          %v1001 = vmul.f32 %v998, %v1000
          %v1002 = vadd.f32 %v998, %v1001
          %vm1003 = vweird.f32 %v998
          %v1004 = vsel %vm1003, %v998, %v1002
          %v1005 = vmul.f32 %v997, %v1004
          %vm1006 = vcmask 0
          %1007 = vst.msk [vmem:[#allocation4] sm:$0x1] %vm1006, %v1005
        $region40: #{discriminator_forward.2} parent=31 // pred_fallthru
          _
        // Predicated region
        $region41: #{discriminator_forward.2} parent=31 // pred_check
          %p1008 = pneg %p96
        $region42: #{discriminator_forward.2} parent=31 // pred_check_branch
          %1010 = sbr.rel (%p1008) target = $region44
        $region43: #{discriminator_forward.2} parent=31 // pred_region
          %1012 = vsyncadd [#allocation5], 0
          %s1014 = sshll.u32 [#allocation4], 4
          %s1015 = int_to_ptr.vmem [resolvable:$true] %s1014
          %s1016 = sshll.u32 %s3, 4
          %s1017 = int_to_ptr.hbm [resolvable:$true] %s1016
          %1019 = dma.vmem_to_hbm [thread:$0]  %s1015, 16, %s1017, [#allocation5]
        $region44: #{discriminator_forward.2} parent=31 // pred_fallthru
          _
        // Predicated region
        $region45: #{discriminator_forward.2} parent=31 // pred_check
          %p1020 = pneg %p96
        $region46: #{discriminator_forward.2} parent=31 // pred_check_branch
          %1022 = sbr.rel (%p1020) target = $region48
        $region47: #{discriminator_forward.2} parent=31 // pred_region
          %1024 = dma.done [#allocation5], 16
        $region48: #{discriminator_forward.2} parent=31 // pred_fallthru
          _
      $region32: #{discriminator_forward.2} parent=5 // pred_fallthru
        _
      %p1025 = scmp.le.s32.totalorder 2, %s10
      // Predicated region
      $region49: #{discriminator_forward.2} parent=5 // pred_check
        %p1026 = pneg %p1025
      $region50: #{discriminator_forward.2} parent=5 // pred_check_branch
        %1028 = sbr.rel (%p1026) target = $region52
      $region51: #{discriminator_forward.2} parent=5 // pred_region
        %s1029 = ssub.s32 %s10, 2
      $region52: #{discriminator_forward.2} parent=5 // pred_fallthru
        _
    $region6: #{discriminator_forward.2} parent=1 // loop_footer
      %s14 = sadd.s32 1, %s10
    $region7: #{discriminator_forward.2} parent=1 // loop_footer_branch
      %9 = sbr.rel target = $region3
    $region8: #{discriminator_forward.2} parent=1 // loop_exit
      _
    %1030 = vsyncpa [#allocation5], 1
    %s1031 = scalar_lea.sflag [#allocation5], 1
    %1032 = vsyncpa %s1031, 1

// kernel: discriminator_forward.3
$region0: #{discriminator_forward.3}
  #allocation0 [shape = 'u32[]', space=smem, size = 0x4, offset = 0x4, fixed_abs, tag = 'smem constant byte address 0x4 - core index']
  #allocation1 [shape = 'u32[72,128]{1,0:T(1,128)}', space=vmem, size = 0x9000, scoped, tag = 'internal scratch']
  #allocation2 [shape = 'f32[1,1]{1,0:T(1,128)S(6)}', space=smem, size = 0x200, scoped, tag = 'scoped memory for discriminator_forward.3']
  #allocation3 [shape = 'f32[1,1]{1,0:T(1,128)S(1)}', space=vmem, size = 0x200, scoped, tag = 'scoped memory for discriminator_forward.3']
  %s0 = inlined_call_operand.<no memory space> [shape: f32[1,1], index: 0, kind: input, shape index: {}]
  %s1 = inlined_call_operand.vmem [shape: f32[256,48], index: 1, kind: input, shape index: {}]
  %s2 = inlined_call_operand.vmem [shape: bf16[48,512], index: 2, kind: input, shape index: {}]
  %s3 = inlined_call_operand.vmem [shape: f32[1,512], index: 3, kind: input, shape index: {}]
  %s4 = inlined_call_operand.hbm [shape: bf16[512,512], index: 4, kind: input, shape index: {}]
  %s5 = inlined_call_operand.vmem [shape: f32[1,512], index: 5, kind: input, shape index: {}]
  %s6 = inlined_call_operand.vmem [shape: f32[1,512], index: 6, kind: input, shape index: {}]
  %s7 = inlined_call_operand.vmem [shape: bf16[512,32], index: 7, kind: input, shape index: {}]
  %s8 = inlined_call_operand.vmem [shape: f32[1,32], index: 8, kind: input, shape index: {}]
  %s9 = inlined_call_operand.vmem [shape: f32[32,1], index: 9, kind: input, shape index: {}]
  %s10 = inlined_call_operand.<no memory space> [shape: f32[1,1], index: 10, kind: input, shape index: {}]
  %s11 = inlined_call_operand.vmem [shape: f32[256,1], index: 11, kind: output, shape index: {}]
  %s12 = sld [smem:[#allocation0]]
  $region81: #{discriminator_forward.3} parent=0
    _
  %s14 = ssub.s32 1, %s12
  %s15 = scalar_select 0, %s14, %s12
  %16 = sst [smem:[#allocation2]] %s0
  %v17 = vstv %s10
  %18 = vst [vmem:[#allocation3] sm:$0x1] %v17
  $region1: #{discriminator_forward.3} parent=0
    #allocation4 [shape = 'u8[524288]{0}', space=vmem, size = 0x80000, scoped, tag = 'input window, operand 4, single buffered']
    #allocation5 [shape = 's32[2]{0}', space=sflag, size = 0x8, scoped, tag = 'scoped memory for discriminator_forward.3']
    %19 = vsyncpa [#allocation5], 0
    loop: start=0, step=1, limit=4
    $region2: #{discriminator_forward.3} parent=1 // loop_pre_header
      _
    $region3: #{discriminator_forward.3} parent=1 // loop_header
      %s21 = sphi 0, %s25
      %p22 = scmp.ge.s32.totalorder %s21, 4
      %s29 = sphi 0, %s29
      %s31 = sphi 0, %s29
      %s32 = sphi 0, %s31
      %s46 = sphi 0, %s32
      %s52 = sphi 0, %s54
      %s55 = sphi 0, %s52
      %s56 = sphi 0, %s55
      %s72 = sphi 0, %s56
      %s76 = sphi 0, %s76
      %s78 = sphi 0, %s76
      %s79 = sphi 0, %s78
      %s93 = sphi 0, %s79
      %s97 = sphi 0, %s97
      %s99 = sphi 0, %s97
      %s100 = sphi 0, %s99
      %s114 = sphi 0, %s100
      %s118 = sphi 0, %s118
      %s120 = sphi 0, %s118
      %s121 = sphi 0, %s120
      %s135 = sphi 0, %s121
      %s139 = sphi 0, %s139
      %s141 = sphi 0, %s139
      %s142 = sphi 0, %s141
      %s156 = sphi 0, %s142
      %s160 = sphi 0, %s160
      %s162 = sphi 0, %s160
      %s163 = sphi 0, %s162
      %s177 = sphi 0, %s163
      %s181 = sphi 0, %s181
      %s183 = sphi 0, %s181
      %s184 = sphi 0, %s183
      %s198 = sphi 0, %s184
      %s202 = sphi 0, %s202
      %s204 = sphi 0, %s202
      %s205 = sphi 0, %s204
      %s219 = sphi 0, %s205
      %s223 = sphi 0, %s223
      %s225 = sphi 0, %s223
      %s226 = sphi 0, %s225
      %s240 = sphi 0, %s226
      %s244 = sphi 0, %s244
      %s246 = sphi 0, %s244
      %s247 = sphi 0, %s246
      %s261 = sphi 0, %s247
      %s267 = sphi 0, %s269
      %s270 = sphi 0, %s267
      %s271 = sphi 0, %s270
      %s287 = sphi 0, %s271
    $region4: #{discriminator_forward.3} parent=1 // loop_header_branch
      %24 = sbr.rel (%p22) target = $region8
    $region5: #{discriminator_forward.3} parent=1 // loop_body
      %s26 = ssub.s32 %s21, 1
      %s27 = ssub.s32 %s21, 2
      %s28 = sadd.s32 %s21, 1
      %s30 = sadd.s32 %s29, 1
      %p33 = scmp.eq.s32.totalorder %s21, 1
      %p34 = scmp.ne.s32.totalorder %s29, %s31
      %p35 = scmp.eq.s32.totalorder %s21, 0
      %p36 = por %p34, %p35
      %p37 = scmp.ne.s32.totalorder %s29, %s31
      %p38 = scmp.eq.s32.totalorder %s26, 1
      %p39 = por %p37, %p38
      %p40 = scmp.ne.s32.totalorder %s31, %s32
      %p41 = scmp.eq.s32.totalorder %s26, 0
      %p42 = por %p40, %p41
      %p43 = scmp.ne.s32.totalorder %s31, %s32
      %p44 = scmp.eq.s32.totalorder %s27, 1
      %p45 = por %p43, %p44
      %p47 = scmp.ne.s32.totalorder %s32, %s46
      %p48 = scmp.eq.s32.totalorder %s27, 0
      %p49 = por %p47, %p48
      %s50 = ssub.s32 %s21, %s28
      %p51 = scmp.eq.s32.totalorder %s50, 0
      %s53 = sadd.s32 %s52, 1
      %s54 = scalar_select %p51, %s52, %s53
      %p57 = pneg %p51
      %p58 = scmp.eq.s32.totalorder %s21, 1
      %p59 = por %p57, %p58
      %p60 = scmp.ne.s32.totalorder %s52, %s55
      %p61 = scmp.eq.s32.totalorder %s21, 0
      %p62 = por %p60, %p61
      %p63 = scmp.ne.s32.totalorder %s52, %s55
      %p64 = scmp.eq.s32.totalorder %s26, 1
      %p65 = por %p63, %p64
      %p66 = scmp.ne.s32.totalorder %s55, %s56
      %p67 = scmp.eq.s32.totalorder %s26, 0
      %p68 = por %p66, %p67
      %p69 = scmp.ne.s32.totalorder %s55, %s56
      %p70 = scmp.eq.s32.totalorder %s27, 1
      %p71 = por %p69, %p70
      %p73 = scmp.ne.s32.totalorder %s56, %s72
      %p74 = scmp.eq.s32.totalorder %s27, 0
      %p75 = por %p73, %p74
      %s77 = sadd.s32 %s76, 1
      %p80 = scmp.eq.s32.totalorder %s21, 1
      %p81 = scmp.ne.s32.totalorder %s76, %s78
      %p82 = scmp.eq.s32.totalorder %s21, 0
      %p83 = por %p81, %p82
      %p84 = scmp.ne.s32.totalorder %s76, %s78
      %p85 = scmp.eq.s32.totalorder %s26, 1
      %p86 = por %p84, %p85
      %p87 = scmp.ne.s32.totalorder %s78, %s79
      %p88 = scmp.eq.s32.totalorder %s26, 0
      %p89 = por %p87, %p88
      %p90 = scmp.ne.s32.totalorder %s78, %s79
      %p91 = scmp.eq.s32.totalorder %s27, 1
      %p92 = por %p90, %p91
      %p94 = scmp.ne.s32.totalorder %s79, %s93
      %p95 = scmp.eq.s32.totalorder %s27, 0
      %p96 = por %p94, %p95
      %s98 = sadd.s32 %s97, 1
      %p101 = scmp.eq.s32.totalorder %s21, 1
      %p102 = scmp.ne.s32.totalorder %s97, %s99
      %p103 = scmp.eq.s32.totalorder %s21, 0
      %p104 = por %p102, %p103
      %p105 = scmp.ne.s32.totalorder %s97, %s99
      %p106 = scmp.eq.s32.totalorder %s26, 1
      %p107 = por %p105, %p106
      %p108 = scmp.ne.s32.totalorder %s99, %s100
      %p109 = scmp.eq.s32.totalorder %s26, 0
      %p110 = por %p108, %p109
      %p111 = scmp.ne.s32.totalorder %s99, %s100
      %p112 = scmp.eq.s32.totalorder %s27, 1
      %p113 = por %p111, %p112
      %p115 = scmp.ne.s32.totalorder %s100, %s114
      %p116 = scmp.eq.s32.totalorder %s27, 0
      %p117 = por %p115, %p116
      %s119 = sadd.s32 %s118, 1
      %p122 = scmp.eq.s32.totalorder %s21, 1
      %p123 = scmp.ne.s32.totalorder %s118, %s120
      %p124 = scmp.eq.s32.totalorder %s21, 0
      %p125 = por %p123, %p124
      %p126 = scmp.ne.s32.totalorder %s118, %s120
      %p127 = scmp.eq.s32.totalorder %s26, 1
      %p128 = por %p126, %p127
      %p129 = scmp.ne.s32.totalorder %s120, %s121
      %p130 = scmp.eq.s32.totalorder %s26, 0
      %p131 = por %p129, %p130
      %p132 = scmp.ne.s32.totalorder %s120, %s121
      %p133 = scmp.eq.s32.totalorder %s27, 1
      %p134 = por %p132, %p133
      %p136 = scmp.ne.s32.totalorder %s121, %s135
      %p137 = scmp.eq.s32.totalorder %s27, 0
      %p138 = por %p136, %p137
      %s140 = sadd.s32 %s139, 1
      %p143 = scmp.eq.s32.totalorder %s21, 1
      %p144 = scmp.ne.s32.totalorder %s139, %s141
      %p145 = scmp.eq.s32.totalorder %s21, 0
      %p146 = por %p144, %p145
      %p147 = scmp.ne.s32.totalorder %s139, %s141
      %p148 = scmp.eq.s32.totalorder %s26, 1
      %p149 = por %p147, %p148
      %p150 = scmp.ne.s32.totalorder %s141, %s142
      %p151 = scmp.eq.s32.totalorder %s26, 0
      %p152 = por %p150, %p151
      %p153 = scmp.ne.s32.totalorder %s141, %s142
      %p154 = scmp.eq.s32.totalorder %s27, 1
      %p155 = por %p153, %p154
      %p157 = scmp.ne.s32.totalorder %s142, %s156
      %p158 = scmp.eq.s32.totalorder %s27, 0
      %p159 = por %p157, %p158
      %s161 = sadd.s32 %s160, 1
      %p164 = scmp.eq.s32.totalorder %s21, 1
      %p165 = scmp.ne.s32.totalorder %s160, %s162
      %p166 = scmp.eq.s32.totalorder %s21, 0
      %p167 = por %p165, %p166
      %p168 = scmp.ne.s32.totalorder %s160, %s162
      %p169 = scmp.eq.s32.totalorder %s26, 1
      %p170 = por %p168, %p169
      %p171 = scmp.ne.s32.totalorder %s162, %s163
      %p172 = scmp.eq.s32.totalorder %s26, 0
      %p173 = por %p171, %p172
      %p174 = scmp.ne.s32.totalorder %s162, %s163
      %p175 = scmp.eq.s32.totalorder %s27, 1
      %p176 = por %p174, %p175
      %p178 = scmp.ne.s32.totalorder %s163, %s177
      %p179 = scmp.eq.s32.totalorder %s27, 0
      %p180 = por %p178, %p179
      %s182 = sadd.s32 %s181, 1
      %p185 = scmp.eq.s32.totalorder %s21, 1
      %p186 = scmp.ne.s32.totalorder %s181, %s183
      %p187 = scmp.eq.s32.totalorder %s21, 0
      %p188 = por %p186, %p187
      %p189 = scmp.ne.s32.totalorder %s181, %s183
      %p190 = scmp.eq.s32.totalorder %s26, 1
      %p191 = por %p189, %p190
      %p192 = scmp.ne.s32.totalorder %s183, %s184
      %p193 = scmp.eq.s32.totalorder %s26, 0
      %p194 = por %p192, %p193
      %p195 = scmp.ne.s32.totalorder %s183, %s184
      %p196 = scmp.eq.s32.totalorder %s27, 1
      %p197 = por %p195, %p196
      %p199 = scmp.ne.s32.totalorder %s184, %s198
      %p200 = scmp.eq.s32.totalorder %s27, 0
      %p201 = por %p199, %p200
      %s203 = sadd.s32 %s202, 1
      %p206 = scmp.eq.s32.totalorder %s21, 1
      %p207 = scmp.ne.s32.totalorder %s202, %s204
      %p208 = scmp.eq.s32.totalorder %s21, 0
      %p209 = por %p207, %p208
      %p210 = scmp.ne.s32.totalorder %s202, %s204
      %p211 = scmp.eq.s32.totalorder %s26, 1
      %p212 = por %p210, %p211
      %p213 = scmp.ne.s32.totalorder %s204, %s205
      %p214 = scmp.eq.s32.totalorder %s26, 0
      %p215 = por %p213, %p214
      %p216 = scmp.ne.s32.totalorder %s204, %s205
      %p217 = scmp.eq.s32.totalorder %s27, 1
      %p218 = por %p216, %p217
      %p220 = scmp.ne.s32.totalorder %s205, %s219
      %p221 = scmp.eq.s32.totalorder %s27, 0
      %p222 = por %p220, %p221
      %s224 = sadd.s32 %s223, 1
      %p227 = scmp.eq.s32.totalorder %s21, 1
      %p228 = scmp.ne.s32.totalorder %s223, %s225
      %p229 = scmp.eq.s32.totalorder %s21, 0
      %p230 = por %p228, %p229
      %p231 = scmp.ne.s32.totalorder %s223, %s225
      %p232 = scmp.eq.s32.totalorder %s26, 1
      %p233 = por %p231, %p232
      %p234 = scmp.ne.s32.totalorder %s225, %s226
      %p235 = scmp.eq.s32.totalorder %s26, 0
      %p236 = por %p234, %p235
      %p237 = scmp.ne.s32.totalorder %s225, %s226
      %p238 = scmp.eq.s32.totalorder %s27, 1
      %p239 = por %p237, %p238
      %p241 = scmp.ne.s32.totalorder %s226, %s240
      %p242 = scmp.eq.s32.totalorder %s27, 0
      %p243 = por %p241, %p242
      %s245 = sadd.s32 %s244, 1
      %p248 = scmp.eq.s32.totalorder %s21, 1
      %p249 = scmp.ne.s32.totalorder %s244, %s246
      %p250 = scmp.eq.s32.totalorder %s21, 0
      %p251 = por %p249, %p250
      %p252 = scmp.ne.s32.totalorder %s244, %s246
      %p253 = scmp.eq.s32.totalorder %s26, 1
      %p254 = por %p252, %p253
      %p255 = scmp.ne.s32.totalorder %s246, %s247
      %p256 = scmp.eq.s32.totalorder %s26, 0
      %p257 = por %p255, %p256
      %p258 = scmp.ne.s32.totalorder %s246, %s247
      %p259 = scmp.eq.s32.totalorder %s27, 1
      %p260 = por %p258, %p259
      %p262 = scmp.ne.s32.totalorder %s247, %s261
      %p263 = scmp.eq.s32.totalorder %s27, 0
      %p264 = por %p262, %p263
      %s265 = ssub.s32 %s21, %s28
      %p266 = scmp.eq.s32.totalorder %s265, 0
      %s268 = sadd.s32 %s267, 1
      %s269 = scalar_select %p266, %s267, %s268
      %p272 = pneg %p266
      %p273 = scmp.eq.s32.totalorder %s21, 1
      %p274 = por %p272, %p273
      %p275 = scmp.ne.s32.totalorder %s267, %s270
      %p276 = scmp.eq.s32.totalorder %s21, 0
      %p277 = por %p275, %p276
      %p278 = scmp.ne.s32.totalorder %s267, %s270
      %p279 = scmp.eq.s32.totalorder %s26, 1
      %p280 = por %p278, %p279
      %p281 = scmp.ne.s32.totalorder %s270, %s271
      %p282 = scmp.eq.s32.totalorder %s26, 0
      %p283 = por %p281, %p282
      %p284 = scmp.ne.s32.totalorder %s270, %s271
      %p285 = scmp.eq.s32.totalorder %s27, 1
      %p286 = por %p284, %p285
      %p288 = scmp.ne.s32.totalorder %s271, %s287
      %p289 = scmp.eq.s32.totalorder %s27, 0
      %p290 = por %p288, %p289
      %p291 = scmp.le.s32.totalorder 1, %s21
      %p292 = scmp.lt.s32.totalorder %s21, 3
      %p293 = pnand %p291, %p292
      %p294 = pneg %p293
      // Predicated region
      $region9: #{discriminator_forward.3} parent=5 // pred_check
        _
      $region10: #{discriminator_forward.3} parent=5 // pred_check_branch
        %296 = sbr.rel (%p293) target = $region12
      $region11: #{discriminator_forward.3} parent=5 // pred_region
        %s297 = ssub.s32 %s21, 1
        // Predicated region
        $region13: #{discriminator_forward.3} parent=11 // pred_check
          %p298 = pneg %p42
        $region14: #{discriminator_forward.3} parent=11 // pred_check_branch
          %300 = sbr.rel (%p298) target = $region16
        $region15: #{discriminator_forward.3} parent=11 // pred_region
          _
        $region16: #{discriminator_forward.3} parent=11 // pred_fallthru
          _
        // Predicated region
        $region17: #{discriminator_forward.3} parent=11 // pred_check
          %p301 = pneg %p89
        $region18: #{discriminator_forward.3} parent=11 // pred_check_branch
          %303 = sbr.rel (%p301) target = $region20
        $region19: #{discriminator_forward.3} parent=11 // pred_region
          _
        $region20: #{discriminator_forward.3} parent=11 // pred_fallthru
          _
        // Predicated region
        $region21: #{discriminator_forward.3} parent=11 // pred_check
          %p304 = pneg %p110
        $region22: #{discriminator_forward.3} parent=11 // pred_check_branch
          %306 = sbr.rel (%p304) target = $region24
        $region23: #{discriminator_forward.3} parent=11 // pred_region
          _
        $region24: #{discriminator_forward.3} parent=11 // pred_fallthru
          _
        // Predicated region
        $region25: #{discriminator_forward.3} parent=11 // pred_check
          %p307 = pneg %p131
        $region26: #{discriminator_forward.3} parent=11 // pred_check_branch
          %309 = sbr.rel (%p307) target = $region28
        $region27: #{discriminator_forward.3} parent=11 // pred_region
          %311 = vsyncadd [#allocation5], 0
          %s312 = sshll.u32 %s4, 4
          %s313 = int_to_ptr.hbm [resolvable:$true] %s312
          %s314 = sshll.u32 [#allocation4], 4
          %s315 = int_to_ptr.vmem [resolvable:$true] %s314
          %320 = dma.hbm_to_vmem [thread:$0]  %s313, 16384, %s315, [#allocation5], 256, 256, 16
        $region28: #{discriminator_forward.3} parent=11 // pred_fallthru
          _
        // Predicated region
        $region29: #{discriminator_forward.3} parent=11 // pred_check
          %p321 = pneg %p152
        $region30: #{discriminator_forward.3} parent=11 // pred_check_branch
          %323 = sbr.rel (%p321) target = $region32
        $region31: #{discriminator_forward.3} parent=11 // pred_region
          _
        $region32: #{discriminator_forward.3} parent=11 // pred_fallthru
          _
        // Predicated region
        $region33: #{discriminator_forward.3} parent=11 // pred_check
          %p324 = pneg %p173
        $region34: #{discriminator_forward.3} parent=11 // pred_check_branch
          %326 = sbr.rel (%p324) target = $region36
        $region35: #{discriminator_forward.3} parent=11 // pred_region
          _
        $region36: #{discriminator_forward.3} parent=11 // pred_fallthru
          _
        // Predicated region
        $region37: #{discriminator_forward.3} parent=11 // pred_check
          %p327 = pneg %p194
        $region38: #{discriminator_forward.3} parent=11 // pred_check_branch
          %329 = sbr.rel (%p327) target = $region40
        $region39: #{discriminator_forward.3} parent=11 // pred_region
          _
        $region40: #{discriminator_forward.3} parent=11 // pred_fallthru
          _
        // Predicated region
        $region41: #{discriminator_forward.3} parent=11 // pred_check
          %p330 = pneg %p215
        $region42: #{discriminator_forward.3} parent=11 // pred_check_branch
          %332 = sbr.rel (%p330) target = $region44
        $region43: #{discriminator_forward.3} parent=11 // pred_region
          _
        $region44: #{discriminator_forward.3} parent=11 // pred_fallthru
          _
        // Predicated region
        $region45: #{discriminator_forward.3} parent=11 // pred_check
          %p333 = pneg %p236
        $region46: #{discriminator_forward.3} parent=11 // pred_check_branch
          %335 = sbr.rel (%p333) target = $region48
        $region47: #{discriminator_forward.3} parent=11 // pred_region
          _
        $region48: #{discriminator_forward.3} parent=11 // pred_fallthru
          _
        // Predicated region
        $region49: #{discriminator_forward.3} parent=11 // pred_check
          %p336 = pneg %p257
        $region50: #{discriminator_forward.3} parent=11 // pred_check_branch
          %338 = sbr.rel (%p336) target = $region52
        $region51: #{discriminator_forward.3} parent=11 // pred_region
          _
        $region52: #{discriminator_forward.3} parent=11 // pred_fallthru
          _
      $region12: #{discriminator_forward.3} parent=5 // pred_fallthru
        _
      %p339 = scmp.lt.s32.totalorder %s21, 2
      // Predicated region
      $region53: #{discriminator_forward.3} parent=5 // pred_check
        %p340 = pneg %p339
      $region54: #{discriminator_forward.3} parent=5 // pred_check_branch
        %342 = sbr.rel (%p340) target = $region56
      $region55: #{discriminator_forward.3} parent=5 // pred_region
        // Predicated region
        $region57: #{discriminator_forward.3} parent=55 // pred_check
          %p343 = pneg %p62
        $region58: #{discriminator_forward.3} parent=55 // pred_check_branch
          %345 = sbr.rel (%p343) target = $region60
        $region59: #{discriminator_forward.3} parent=55 // pred_region
          %s346 = smul.u32 16, %s21
          %p347 = scmp.lt.s32.totalorder %s346, 31
          %s348 = scalar_select %p347, %s346, 31
          %s349 = smul.addr %s348, 8
          %s350 = scalar_lea.vmem %s1, %s349
          %s351 = smul.u32 16, %s21
        $region60: #{discriminator_forward.3} parent=55 // pred_fallthru
          _
      $region56: #{discriminator_forward.3} parent=5 // pred_fallthru
        _
      %p352 = scmp.le.s32.totalorder 1, %s21
      %p353 = scmp.lt.s32.totalorder %s21, 3
      %p354 = pnand %p352, %p353
      %p355 = pneg %p354
      // Predicated region
      $region61: #{discriminator_forward.3} parent=5 // pred_check
        _
      $region62: #{discriminator_forward.3} parent=5 // pred_check_branch
        %357 = sbr.rel (%p354) target = $region64
      $region63: #{discriminator_forward.3} parent=5 // pred_region
        %s358 = ssub.s32 %s21, 1
        // Predicated region
        $region65: #{discriminator_forward.3} parent=63 // pred_check
          %p359 = pneg %p131
        $region66: #{discriminator_forward.3} parent=63 // pred_check_branch
          %361 = sbr.rel (%p359) target = $region68
        $region67: #{discriminator_forward.3} parent=63 // pred_region
          %363 = dma.done [#allocation5], 16384
        $region68: #{discriminator_forward.3} parent=63 // pred_fallthru
          _
        %p364 = pneg %p42
        %p365 = pneg %p39
        %s366 = smul.u32 16, %s26
        %p367 = scmp.lt.s32.totalorder %s366, 31
        %s368 = scalar_select %p367, %s366, 31
        %s369 = smul.addr %s368, 8
        %s370 = scalar_lea.vmem %s1, %s369
        %p371 = pneg %p68
        %p372 = pneg %p65
        %p373 = pneg %p89
        %p374 = pneg %p86
        %p375 = pneg %p110
        %p376 = pneg %p107
        %p377 = pneg %p131
        %p378 = pneg %p128
        %p379 = pneg %p152
        %p380 = pneg %p149
        %p381 = pneg %p173
        %p382 = pneg %p170
        %p383 = pneg %p194
        %p384 = pneg %p191
        %p385 = pneg %p215
        %p386 = pneg %p212
        %p387 = pneg %p236
        %p388 = pneg %p233
        %p389 = pneg %p257
        %p390 = pneg %p254
        %p391 = pneg %p283
        %p392 = pneg %p280
        %s393 = smul.u32 16, %s26
        %p394 = scmp.lt.s32.totalorder %s393, 31
        %s395 = scalar_select %p394, %s393, 31
        %s396 = smul.addr %s395, 8
        %s397 = scalar_lea.vmem %s11, %s396
        %s398 = smul.u32 16, %s26
        %p399 = scmp.lt.s32.totalorder %s398, 31
        %s400 = scalar_select %p399, %s398, 31
        %s401 = smul.addr %s400, 8
        %s402 = scalar_lea.vmem %s1, %s401
        %s403 = smul.u32 16, %s26
        %s404 = smul.u32 16, %s26
        %p405 = scmp.lt.s32.totalorder %s404, 31
        %s406 = scalar_select %p405, %s404, 31
        %s407 = smul.addr %s406, 8
        %s408 = scalar_lea.vmem %s11, %s407
        %s409 = smul.u32 16, %s26
        %s411 = sld [smem:[#allocation2]]
        %v412 = vld [vmem:[%s402] sm:$0xff]
        %v413 = vld [vmem:[%s402 + $0x8] sm:$0xff]
        %v414 = vld [vmem:[%s402 + $0x10] sm:$0xff]
        %v415 = vld [vmem:[%s402 + $0x18] sm:$0xff]
        %v416 = vld [vmem:[%s402 + $0x20] sm:$0xff]
        %v417 = vld [vmem:[%s402 + $0x28] sm:$0xff]
        %v418 = vld [vmem:[%s402 + $0x30] sm:$0xff]
        %v419 = vld [vmem:[%s402 + $0x38] sm:$0xff]
        %v420 = vld [vmem:[%s402 + $0x40] sm:$0xff]
        %v421 = vld [vmem:[%s402 + $0x48] sm:$0xff]
        %v422 = vld [vmem:[%s402 + $0x50] sm:$0xff]
        %v423 = vld [vmem:[%s402 + $0x58] sm:$0xff]
        %v424 = vld [vmem:[%s402 + $0x60] sm:$0xff]
        %v425 = vld [vmem:[%s402 + $0x68] sm:$0xff]
        %v426 = vld [vmem:[%s402 + $0x70] sm:$0xff]
        %v427 = vld [vmem:[%s402 + $0x78] sm:$0xff]
        %v428 = vpack.c.bf16 %v413, %v412
        %v429 = vpack.c.bf16 %v415, %v414
        %v430 = vpack.c.bf16 %v417, %v416
        %v431 = vpack.c.bf16 %v419, %v418
        %v432 = vpack.c.bf16 %v421, %v420
        %v433 = vpack.c.bf16 %v423, %v422
        %v434 = vpack.c.bf16 %v425, %v424
        %v435 = vpack.c.bf16 %v427, %v426
        %v436 = vld [vmem:[%s2] sm:$0xff]
        %v437 = vld [vmem:[%s2 + $0x8] sm:$0xff]
        %v438 = vld [vmem:[%s2 + $0x10] sm:$0xff]
        %v439 = vld [vmem:[%s2 + $0x18] sm:$0xff]
        %v440 = vld [vmem:[%s2 + $0x20] sm:$0xff]
        %v441 = vld [vmem:[%s2 + $0x28] sm:$0xff]
        %v442 = vld [vmem:[%s2 + $0x30] sm:$0xff]
        %v443 = vld [vmem:[%s2 + $0x38] sm:$0xff]
        %v444 = vld [vmem:[%s2 + $0x40] sm:$0xff]
        %v445 = vld [vmem:[%s2 + $0x48] sm:$0xff]
        %v446 = vld [vmem:[%s2 + $0x50] sm:$0xff]
        %v447 = vld [vmem:[%s2 + $0x58] sm:$0xff]
        %v448 = vld [vmem:[%s3] sm:$0xf]
        %v450 = vperm.slane %v448, 0
        %v451 = vperm.slane %v448, 1
        %v452 = vperm.slane %v448, 2
        %v453 = vperm.slane %v448, 3
        %v470 = vunpack.c.l.b16 %v436
        %v471 = vunpack.c.h.b16 %v436
        %v472 = vunpack.c.l.b16 %v437
        %v473 = vunpack.c.h.b16 %v437
        %v474 = vunpack.c.l.b16 %v438
        %v475 = vunpack.c.h.b16 %v438
        %v476 = vunpack.c.l.b16 %v439
        %v477 = vunpack.c.h.b16 %v439
        %v478 = vunpack.c.l.b16 %v440
        %v479 = vunpack.c.h.b16 %v440
        %v480 = vunpack.c.l.b16 %v441
        %v481 = vunpack.c.h.b16 %v441
        %v482 = vunpack.c.l.b16 %v442
        %v483 = vunpack.c.h.b16 %v442
        %v484 = vunpack.c.l.b16 %v443
        %v485 = vunpack.c.h.b16 %v443
        %v486 = vunpack.c.l.b16 %v444
        %v487 = vunpack.c.h.b16 %v444
        %v488 = vunpack.c.l.b16 %v445
        %v489 = vunpack.c.h.b16 %v445
        %v490 = vunpack.c.l.b16 %v446
        %v491 = vunpack.c.h.b16 %v446
        %v492 = vunpack.c.l.b16 %v447
        %v493 = vunpack.c.h.b16 %v447
        %v494 = vpack.c.b16 %v474, %v470
        %v495 = vpack.c.b16 %v475, %v471
        %v496 = vpack.c.b16 %v476, %v472
        %v497 = vpack.c.b16 %v477, %v473
        %v498 = vpack.c.b16 %v482, %v478
        %v499 = vpack.c.b16 %v483, %v479
        %v500 = vpack.c.b16 %v484, %v480
        %v501 = vpack.c.b16 %v485, %v481
        %v502 = vpack.c.b16 %v490, %v486
        %v503 = vpack.c.b16 %v491, %v487
        %v504 = vpack.c.b16 %v492, %v488
        %v505 = vpack.c.b16 %v493, %v489
        %vm518 = vcmask 392192
        %v520 = vsel %vm518, %v428, 0
        %v523 = vsel %vm518, %v429, 0
        %v526 = vsel %vm518, %v430, 0
        %v529 = vsel %vm518, %v431, 0
        %v532 = vsel %vm518, %v432, 0
        %v535 = vsel %vm518, %v433, 0
        %v538 = vsel %vm518, %v434, 0
        %v541 = vsel %vm518, %v435, 0
        %543 = vmatpush.bf16.msra.mxu0 0
        %544 = vmatpush.bf16.msra.mxu0 0
        %545 = vmatpush.bf16.msra.mxu0 0
        %546 = vmatpush.bf16.msra.mxu0 0
        %547 = vmatpush.bf16.msra.mxu0 0
        %548 = vmatpush.bf16.msra.mxu0 %v502
        %549 = vmatpush.bf16.msra.mxu0 %v498
        %550 = vmatpush.bf16.msra.mxu0 %v494
        %551 = vmatmul.bf16.gmra.mxu0 %v520
        %v552 = vpop.f32.mrf.mxu0
        %v553 = vadd.f32 %v450, %v552
        %v554 = vpop.f32.mrf.mxu0
        %v555 = vadd.f32 %v450, %v554
        %556 = vmatmul.bf16.gmra.mxu0 %v523
        %v557 = vpop.f32.mrf.mxu0
        %v558 = vadd.f32 %v450, %v557
        %v559 = vpop.f32.mrf.mxu0
        %v560 = vadd.f32 %v450, %v559
        %561 = vmatmul.bf16.gmra.mxu0 %v526
        %v562 = vpop.f32.mrf.mxu0
        %v563 = vadd.f32 %v450, %v562
        %v564 = vpop.f32.mrf.mxu0
        %v565 = vadd.f32 %v450, %v564
        %566 = vmatmul.bf16.gmra.mxu0 %v529
        %v567 = vpop.f32.mrf.mxu0
        %v568 = vadd.f32 %v450, %v567
        %v569 = vpop.f32.mrf.mxu0
        %v570 = vadd.f32 %v450, %v569
        %571 = vmatmul.bf16.gmra.mxu0 %v532
        %v572 = vpop.f32.mrf.mxu0
        %v573 = vadd.f32 %v450, %v572
        %v574 = vpop.f32.mrf.mxu0
        %v575 = vadd.f32 %v450, %v574
        %576 = vmatmul.bf16.gmra.mxu0 %v535
        %v577 = vpop.f32.mrf.mxu0
        %v578 = vadd.f32 %v450, %v577
        %v579 = vpop.f32.mrf.mxu0
        %v580 = vadd.f32 %v450, %v579
        %581 = vmatmul.bf16.gmra.mxu0 %v538
        %v582 = vpop.f32.mrf.mxu0
        %v583 = vadd.f32 %v450, %v582
        %v584 = vpop.f32.mrf.mxu0
        %v585 = vadd.f32 %v450, %v584
        %586 = vmatmul.bf16.gmra.mxu0 %v541
        %v587 = vpop.f32.mrf.mxu0
        %v588 = vadd.f32 %v450, %v587
        %v589 = vpop.f32.mrf.mxu0
        %v590 = vadd.f32 %v450, %v589
        %591 = vdwg.mxu0
        %592 = vmatpush.bf16.msra.mxu0 0
        %593 = vmatpush.bf16.msra.mxu0 0
        %594 = vmatpush.bf16.msra.mxu0 0
        %595 = vmatpush.bf16.msra.mxu0 0
        %596 = vmatpush.bf16.msra.mxu0 0
        %597 = vmatpush.bf16.msra.mxu0 %v503
        %598 = vmatpush.bf16.msra.mxu0 %v499
        %599 = vmatpush.bf16.msra.mxu0 %v495
        %600 = vmatmul.bf16.gmra.mxu0 %v520
        %v601 = vpop.f32.mrf.mxu0
        %v602 = vadd.f32 %v451, %v601
        %v603 = vpop.f32.mrf.mxu0
        %v604 = vadd.f32 %v451, %v603
        %605 = vmatmul.bf16.gmra.mxu0 %v523
        %v606 = vpop.f32.mrf.mxu0
        %v607 = vadd.f32 %v451, %v606
        %v608 = vpop.f32.mrf.mxu0
        %v609 = vadd.f32 %v451, %v608
        %610 = vmatmul.bf16.gmra.mxu0 %v526
        %v611 = vpop.f32.mrf.mxu0
        %v612 = vadd.f32 %v451, %v611
        %v613 = vpop.f32.mrf.mxu0
        %v614 = vadd.f32 %v451, %v613
        %615 = vmatmul.bf16.gmra.mxu0 %v529
        %v616 = vpop.f32.mrf.mxu0
        %v617 = vadd.f32 %v451, %v616
        %v618 = vpop.f32.mrf.mxu0
        %v619 = vadd.f32 %v451, %v618
        %620 = vmatmul.bf16.gmra.mxu0 %v532
        %v621 = vpop.f32.mrf.mxu0
        %v622 = vadd.f32 %v451, %v621
        %v623 = vpop.f32.mrf.mxu0
        %v624 = vadd.f32 %v451, %v623
        %625 = vmatmul.bf16.gmra.mxu0 %v535
        %v626 = vpop.f32.mrf.mxu0
        %v627 = vadd.f32 %v451, %v626
        %v628 = vpop.f32.mrf.mxu0
        %v629 = vadd.f32 %v451, %v628
        %630 = vmatmul.bf16.gmra.mxu0 %v538
        %v631 = vpop.f32.mrf.mxu0
        %v632 = vadd.f32 %v451, %v631
        %v633 = vpop.f32.mrf.mxu0
        %v634 = vadd.f32 %v451, %v633
        %635 = vmatmul.bf16.gmra.mxu0 %v541
        %v636 = vpop.f32.mrf.mxu0
        %v637 = vadd.f32 %v451, %v636
        %v638 = vpop.f32.mrf.mxu0
        %v639 = vadd.f32 %v451, %v638
        %640 = vdwg.mxu0
        %641 = vmatpush.bf16.msra.mxu0 0
        %642 = vmatpush.bf16.msra.mxu0 0
        %643 = vmatpush.bf16.msra.mxu0 0
        %644 = vmatpush.bf16.msra.mxu0 0
        %645 = vmatpush.bf16.msra.mxu0 0
        %646 = vmatpush.bf16.msra.mxu0 %v504
        %647 = vmatpush.bf16.msra.mxu0 %v500
        %648 = vmatpush.bf16.msra.mxu0 %v496
        %649 = vmatmul.bf16.gmra.mxu0 %v520
        %v650 = vpop.f32.mrf.mxu0
        %v651 = vadd.f32 %v452, %v650
        %v652 = vpop.f32.mrf.mxu0
        %v653 = vadd.f32 %v452, %v652
        %654 = vmatmul.bf16.gmra.mxu0 %v523
        %v655 = vpop.f32.mrf.mxu0
        %v656 = vadd.f32 %v452, %v655
        %v657 = vpop.f32.mrf.mxu0
        %v658 = vadd.f32 %v452, %v657
        %659 = vmatmul.bf16.gmra.mxu0 %v526
        %v660 = vpop.f32.mrf.mxu0
        %v661 = vadd.f32 %v452, %v660
        %v662 = vpop.f32.mrf.mxu0
        %v663 = vadd.f32 %v452, %v662
        %664 = vmatmul.bf16.gmra.mxu0 %v529
        %v665 = vpop.f32.mrf.mxu0
        %v666 = vadd.f32 %v452, %v665
        %v667 = vpop.f32.mrf.mxu0
        %v668 = vadd.f32 %v452, %v667
        %669 = vmatmul.bf16.gmra.mxu0 %v532
        %v670 = vpop.f32.mrf.mxu0
        %v671 = vadd.f32 %v452, %v670
        %v672 = vpop.f32.mrf.mxu0
        %v673 = vadd.f32 %v452, %v672
        %674 = vmatmul.bf16.gmra.mxu0 %v535
        %v675 = vpop.f32.mrf.mxu0
        %v676 = vadd.f32 %v452, %v675
        %v677 = vpop.f32.mrf.mxu0
        %v678 = vadd.f32 %v452, %v677
        %679 = vmatmul.bf16.gmra.mxu0 %v538
        %v680 = vpop.f32.mrf.mxu0
        %v681 = vadd.f32 %v452, %v680
        %v682 = vpop.f32.mrf.mxu0
        %v683 = vadd.f32 %v452, %v682
        %684 = vmatmul.bf16.gmra.mxu0 %v541
        %v685 = vpop.f32.mrf.mxu0
        %v686 = vadd.f32 %v452, %v685
        %v687 = vpop.f32.mrf.mxu0
        %v688 = vadd.f32 %v452, %v687
        %689 = vdwg.mxu0
        %690 = vmatpush.bf16.msra.mxu0 0
        %691 = vmatpush.bf16.msra.mxu0 0
        %692 = vmatpush.bf16.msra.mxu0 0
        %693 = vmatpush.bf16.msra.mxu0 0
        %694 = vmatpush.bf16.msra.mxu0 0
        %695 = vmatpush.bf16.msra.mxu0 %v505
        %696 = vmatpush.bf16.msra.mxu0 %v501
        %697 = vmatpush.bf16.msra.mxu0 %v497
        %698 = vmatmul.bf16.gmra.mxu0 %v520
        %v699 = vpop.f32.mrf.mxu0
        %v700 = vadd.f32 %v453, %v699
        %v701 = vpop.f32.mrf.mxu0
        %v702 = vadd.f32 %v453, %v701
        %703 = vmatmul.bf16.gmra.mxu0 %v523
        %v704 = vpop.f32.mrf.mxu0
        %v705 = vadd.f32 %v453, %v704
        %v706 = vpop.f32.mrf.mxu0
        %v707 = vadd.f32 %v453, %v706
        %708 = vmatmul.bf16.gmra.mxu0 %v526
        %v709 = vpop.f32.mrf.mxu0
        %v710 = vadd.f32 %v453, %v709
        %v711 = vpop.f32.mrf.mxu0
        %v712 = vadd.f32 %v453, %v711
        %713 = vmatmul.bf16.gmra.mxu0 %v529
        %v714 = vpop.f32.mrf.mxu0
        %v715 = vadd.f32 %v453, %v714
        %v716 = vpop.f32.mrf.mxu0
        %v717 = vadd.f32 %v453, %v716
        %718 = vmatmul.bf16.gmra.mxu0 %v532
        %v719 = vpop.f32.mrf.mxu0
        %v720 = vadd.f32 %v453, %v719
        %v721 = vpop.f32.mrf.mxu0
        %v722 = vadd.f32 %v453, %v721
        %723 = vmatmul.bf16.gmra.mxu0 %v535
        %v724 = vpop.f32.mrf.mxu0
        %v725 = vadd.f32 %v453, %v724
        %v726 = vpop.f32.mrf.mxu0
        %v727 = vadd.f32 %v453, %v726
        %728 = vmatmul.bf16.gmra.mxu0 %v538
        %v729 = vpop.f32.mrf.mxu0
        %v730 = vadd.f32 %v453, %v729
        %v731 = vpop.f32.mrf.mxu0
        %v732 = vadd.f32 %v453, %v731
        %733 = vmatmul.bf16.gmra.mxu0 %v541
        %v734 = vpop.f32.mrf.mxu0
        %v735 = vadd.f32 %v453, %v734
        %v736 = vpop.f32.mrf.mxu0
        %v737 = vadd.f32 %v453, %v736
        %738 = vdwg.mxu0
        %vm739 = vcmp.ge.f32.partialorder %v553, 0.0
        %vm740 = vcmp.ge.f32.partialorder %v602, 0.0
        %vm741 = vcmp.ge.f32.partialorder %v651, 0.0
        %vm742 = vcmp.ge.f32.partialorder %v700, 0.0
        %vm743 = vcmp.ge.f32.partialorder %v555, 0.0
        %vm744 = vcmp.ge.f32.partialorder %v604, 0.0
        %vm745 = vcmp.ge.f32.partialorder %v653, 0.0
        %vm746 = vcmp.ge.f32.partialorder %v702, 0.0
        %vm747 = vcmp.ge.f32.partialorder %v558, 0.0
        %vm748 = vcmp.ge.f32.partialorder %v607, 0.0
        %vm749 = vcmp.ge.f32.partialorder %v656, 0.0
        %vm750 = vcmp.ge.f32.partialorder %v705, 0.0
        %vm751 = vcmp.ge.f32.partialorder %v560, 0.0
        %vm752 = vcmp.ge.f32.partialorder %v609, 0.0
        %vm753 = vcmp.ge.f32.partialorder %v658, 0.0
        %vm754 = vcmp.ge.f32.partialorder %v707, 0.0
        %vm755 = vcmp.ge.f32.partialorder %v563, 0.0
        %vm756 = vcmp.ge.f32.partialorder %v612, 0.0
        %vm757 = vcmp.ge.f32.partialorder %v661, 0.0
        %vm758 = vcmp.ge.f32.partialorder %v710, 0.0
        %vm759 = vcmp.ge.f32.partialorder %v565, 0.0
        %vm760 = vcmp.ge.f32.partialorder %v614, 0.0
        %vm761 = vcmp.ge.f32.partialorder %v663, 0.0
        %vm762 = vcmp.ge.f32.partialorder %v712, 0.0
        %vm763 = vcmp.ge.f32.partialorder %v568, 0.0
        %vm764 = vcmp.ge.f32.partialorder %v617, 0.0
        %vm765 = vcmp.ge.f32.partialorder %v666, 0.0
        %vm766 = vcmp.ge.f32.partialorder %v715, 0.0
        %vm767 = vcmp.ge.f32.partialorder %v570, 0.0
        %vm768 = vcmp.ge.f32.partialorder %v619, 0.0
        %vm769 = vcmp.ge.f32.partialorder %v668, 0.0
        %vm770 = vcmp.ge.f32.partialorder %v717, 0.0
        %vm771 = vcmp.ge.f32.partialorder %v573, 0.0
        %vm772 = vcmp.ge.f32.partialorder %v622, 0.0
        %vm773 = vcmp.ge.f32.partialorder %v671, 0.0
        %vm774 = vcmp.ge.f32.partialorder %v720, 0.0
        %vm775 = vcmp.ge.f32.partialorder %v575, 0.0
        %vm776 = vcmp.ge.f32.partialorder %v624, 0.0
        %vm777 = vcmp.ge.f32.partialorder %v673, 0.0
        %vm778 = vcmp.ge.f32.partialorder %v722, 0.0
        %vm779 = vcmp.ge.f32.partialorder %v578, 0.0
        %vm780 = vcmp.ge.f32.partialorder %v627, 0.0
        %vm781 = vcmp.ge.f32.partialorder %v676, 0.0
        %vm782 = vcmp.ge.f32.partialorder %v725, 0.0
        %vm783 = vcmp.ge.f32.partialorder %v580, 0.0
        %vm784 = vcmp.ge.f32.partialorder %v629, 0.0
        %vm785 = vcmp.ge.f32.partialorder %v678, 0.0
        %vm786 = vcmp.ge.f32.partialorder %v727, 0.0
        %vm787 = vcmp.ge.f32.partialorder %v583, 0.0
        %vm788 = vcmp.ge.f32.partialorder %v632, 0.0
        %vm789 = vcmp.ge.f32.partialorder %v681, 0.0
        %vm790 = vcmp.ge.f32.partialorder %v730, 0.0
        %vm791 = vcmp.ge.f32.partialorder %v585, 0.0
        %vm792 = vcmp.ge.f32.partialorder %v634, 0.0
        %vm793 = vcmp.ge.f32.partialorder %v683, 0.0
        %vm794 = vcmp.ge.f32.partialorder %v732, 0.0
        %vm795 = vcmp.ge.f32.partialorder %v588, 0.0
        %vm796 = vcmp.ge.f32.partialorder %v637, 0.0
        %vm797 = vcmp.ge.f32.partialorder %v686, 0.0
        %vm798 = vcmp.ge.f32.partialorder %v735, 0.0
        %vm799 = vcmp.ge.f32.partialorder %v590, 0.0
        %vm800 = vcmp.ge.f32.partialorder %v639, 0.0
        %vm801 = vcmp.ge.f32.partialorder %v688, 0.0
        %vm802 = vcmp.ge.f32.partialorder %v737, 0.0
        %v803 = vmul.f32 %v553, 0.2
        %v804 = vmul.f32 %v602, 0.2
        %v805 = vmul.f32 %v651, 0.2
        %v806 = vmul.f32 %v700, 0.2
        %v807 = vmul.f32 %v555, 0.2
        %v808 = vmul.f32 %v604, 0.2
        %v809 = vmul.f32 %v653, 0.2
        %v810 = vmul.f32 %v702, 0.2
        %v811 = vmul.f32 %v558, 0.2
        %v812 = vmul.f32 %v607, 0.2
        %v813 = vmul.f32 %v656, 0.2
        %v814 = vmul.f32 %v705, 0.2
        %v815 = vmul.f32 %v560, 0.2
        %v816 = vmul.f32 %v609, 0.2
        %v817 = vmul.f32 %v658, 0.2
        %v818 = vmul.f32 %v707, 0.2
        %v819 = vmul.f32 %v563, 0.2
        %v820 = vmul.f32 %v612, 0.2
        %v821 = vmul.f32 %v661, 0.2
        %v822 = vmul.f32 %v710, 0.2
        %v823 = vmul.f32 %v565, 0.2
        %v824 = vmul.f32 %v614, 0.2
        %v825 = vmul.f32 %v663, 0.2
        %v826 = vmul.f32 %v712, 0.2
        %v827 = vmul.f32 %v568, 0.2
        %v828 = vmul.f32 %v617, 0.2
        %v829 = vmul.f32 %v666, 0.2
        %v830 = vmul.f32 %v715, 0.2
        %v831 = vmul.f32 %v570, 0.2
        %v832 = vmul.f32 %v619, 0.2
        %v833 = vmul.f32 %v668, 0.2
        %v834 = vmul.f32 %v717, 0.2
        %v835 = vmul.f32 %v573, 0.2
        %v836 = vmul.f32 %v622, 0.2
        %v837 = vmul.f32 %v671, 0.2
        %v838 = vmul.f32 %v720, 0.2
        %v839 = vmul.f32 %v575, 0.2
        %v840 = vmul.f32 %v624, 0.2
        %v841 = vmul.f32 %v673, 0.2
        %v842 = vmul.f32 %v722, 0.2
        %v843 = vmul.f32 %v578, 0.2
        %v844 = vmul.f32 %v627, 0.2
        %v845 = vmul.f32 %v676, 0.2
        %v846 = vmul.f32 %v725, 0.2
        %v847 = vmul.f32 %v580, 0.2
        %v848 = vmul.f32 %v629, 0.2
        %v849 = vmul.f32 %v678, 0.2
        %v850 = vmul.f32 %v727, 0.2
        %v851 = vmul.f32 %v583, 0.2
        %v852 = vmul.f32 %v632, 0.2
        %v853 = vmul.f32 %v681, 0.2
        %v854 = vmul.f32 %v730, 0.2
        %v855 = vmul.f32 %v585, 0.2
        %v856 = vmul.f32 %v634, 0.2
        %v857 = vmul.f32 %v683, 0.2
        %v858 = vmul.f32 %v732, 0.2
        %v859 = vmul.f32 %v588, 0.2
        %v860 = vmul.f32 %v637, 0.2
        %v861 = vmul.f32 %v686, 0.2
        %v862 = vmul.f32 %v735, 0.2
        %v863 = vmul.f32 %v590, 0.2
        %v864 = vmul.f32 %v639, 0.2
        %v865 = vmul.f32 %v688, 0.2
        %v866 = vmul.f32 %v737, 0.2
        %v867 = vsel %vm739, %v553, %v803
        %v868 = vsel %vm740, %v602, %v804
        %v869 = vsel %vm741, %v651, %v805
        %v870 = vsel %vm742, %v700, %v806
        %v871 = vsel %vm743, %v555, %v807
        %v872 = vsel %vm744, %v604, %v808
        %v873 = vsel %vm745, %v653, %v809
        %v874 = vsel %vm746, %v702, %v810
        %v875 = vsel %vm747, %v558, %v811
        %v876 = vsel %vm748, %v607, %v812
        %v877 = vsel %vm749, %v656, %v813
        %v878 = vsel %vm750, %v705, %v814
        %v879 = vsel %vm751, %v560, %v815
        %v880 = vsel %vm752, %v609, %v816
        %v881 = vsel %vm753, %v658, %v817
        %v882 = vsel %vm754, %v707, %v818
        %v883 = vsel %vm755, %v563, %v819
        %v884 = vsel %vm756, %v612, %v820
        %v885 = vsel %vm757, %v661, %v821
        %v886 = vsel %vm758, %v710, %v822
        %v887 = vsel %vm759, %v565, %v823
        %v888 = vsel %vm760, %v614, %v824
        %v889 = vsel %vm761, %v663, %v825
        %v890 = vsel %vm762, %v712, %v826
        %v891 = vsel %vm763, %v568, %v827
        %v892 = vsel %vm764, %v617, %v828
        %v893 = vsel %vm765, %v666, %v829
        %v894 = vsel %vm766, %v715, %v830
        %v895 = vsel %vm767, %v570, %v831
        %v896 = vsel %vm768, %v619, %v832
        %v897 = vsel %vm769, %v668, %v833
        %v898 = vsel %vm770, %v717, %v834
        %v899 = vsel %vm771, %v573, %v835
        %v900 = vsel %vm772, %v622, %v836
        %v901 = vsel %vm773, %v671, %v837
        %v902 = vsel %vm774, %v720, %v838
        %v903 = vsel %vm775, %v575, %v839
        %v904 = vsel %vm776, %v624, %v840
        %v905 = vsel %vm777, %v673, %v841
        %v906 = vsel %vm778, %v722, %v842
        %v907 = vsel %vm779, %v578, %v843
        %v908 = vsel %vm780, %v627, %v844
        %v909 = vsel %vm781, %v676, %v845
        %v910 = vsel %vm782, %v725, %v846
        %v911 = vsel %vm783, %v580, %v847
        %v912 = vsel %vm784, %v629, %v848
        %v913 = vsel %vm785, %v678, %v849
        %v914 = vsel %vm786, %v727, %v850
        %v915 = vsel %vm787, %v583, %v851
        %v916 = vsel %vm788, %v632, %v852
        %v917 = vsel %vm789, %v681, %v853
        %v918 = vsel %vm790, %v730, %v854
        %v919 = vsel %vm791, %v585, %v855
        %v920 = vsel %vm792, %v634, %v856
        %v921 = vsel %vm793, %v683, %v857
        %v922 = vsel %vm794, %v732, %v858
        %v923 = vsel %vm795, %v588, %v859
        %v924 = vsel %vm796, %v637, %v860
        %v925 = vsel %vm797, %v686, %v861
        %v926 = vsel %vm798, %v735, %v862
        %v927 = vsel %vm799, %v590, %v863
        %v928 = vsel %vm800, %v639, %v864
        %v929 = vsel %vm801, %v688, %v865
        %v930 = vsel %vm802, %v737, %v866
        %v931 = vpack.c.bf16 %v871, %v867
        %v932 = vpack.c.bf16 %v872, %v868
        %v933 = vpack.c.bf16 %v873, %v869
        %v934 = vpack.c.bf16 %v874, %v870
        %v935 = vpack.c.bf16 %v879, %v875
        %v936 = vpack.c.bf16 %v880, %v876
        %v937 = vpack.c.bf16 %v881, %v877
        %v938 = vpack.c.bf16 %v882, %v878
        %v939 = vpack.c.bf16 %v887, %v883
        %v940 = vpack.c.bf16 %v888, %v884
        %v941 = vpack.c.bf16 %v889, %v885
        %v942 = vpack.c.bf16 %v890, %v886
        %v943 = vpack.c.bf16 %v895, %v891
        %v944 = vpack.c.bf16 %v896, %v892
        %v945 = vpack.c.bf16 %v897, %v893
        %v946 = vpack.c.bf16 %v898, %v894
        %v947 = vpack.c.bf16 %v903, %v899
        %v948 = vpack.c.bf16 %v904, %v900
        %v949 = vpack.c.bf16 %v905, %v901
        %v950 = vpack.c.bf16 %v906, %v902
        %v951 = vpack.c.bf16 %v911, %v907
        %v952 = vpack.c.bf16 %v912, %v908
        %v953 = vpack.c.bf16 %v913, %v909
        %v954 = vpack.c.bf16 %v914, %v910
        %v955 = vpack.c.bf16 %v919, %v915
        %v956 = vpack.c.bf16 %v920, %v916
        %v957 = vpack.c.bf16 %v921, %v917
        %v958 = vpack.c.bf16 %v922, %v918
        %v959 = vpack.c.bf16 %v927, %v923
        %v960 = vpack.c.bf16 %v928, %v924
        %v961 = vpack.c.bf16 %v929, %v925
        %v962 = vpack.c.bf16 %v930, %v926
        %v963 = vld [vmem:[#allocation4] sm:$0xff]
        %v964 = vld [vmem:[#allocation4 + $0x8] sm:$0xff]
        %v965 = vld [vmem:[#allocation4 + $0x10] sm:$0xff]
        %v966 = vld [vmem:[#allocation4 + $0x18] sm:$0xff]
        %v967 = vld [vmem:[#allocation4 + $0x20] sm:$0xff]
        %v968 = vld [vmem:[#allocation4 + $0x28] sm:$0xff]
        %v969 = vld [vmem:[#allocation4 + $0x30] sm:$0xff]
        %v970 = vld [vmem:[#allocation4 + $0x38] sm:$0xff]
        %v971 = vld [vmem:[#allocation4 + $0x40] sm:$0xff]
        %v972 = vld [vmem:[#allocation4 + $0x48] sm:$0xff]
        %v973 = vld [vmem:[#allocation4 + $0x50] sm:$0xff]
        %v974 = vld [vmem:[#allocation4 + $0x58] sm:$0xff]
        %v975 = vld [vmem:[#allocation4 + $0x60] sm:$0xff]
        %v976 = vld [vmem:[#allocation4 + $0x68] sm:$0xff]
        %v977 = vld [vmem:[#allocation4 + $0x70] sm:$0xff]
        %v978 = vld [vmem:[#allocation4 + $0x78] sm:$0xff]
        %v979 = vld [vmem:[#allocation4 + $0x80] sm:$0xff]
        %v980 = vld [vmem:[#allocation4 + $0x88] sm:$0xff]
        %v981 = vld [vmem:[#allocation4 + $0x90] sm:$0xff]
        %v982 = vld [vmem:[#allocation4 + $0x98] sm:$0xff]
        %v983 = vld [vmem:[#allocation4 + $0xa0] sm:$0xff]
        %v984 = vld [vmem:[#allocation4 + $0xa8] sm:$0xff]
        %v985 = vld [vmem:[#allocation4 + $0xb0] sm:$0xff]
        %v986 = vld [vmem:[#allocation4 + $0xb8] sm:$0xff]
        %v987 = vld [vmem:[#allocation4 + $0xc0] sm:$0xff]
        %v988 = vld [vmem:[#allocation4 + $0xc8] sm:$0xff]
        %v989 = vld [vmem:[#allocation4 + $0xd0] sm:$0xff]
        %v990 = vld [vmem:[#allocation4 + $0xd8] sm:$0xff]
        %v991 = vld [vmem:[#allocation4 + $0xe0] sm:$0xff]
        %v992 = vld [vmem:[#allocation4 + $0xe8] sm:$0xff]
        %v993 = vld [vmem:[#allocation4 + $0xf0] sm:$0xff]
        %v994 = vld [vmem:[#allocation4 + $0xf8] sm:$0xff]
        %v995 = vld [vmem:[#allocation4 + $0x100] sm:$0xff]
        %v996 = vld [vmem:[#allocation4 + $0x108] sm:$0xff]
        %v997 = vld [vmem:[#allocation4 + $0x110] sm:$0xff]
        %v998 = vld [vmem:[#allocation4 + $0x118] sm:$0xff]
        %v999 = vld [vmem:[#allocation4 + $0x120] sm:$0xff]
        %v1000 = vld [vmem:[#allocation4 + $0x128] sm:$0xff]
        %v1001 = vld [vmem:[#allocation4 + $0x130] sm:$0xff]
        %v1002 = vld [vmem:[#allocation4 + $0x138] sm:$0xff]
        %v1003 = vld [vmem:[#allocation4 + $0x140] sm:$0xff]
        %v1004 = vld [vmem:[#allocation4 + $0x148] sm:$0xff]
        %v1005 = vld [vmem:[#allocation4 + $0x150] sm:$0xff]
        %v1006 = vld [vmem:[#allocation4 + $0x158] sm:$0xff]
        %v1007 = vld [vmem:[#allocation4 + $0x160] sm:$0xff]
        %v1008 = vld [vmem:[#allocation4 + $0x168] sm:$0xff]
        %v1009 = vld [vmem:[#allocation4 + $0x170] sm:$0xff]
        %v1010 = vld [vmem:[#allocation4 + $0x178] sm:$0xff]
        %v1011 = vld [vmem:[#allocation4 + $0x180] sm:$0xff]
        %v1012 = vld [vmem:[#allocation4 + $0x188] sm:$0xff]
        %v1013 = vld [vmem:[#allocation4 + $0x190] sm:$0xff]
        %v1014 = vld [vmem:[#allocation4 + $0x198] sm:$0xff]
        %v1015 = vld [vmem:[#allocation4 + $0x1a0] sm:$0xff]
        %v1016 = vld [vmem:[#allocation4 + $0x1a8] sm:$0xff]
        %v1017 = vld [vmem:[#allocation4 + $0x1b0] sm:$0xff]
        %v1018 = vld [vmem:[#allocation4 + $0x1b8] sm:$0xff]
        %v1019 = vld [vmem:[#allocation4 + $0x1c0] sm:$0xff]
        %v1020 = vld [vmem:[#allocation4 + $0x1c8] sm:$0xff]
        %v1021 = vld [vmem:[#allocation4 + $0x1d0] sm:$0xff]
        %v1022 = vld [vmem:[#allocation4 + $0x1d8] sm:$0xff]
        %v1023 = vld [vmem:[#allocation4 + $0x1e0] sm:$0xff]
        %v1024 = vld [vmem:[#allocation4 + $0x1e8] sm:$0xff]
        %v1025 = vld [vmem:[#allocation4 + $0x1f0] sm:$0xff]
        %v1026 = vld [vmem:[#allocation4 + $0x1f8] sm:$0xff]
        %v1027 = vld [vmem:[#allocation4 + $0x200] sm:$0xff]
        %v1028 = vld [vmem:[#allocation4 + $0x208] sm:$0xff]
        %v1029 = vld [vmem:[#allocation4 + $0x210] sm:$0xff]
        %v1030 = vld [vmem:[#allocation4 + $0x218] sm:$0xff]
        %v1031 = vld [vmem:[#allocation4 + $0x220] sm:$0xff]
        %v1032 = vld [vmem:[#allocation4 + $0x228] sm:$0xff]
        %v1033 = vld [vmem:[#allocation4 + $0x230] sm:$0xff]
        %v1034 = vld [vmem:[#allocation4 + $0x238] sm:$0xff]
        %v1035 = vld [vmem:[#allocation4 + $0x240] sm:$0xff]
        %v1036 = vld [vmem:[#allocation4 + $0x248] sm:$0xff]
        %v1037 = vld [vmem:[#allocation4 + $0x250] sm:$0xff]
        %v1038 = vld [vmem:[#allocation4 + $0x258] sm:$0xff]
        %v1039 = vld [vmem:[#allocation4 + $0x260] sm:$0xff]
        %v1040 = vld [vmem:[#allocation4 + $0x268] sm:$0xff]
        %v1041 = vld [vmem:[#allocation4 + $0x270] sm:$0xff]
        %v1042 = vld [vmem:[#allocation4 + $0x278] sm:$0xff]
        %v1043 = vld [vmem:[#allocation4 + $0x280] sm:$0xff]
        %v1044 = vld [vmem:[#allocation4 + $0x288] sm:$0xff]
        %v1045 = vld [vmem:[#allocation4 + $0x290] sm:$0xff]
        %v1046 = vld [vmem:[#allocation4 + $0x298] sm:$0xff]
        %v1047 = vld [vmem:[#allocation4 + $0x2a0] sm:$0xff]
        %v1048 = vld [vmem:[#allocation4 + $0x2a8] sm:$0xff]
        %v1049 = vld [vmem:[#allocation4 + $0x2b0] sm:$0xff]
        %v1050 = vld [vmem:[#allocation4 + $0x2b8] sm:$0xff]
        %v1051 = vld [vmem:[#allocation4 + $0x2c0] sm:$0xff]
        %v1052 = vld [vmem:[#allocation4 + $0x2c8] sm:$0xff]
        %v1053 = vld [vmem:[#allocation4 + $0x2d0] sm:$0xff]
        %v1054 = vld [vmem:[#allocation4 + $0x2d8] sm:$0xff]
        %v1055 = vld [vmem:[#allocation4 + $0x2e0] sm:$0xff]
        %v1056 = vld [vmem:[#allocation4 + $0x2e8] sm:$0xff]
        %v1057 = vld [vmem:[#allocation4 + $0x2f0] sm:$0xff]
        %v1058 = vld [vmem:[#allocation4 + $0x2f8] sm:$0xff]
        %v1059 = vld [vmem:[#allocation4 + $0x300] sm:$0xff]
        %v1060 = vld [vmem:[#allocation4 + $0x308] sm:$0xff]
        %v1061 = vld [vmem:[#allocation4 + $0x310] sm:$0xff]
        %v1062 = vld [vmem:[#allocation4 + $0x318] sm:$0xff]
        %v1063 = vld [vmem:[#allocation4 + $0x320] sm:$0xff]
        %v1064 = vld [vmem:[#allocation4 + $0x328] sm:$0xff]
        %v1065 = vld [vmem:[#allocation4 + $0x330] sm:$0xff]
        %v1066 = vld [vmem:[#allocation4 + $0x338] sm:$0xff]
        %v1067 = vld [vmem:[#allocation4 + $0x340] sm:$0xff]
        %v1068 = vld [vmem:[#allocation4 + $0x348] sm:$0xff]
        %v1069 = vld [vmem:[#allocation4 + $0x350] sm:$0xff]
        %v1070 = vld [vmem:[#allocation4 + $0x358] sm:$0xff]
        %v1071 = vld [vmem:[#allocation4 + $0x360] sm:$0xff]
        %v1072 = vld [vmem:[#allocation4 + $0x368] sm:$0xff]
        %v1073 = vld [vmem:[#allocation4 + $0x370] sm:$0xff]
        %v1074 = vld [vmem:[#allocation4 + $0x378] sm:$0xff]
        %v1075 = vld [vmem:[#allocation4 + $0x380] sm:$0xff]
        %v1076 = vld [vmem:[#allocation4 + $0x388] sm:$0xff]
        %v1077 = vld [vmem:[#allocation4 + $0x390] sm:$0xff]
        %v1078 = vld [vmem:[#allocation4 + $0x398] sm:$0xff]
        %v1079 = vld [vmem:[#allocation4 + $0x3a0] sm:$0xff]
        %v1080 = vld [vmem:[#allocation4 + $0x3a8] sm:$0xff]
        %v1081 = vld [vmem:[#allocation4 + $0x3b0] sm:$0xff]
        %v1082 = vld [vmem:[#allocation4 + $0x3b8] sm:$0xff]
        %v1083 = vld [vmem:[#allocation4 + $0x3c0] sm:$0xff]
        %v1084 = vld [vmem:[#allocation4 + $0x3c8] sm:$0xff]
        %v1085 = vld [vmem:[#allocation4 + $0x3d0] sm:$0xff]
        %v1086 = vld [vmem:[#allocation4 + $0x3d8] sm:$0xff]
        %v1087 = vld [vmem:[#allocation4 + $0x3e0] sm:$0xff]
        %v1088 = vld [vmem:[#allocation4 + $0x3e8] sm:$0xff]
        %v1089 = vld [vmem:[#allocation4 + $0x3f0] sm:$0xff]
        %v1090 = vld [vmem:[#allocation4 + $0x3f8] sm:$0xff]
        %v1091 = vld [vmem:[%s5] sm:$0xf]
        %v1092 = vstv %s411
        %v1093 = vmul.f32 %v1092, %v1091
        %v1095 = vperm.slane %v1093, 0
        %v1096 = vperm.slane %v1093, 1
        %v1097 = vperm.slane %v1093, 2
        %v1098 = vperm.slane %v1093, 3
        %v1231 = vunpack.c.l.b16 %v963
        %v1232 = vunpack.c.h.b16 %v963
        %v1233 = vunpack.c.l.b16 %v964
        %v1234 = vunpack.c.h.b16 %v964
        %v1235 = vunpack.c.l.b16 %v965
        %v1236 = vunpack.c.h.b16 %v965
        %v1237 = vunpack.c.l.b16 %v966
        %v1238 = vunpack.c.h.b16 %v966
        %v1239 = vunpack.c.l.b16 %v967
        %v1240 = vunpack.c.h.b16 %v967
        %v1241 = vunpack.c.l.b16 %v968
        %v1242 = vunpack.c.h.b16 %v968
        %v1243 = vunpack.c.l.b16 %v969
        %v1244 = vunpack.c.h.b16 %v969
        %v1245 = vunpack.c.l.b16 %v970
        %v1246 = vunpack.c.h.b16 %v970
        %v1247 = vunpack.c.l.b16 %v971
        %v1248 = vunpack.c.h.b16 %v971
        %v1249 = vunpack.c.l.b16 %v972
        %v1250 = vunpack.c.h.b16 %v972
        %v1251 = vunpack.c.l.b16 %v973
        %v1252 = vunpack.c.h.b16 %v973
        %v1253 = vunpack.c.l.b16 %v974
        %v1254 = vunpack.c.h.b16 %v974
        %v1255 = vunpack.c.l.b16 %v975
        %v1256 = vunpack.c.h.b16 %v975
        %v1257 = vunpack.c.l.b16 %v976
        %v1258 = vunpack.c.h.b16 %v976
        %v1259 = vunpack.c.l.b16 %v977
        %v1260 = vunpack.c.h.b16 %v977
        %v1261 = vunpack.c.l.b16 %v978
        %v1262 = vunpack.c.h.b16 %v978
        %v1263 = vunpack.c.l.b16 %v979
        %v1264 = vunpack.c.h.b16 %v979
        %v1265 = vunpack.c.l.b16 %v980
        %v1266 = vunpack.c.h.b16 %v980
        %v1267 = vunpack.c.l.b16 %v981
        %v1268 = vunpack.c.h.b16 %v981
        %v1269 = vunpack.c.l.b16 %v982
        %v1270 = vunpack.c.h.b16 %v982
        %v1271 = vunpack.c.l.b16 %v983
        %v1272 = vunpack.c.h.b16 %v983
        %v1273 = vunpack.c.l.b16 %v984
        %v1274 = vunpack.c.h.b16 %v984
        %v1275 = vunpack.c.l.b16 %v985
        %v1276 = vunpack.c.h.b16 %v985
        %v1277 = vunpack.c.l.b16 %v986
        %v1278 = vunpack.c.h.b16 %v986
        %v1279 = vunpack.c.l.b16 %v987
        %v1280 = vunpack.c.h.b16 %v987
        %v1281 = vunpack.c.l.b16 %v988
        %v1282 = vunpack.c.h.b16 %v988
        %v1283 = vunpack.c.l.b16 %v989
        %v1284 = vunpack.c.h.b16 %v989
        %v1285 = vunpack.c.l.b16 %v990
        %v1286 = vunpack.c.h.b16 %v990
        %v1287 = vunpack.c.l.b16 %v991
        %v1288 = vunpack.c.h.b16 %v991
        %v1289 = vunpack.c.l.b16 %v992
        %v1290 = vunpack.c.h.b16 %v992
        %v1291 = vunpack.c.l.b16 %v993
        %v1292 = vunpack.c.h.b16 %v993
        %v1293 = vunpack.c.l.b16 %v994
        %v1294 = vunpack.c.h.b16 %v994
        %v1295 = vunpack.c.l.b16 %v995
        %v1296 = vunpack.c.h.b16 %v995
        %v1297 = vunpack.c.l.b16 %v996
        %v1298 = vunpack.c.h.b16 %v996
        %v1299 = vunpack.c.l.b16 %v997
        %v1300 = vunpack.c.h.b16 %v997
        %v1301 = vunpack.c.l.b16 %v998
        %v1302 = vunpack.c.h.b16 %v998
        %v1303 = vunpack.c.l.b16 %v999
        %v1304 = vunpack.c.h.b16 %v999
        %v1305 = vunpack.c.l.b16 %v1000
        %v1306 = vunpack.c.h.b16 %v1000
        %v1307 = vunpack.c.l.b16 %v1001
        %v1308 = vunpack.c.h.b16 %v1001
        %v1309 = vunpack.c.l.b16 %v1002
        %v1310 = vunpack.c.h.b16 %v1002
        %v1311 = vunpack.c.l.b16 %v1003
        %v1312 = vunpack.c.h.b16 %v1003
        %v1313 = vunpack.c.l.b16 %v1004
        %v1314 = vunpack.c.h.b16 %v1004
        %v1315 = vunpack.c.l.b16 %v1005
        %v1316 = vunpack.c.h.b16 %v1005
        %v1317 = vunpack.c.l.b16 %v1006
        %v1318 = vunpack.c.h.b16 %v1006
        %v1319 = vunpack.c.l.b16 %v1007
        %v1320 = vunpack.c.h.b16 %v1007
        %v1321 = vunpack.c.l.b16 %v1008
        %v1322 = vunpack.c.h.b16 %v1008
        %v1323 = vunpack.c.l.b16 %v1009
        %v1324 = vunpack.c.h.b16 %v1009
        %v1325 = vunpack.c.l.b16 %v1010
        %v1326 = vunpack.c.h.b16 %v1010
        %v1327 = vunpack.c.l.b16 %v1011
        %v1328 = vunpack.c.h.b16 %v1011
        %v1329 = vunpack.c.l.b16 %v1012
        %v1330 = vunpack.c.h.b16 %v1012
        %v1331 = vunpack.c.l.b16 %v1013
        %v1332 = vunpack.c.h.b16 %v1013
        %v1333 = vunpack.c.l.b16 %v1014
        %v1334 = vunpack.c.h.b16 %v1014
        %v1335 = vunpack.c.l.b16 %v1015
        %v1336 = vunpack.c.h.b16 %v1015
        %v1337 = vunpack.c.l.b16 %v1016
        %v1338 = vunpack.c.h.b16 %v1016
        %v1339 = vunpack.c.l.b16 %v1017
        %v1340 = vunpack.c.h.b16 %v1017
        %v1341 = vunpack.c.l.b16 %v1018
        %v1342 = vunpack.c.h.b16 %v1018
        %v1343 = vunpack.c.l.b16 %v1019
        %v1344 = vunpack.c.h.b16 %v1019
        %v1345 = vunpack.c.l.b16 %v1020
        %v1346 = vunpack.c.h.b16 %v1020
        %v1347 = vunpack.c.l.b16 %v1021
        %v1348 = vunpack.c.h.b16 %v1021
        %v1349 = vunpack.c.l.b16 %v1022
        %v1350 = vunpack.c.h.b16 %v1022
        %v1351 = vunpack.c.l.b16 %v1023
        %v1352 = vunpack.c.h.b16 %v1023
        %v1353 = vunpack.c.l.b16 %v1024
        %v1354 = vunpack.c.h.b16 %v1024
        %v1355 = vunpack.c.l.b16 %v1025
        %v1356 = vunpack.c.h.b16 %v1025
        %v1357 = vunpack.c.l.b16 %v1026
        %v1358 = vunpack.c.h.b16 %v1026
        %v1359 = vunpack.c.l.b16 %v1027
        %v1360 = vunpack.c.h.b16 %v1027
        %v1361 = vunpack.c.l.b16 %v1028
        %v1362 = vunpack.c.h.b16 %v1028
        %v1363 = vunpack.c.l.b16 %v1029
        %v1364 = vunpack.c.h.b16 %v1029
        %v1365 = vunpack.c.l.b16 %v1030
        %v1366 = vunpack.c.h.b16 %v1030
        %v1367 = vunpack.c.l.b16 %v1031
        %v1368 = vunpack.c.h.b16 %v1031
        %v1369 = vunpack.c.l.b16 %v1032
        %v1370 = vunpack.c.h.b16 %v1032
        %v1371 = vunpack.c.l.b16 %v1033
        %v1372 = vunpack.c.h.b16 %v1033
        %v1373 = vunpack.c.l.b16 %v1034
        %v1374 = vunpack.c.h.b16 %v1034
        %v1375 = vunpack.c.l.b16 %v1035
        %v1376 = vunpack.c.h.b16 %v1035
        %v1377 = vunpack.c.l.b16 %v1036
        %v1378 = vunpack.c.h.b16 %v1036
        %v1379 = vunpack.c.l.b16 %v1037
        %v1380 = vunpack.c.h.b16 %v1037
        %v1381 = vunpack.c.l.b16 %v1038
        %v1382 = vunpack.c.h.b16 %v1038
        %v1383 = vunpack.c.l.b16 %v1039
        %v1384 = vunpack.c.h.b16 %v1039
        %v1385 = vunpack.c.l.b16 %v1040
        %v1386 = vunpack.c.h.b16 %v1040
        %v1387 = vunpack.c.l.b16 %v1041
        %v1388 = vunpack.c.h.b16 %v1041
        %v1389 = vunpack.c.l.b16 %v1042
        %v1390 = vunpack.c.h.b16 %v1042
        %v1391 = vunpack.c.l.b16 %v1043
        %v1392 = vunpack.c.h.b16 %v1043
        %v1393 = vunpack.c.l.b16 %v1044
        %v1394 = vunpack.c.h.b16 %v1044
        %v1395 = vunpack.c.l.b16 %v1045
        %v1396 = vunpack.c.h.b16 %v1045
        %v1397 = vunpack.c.l.b16 %v1046
        %v1398 = vunpack.c.h.b16 %v1046
        %v1399 = vunpack.c.l.b16 %v1047
        %v1400 = vunpack.c.h.b16 %v1047
        %v1401 = vunpack.c.l.b16 %v1048
        %v1402 = vunpack.c.h.b16 %v1048
        %v1403 = vunpack.c.l.b16 %v1049
        %v1404 = vunpack.c.h.b16 %v1049
        %v1405 = vunpack.c.l.b16 %v1050
        %v1406 = vunpack.c.h.b16 %v1050
        %v1407 = vunpack.c.l.b16 %v1051
        %v1408 = vunpack.c.h.b16 %v1051
        %v1409 = vunpack.c.l.b16 %v1052
        %v1410 = vunpack.c.h.b16 %v1052
        %v1411 = vunpack.c.l.b16 %v1053
        %v1412 = vunpack.c.h.b16 %v1053
        %v1413 = vunpack.c.l.b16 %v1054
        %v1414 = vunpack.c.h.b16 %v1054
        %v1415 = vunpack.c.l.b16 %v1055
        %v1416 = vunpack.c.h.b16 %v1055
        %v1417 = vunpack.c.l.b16 %v1056
        %v1418 = vunpack.c.h.b16 %v1056
        %v1419 = vunpack.c.l.b16 %v1057
        %v1420 = vunpack.c.h.b16 %v1057
        %v1421 = vunpack.c.l.b16 %v1058
        %v1422 = vunpack.c.h.b16 %v1058
        %v1423 = vunpack.c.l.b16 %v1059
        %v1424 = vunpack.c.h.b16 %v1059
        %v1425 = vunpack.c.l.b16 %v1060
        %v1426 = vunpack.c.h.b16 %v1060
        %v1427 = vunpack.c.l.b16 %v1061
        %v1428 = vunpack.c.h.b16 %v1061
        %v1429 = vunpack.c.l.b16 %v1062
        %v1430 = vunpack.c.h.b16 %v1062
        %v1431 = vunpack.c.l.b16 %v1063
        %v1432 = vunpack.c.h.b16 %v1063
        %v1433 = vunpack.c.l.b16 %v1064
        %v1434 = vunpack.c.h.b16 %v1064
        %v1435 = vunpack.c.l.b16 %v1065
        %v1436 = vunpack.c.h.b16 %v1065
        %v1437 = vunpack.c.l.b16 %v1066
        %v1438 = vunpack.c.h.b16 %v1066
        %v1439 = vunpack.c.l.b16 %v1067
        %v1440 = vunpack.c.h.b16 %v1067
        %v1441 = vunpack.c.l.b16 %v1068
        %v1442 = vunpack.c.h.b16 %v1068
        %v1443 = vunpack.c.l.b16 %v1069
        %v1444 = vunpack.c.h.b16 %v1069
        %v1445 = vunpack.c.l.b16 %v1070
        %v1446 = vunpack.c.h.b16 %v1070
        %v1447 = vunpack.c.l.b16 %v1071
        %v1448 = vunpack.c.h.b16 %v1071
        %v1449 = vunpack.c.l.b16 %v1072
        %v1450 = vunpack.c.h.b16 %v1072
        %v1451 = vunpack.c.l.b16 %v1073
        %v1452 = vunpack.c.h.b16 %v1073
        %v1453 = vunpack.c.l.b16 %v1074
        %v1454 = vunpack.c.h.b16 %v1074
        %v1455 = vunpack.c.l.b16 %v1075
        %v1456 = vunpack.c.h.b16 %v1075
        %v1457 = vunpack.c.l.b16 %v1076
        %v1458 = vunpack.c.h.b16 %v1076
        %v1459 = vunpack.c.l.b16 %v1077
        %v1460 = vunpack.c.h.b16 %v1077
        %v1461 = vunpack.c.l.b16 %v1078
        %v1462 = vunpack.c.h.b16 %v1078
        %v1463 = vunpack.c.l.b16 %v1079
        %v1464 = vunpack.c.h.b16 %v1079
        %v1465 = vunpack.c.l.b16 %v1080
        %v1466 = vunpack.c.h.b16 %v1080
        %v1467 = vunpack.c.l.b16 %v1081
        %v1468 = vunpack.c.h.b16 %v1081
        %v1469 = vunpack.c.l.b16 %v1082
        %v1470 = vunpack.c.h.b16 %v1082
        %v1471 = vunpack.c.l.b16 %v1083
        %v1472 = vunpack.c.h.b16 %v1083
        %v1473 = vunpack.c.l.b16 %v1084
        %v1474 = vunpack.c.h.b16 %v1084
        %v1475 = vunpack.c.l.b16 %v1085
        %v1476 = vunpack.c.h.b16 %v1085
        %v1477 = vunpack.c.l.b16 %v1086
        %v1478 = vunpack.c.h.b16 %v1086
        %v1479 = vunpack.c.l.b16 %v1087
        %v1480 = vunpack.c.h.b16 %v1087
        %v1481 = vunpack.c.l.b16 %v1088
        %v1482 = vunpack.c.h.b16 %v1088
        %v1483 = vunpack.c.l.b16 %v1089
        %v1484 = vunpack.c.h.b16 %v1089
        %v1485 = vunpack.c.l.b16 %v1090
        %v1486 = vunpack.c.h.b16 %v1090
        %v1487 = vpack.c.b16 %v1235, %v1231
        %v1488 = vpack.c.b16 %v1236, %v1232
        %v1489 = vpack.c.b16 %v1237, %v1233
        %v1490 = vpack.c.b16 %v1238, %v1234
        %v1491 = vpack.c.b16 %v1243, %v1239
        %v1492 = vpack.c.b16 %v1244, %v1240
        %v1493 = vpack.c.b16 %v1245, %v1241
        %v1494 = vpack.c.b16 %v1246, %v1242
        %v1495 = vpack.c.b16 %v1251, %v1247
        %v1496 = vpack.c.b16 %v1252, %v1248
        %v1497 = vpack.c.b16 %v1253, %v1249
        %v1498 = vpack.c.b16 %v1254, %v1250
        %v1499 = vpack.c.b16 %v1259, %v1255
        %v1500 = vpack.c.b16 %v1260, %v1256
        %v1501 = vpack.c.b16 %v1261, %v1257
        %v1502 = vpack.c.b16 %v1262, %v1258
        %v1503 = vpack.c.b16 %v1267, %v1263
        %v1504 = vpack.c.b16 %v1268, %v1264
        %v1505 = vpack.c.b16 %v1269, %v1265
        %v1506 = vpack.c.b16 %v1270, %v1266
        %v1507 = vpack.c.b16 %v1275, %v1271
        %v1508 = vpack.c.b16 %v1276, %v1272
        %v1509 = vpack.c.b16 %v1277, %v1273
        %v1510 = vpack.c.b16 %v1278, %v1274
        %v1511 = vpack.c.b16 %v1283, %v1279
        %v1512 = vpack.c.b16 %v1284, %v1280
        %v1513 = vpack.c.b16 %v1285, %v1281
        %v1514 = vpack.c.b16 %v1286, %v1282
        %v1515 = vpack.c.b16 %v1291, %v1287
        %v1516 = vpack.c.b16 %v1292, %v1288
        %v1517 = vpack.c.b16 %v1293, %v1289
        %v1518 = vpack.c.b16 %v1294, %v1290
        %v1519 = vpack.c.b16 %v1299, %v1295
        %v1520 = vpack.c.b16 %v1300, %v1296
        %v1521 = vpack.c.b16 %v1301, %v1297
        %v1522 = vpack.c.b16 %v1302, %v1298
        %v1523 = vpack.c.b16 %v1307, %v1303
        %v1524 = vpack.c.b16 %v1308, %v1304
        %v1525 = vpack.c.b16 %v1309, %v1305
        %v1526 = vpack.c.b16 %v1310, %v1306
        %v1527 = vpack.c.b16 %v1315, %v1311
        %v1528 = vpack.c.b16 %v1316, %v1312
        %v1529 = vpack.c.b16 %v1317, %v1313
        %v1530 = vpack.c.b16 %v1318, %v1314
        %v1531 = vpack.c.b16 %v1323, %v1319
        %v1532 = vpack.c.b16 %v1324, %v1320
        %v1533 = vpack.c.b16 %v1325, %v1321
        %v1534 = vpack.c.b16 %v1326, %v1322
        %v1535 = vpack.c.b16 %v1331, %v1327
        %v1536 = vpack.c.b16 %v1332, %v1328
        %v1537 = vpack.c.b16 %v1333, %v1329
        %v1538 = vpack.c.b16 %v1334, %v1330
        %v1539 = vpack.c.b16 %v1339, %v1335
        %v1540 = vpack.c.b16 %v1340, %v1336
        %v1541 = vpack.c.b16 %v1341, %v1337
        %v1542 = vpack.c.b16 %v1342, %v1338
        %v1543 = vpack.c.b16 %v1347, %v1343
        %v1544 = vpack.c.b16 %v1348, %v1344
        %v1545 = vpack.c.b16 %v1349, %v1345
        %v1546 = vpack.c.b16 %v1350, %v1346
        %v1547 = vpack.c.b16 %v1355, %v1351
        %v1548 = vpack.c.b16 %v1356, %v1352
        %v1549 = vpack.c.b16 %v1357, %v1353
        %v1550 = vpack.c.b16 %v1358, %v1354
        %v1551 = vpack.c.b16 %v1363, %v1359
        %v1552 = vpack.c.b16 %v1364, %v1360
        %v1553 = vpack.c.b16 %v1365, %v1361
        %v1554 = vpack.c.b16 %v1366, %v1362
        %v1555 = vpack.c.b16 %v1371, %v1367
        %v1556 = vpack.c.b16 %v1372, %v1368
        %v1557 = vpack.c.b16 %v1373, %v1369
        %v1558 = vpack.c.b16 %v1374, %v1370
        %v1559 = vpack.c.b16 %v1379, %v1375
        %v1560 = vpack.c.b16 %v1380, %v1376
        %v1561 = vpack.c.b16 %v1381, %v1377
        %v1562 = vpack.c.b16 %v1382, %v1378
        %v1563 = vpack.c.b16 %v1387, %v1383
        %v1564 = vpack.c.b16 %v1388, %v1384
        %v1565 = vpack.c.b16 %v1389, %v1385
        %v1566 = vpack.c.b16 %v1390, %v1386
        %v1567 = vpack.c.b16 %v1395, %v1391
        %v1568 = vpack.c.b16 %v1396, %v1392
        %v1569 = vpack.c.b16 %v1397, %v1393
        %v1570 = vpack.c.b16 %v1398, %v1394
        %v1571 = vpack.c.b16 %v1403, %v1399
        %v1572 = vpack.c.b16 %v1404, %v1400
        %v1573 = vpack.c.b16 %v1405, %v1401
        %v1574 = vpack.c.b16 %v1406, %v1402
        %v1575 = vpack.c.b16 %v1411, %v1407
        %v1576 = vpack.c.b16 %v1412, %v1408
        %v1577 = vpack.c.b16 %v1413, %v1409
        %v1578 = vpack.c.b16 %v1414, %v1410
        %v1579 = vpack.c.b16 %v1419, %v1415
        %v1580 = vpack.c.b16 %v1420, %v1416
        %v1581 = vpack.c.b16 %v1421, %v1417
        %v1582 = vpack.c.b16 %v1422, %v1418
        %v1583 = vpack.c.b16 %v1427, %v1423
        %v1584 = vpack.c.b16 %v1428, %v1424
        %v1585 = vpack.c.b16 %v1429, %v1425
        %v1586 = vpack.c.b16 %v1430, %v1426
        %v1587 = vpack.c.b16 %v1435, %v1431
        %v1588 = vpack.c.b16 %v1436, %v1432
        %v1589 = vpack.c.b16 %v1437, %v1433
        %v1590 = vpack.c.b16 %v1438, %v1434
        %v1591 = vpack.c.b16 %v1443, %v1439
        %v1592 = vpack.c.b16 %v1444, %v1440
        %v1593 = vpack.c.b16 %v1445, %v1441
        %v1594 = vpack.c.b16 %v1446, %v1442
        %v1595 = vpack.c.b16 %v1451, %v1447
        %v1596 = vpack.c.b16 %v1452, %v1448
        %v1597 = vpack.c.b16 %v1453, %v1449
        %v1598 = vpack.c.b16 %v1454, %v1450
        %v1599 = vpack.c.b16 %v1459, %v1455
        %v1600 = vpack.c.b16 %v1460, %v1456
        %v1601 = vpack.c.b16 %v1461, %v1457
        %v1602 = vpack.c.b16 %v1462, %v1458
        %v1603 = vpack.c.b16 %v1467, %v1463
        %v1604 = vpack.c.b16 %v1468, %v1464
        %v1605 = vpack.c.b16 %v1469, %v1465
        %v1606 = vpack.c.b16 %v1470, %v1466
        %v1607 = vpack.c.b16 %v1475, %v1471
        %v1608 = vpack.c.b16 %v1476, %v1472
        %v1609 = vpack.c.b16 %v1477, %v1473
        %v1610 = vpack.c.b16 %v1478, %v1474
        %v1611 = vpack.c.b16 %v1483, %v1479
        %v1612 = vpack.c.b16 %v1484, %v1480
        %v1613 = vpack.c.b16 %v1485, %v1481
        %v1614 = vpack.c.b16 %v1486, %v1482
        %1743 = vmatpush.bf16.msra.mxu0 %v1515
        %1744 = vmatpush.bf16.msra.mxu0 %v1511
        %1745 = vmatpush.bf16.msra.mxu0 %v1507
        %1746 = vmatpush.bf16.msra.mxu0 %v1503
        %1747 = vmatpush.bf16.msra.mxu0 %v1499
        %1748 = vmatpush.bf16.msra.mxu0 %v1495
        %1749 = vmatpush.bf16.msra.mxu0 %v1491
        %1750 = vmatpush.bf16.msra.mxu0 %v1487
        %1751 = vmatmul.bf16.gmra.mxu0 %v931
        %v1752 = vpop.f32.mrf.mxu0
        %v1753 = vadd.f32 %v1095, %v1752
        %v1754 = vpop.f32.mrf.mxu0
        %v1755 = vadd.f32 %v1095, %v1754
        %1756 = vmatmul.bf16.gmra.mxu0 %v935
        %v1757 = vpop.f32.mrf.mxu0
        %v1758 = vadd.f32 %v1095, %v1757
        %v1759 = vpop.f32.mrf.mxu0
        %v1760 = vadd.f32 %v1095, %v1759
        %1761 = vmatmul.bf16.gmra.mxu0 %v939
        %v1762 = vpop.f32.mrf.mxu0
        %v1763 = vadd.f32 %v1095, %v1762
        %v1764 = vpop.f32.mrf.mxu0
        %v1765 = vadd.f32 %v1095, %v1764
        %1766 = vmatmul.bf16.gmra.mxu0 %v943
        %v1767 = vpop.f32.mrf.mxu0
        %v1768 = vadd.f32 %v1095, %v1767
        %v1769 = vpop.f32.mrf.mxu0
        %v1770 = vadd.f32 %v1095, %v1769
        %1771 = vmatmul.bf16.gmra.mxu0 %v947
        %v1772 = vpop.f32.mrf.mxu0
        %v1773 = vadd.f32 %v1095, %v1772
        %v1774 = vpop.f32.mrf.mxu0
        %v1775 = vadd.f32 %v1095, %v1774
        %1776 = vmatmul.bf16.gmra.mxu0 %v951
        %v1777 = vpop.f32.mrf.mxu0
        %v1778 = vadd.f32 %v1095, %v1777
        %v1779 = vpop.f32.mrf.mxu0
        %v1780 = vadd.f32 %v1095, %v1779
        %1781 = vmatmul.bf16.gmra.mxu0 %v955
        %v1782 = vpop.f32.mrf.mxu0
        %v1783 = vadd.f32 %v1095, %v1782
        %v1784 = vpop.f32.mrf.mxu0
        %v1785 = vadd.f32 %v1095, %v1784
        %1786 = vmatmul.bf16.gmra.mxu0 %v959
        %v1787 = vpop.f32.mrf.mxu0
        %v1788 = vadd.f32 %v1095, %v1787
        %v1789 = vpop.f32.mrf.mxu0
        %v1790 = vadd.f32 %v1095, %v1789
        %1791 = vdwg.mxu0
        %1792 = vmatpush.bf16.msra.mxu0 %v1547
        %1793 = vmatpush.bf16.msra.mxu0 %v1543
        %1794 = vmatpush.bf16.msra.mxu0 %v1539
        %1795 = vmatpush.bf16.msra.mxu0 %v1535
        %1796 = vmatpush.bf16.msra.mxu0 %v1531
        %1797 = vmatpush.bf16.msra.mxu0 %v1527
        %1798 = vmatpush.bf16.msra.mxu0 %v1523
        %1799 = vmatpush.bf16.msra.mxu0 %v1519
        %1800 = vmatmul.bf16.gmra.mxu0 %v932
        %v1801 = vpop.f32.mrf.mxu0
        %v1802 = vadd.f32 %v1753, %v1801
        %v1803 = vpop.f32.mrf.mxu0
        %v1804 = vadd.f32 %v1755, %v1803
        %1805 = vmatmul.bf16.gmra.mxu0 %v936
        %v1806 = vpop.f32.mrf.mxu0
        %v1807 = vadd.f32 %v1758, %v1806
        %v1808 = vpop.f32.mrf.mxu0
        %v1809 = vadd.f32 %v1760, %v1808
        %1810 = vmatmul.bf16.gmra.mxu0 %v940
        %v1811 = vpop.f32.mrf.mxu0
        %v1812 = vadd.f32 %v1763, %v1811
        %v1813 = vpop.f32.mrf.mxu0
        %v1814 = vadd.f32 %v1765, %v1813
        %1815 = vmatmul.bf16.gmra.mxu0 %v944
        %v1816 = vpop.f32.mrf.mxu0
        %v1817 = vadd.f32 %v1768, %v1816
        %v1818 = vpop.f32.mrf.mxu0
        %v1819 = vadd.f32 %v1770, %v1818
        %1820 = vmatmul.bf16.gmra.mxu0 %v948
        %v1821 = vpop.f32.mrf.mxu0
        %v1822 = vadd.f32 %v1773, %v1821
        %v1823 = vpop.f32.mrf.mxu0
        %v1824 = vadd.f32 %v1775, %v1823
        %1825 = vmatmul.bf16.gmra.mxu0 %v952
        %v1826 = vpop.f32.mrf.mxu0
        %v1827 = vadd.f32 %v1778, %v1826
        %v1828 = vpop.f32.mrf.mxu0
        %v1829 = vadd.f32 %v1780, %v1828
        %1830 = vmatmul.bf16.gmra.mxu0 %v956
        %v1831 = vpop.f32.mrf.mxu0
        %v1832 = vadd.f32 %v1783, %v1831
        %v1833 = vpop.f32.mrf.mxu0
        %v1834 = vadd.f32 %v1785, %v1833
        %1835 = vmatmul.bf16.gmra.mxu0 %v960
        %v1836 = vpop.f32.mrf.mxu0
        %v1837 = vadd.f32 %v1788, %v1836
        %v1838 = vpop.f32.mrf.mxu0
        %v1839 = vadd.f32 %v1790, %v1838
        %1840 = vdwg.mxu0
        %1841 = vmatpush.bf16.msra.mxu0 %v1579
        %1842 = vmatpush.bf16.msra.mxu0 %v1575
        %1843 = vmatpush.bf16.msra.mxu0 %v1571
        %1844 = vmatpush.bf16.msra.mxu0 %v1567
        %1845 = vmatpush.bf16.msra.mxu0 %v1563
        %1846 = vmatpush.bf16.msra.mxu0 %v1559
        %1847 = vmatpush.bf16.msra.mxu0 %v1555
        %1848 = vmatpush.bf16.msra.mxu0 %v1551
        %1849 = vmatmul.bf16.gmra.mxu0 %v933
        %v1850 = vpop.f32.mrf.mxu0
        %v1851 = vadd.f32 %v1802, %v1850
        %v1852 = vpop.f32.mrf.mxu0
        %v1853 = vadd.f32 %v1804, %v1852
        %1854 = vmatmul.bf16.gmra.mxu0 %v937
        %v1855 = vpop.f32.mrf.mxu0
        %v1856 = vadd.f32 %v1807, %v1855
        %v1857 = vpop.f32.mrf.mxu0
        %v1858 = vadd.f32 %v1809, %v1857
        %1859 = vmatmul.bf16.gmra.mxu0 %v941
        %v1860 = vpop.f32.mrf.mxu0
        %v1861 = vadd.f32 %v1812, %v1860
        %v1862 = vpop.f32.mrf.mxu0
        %v1863 = vadd.f32 %v1814, %v1862
        %1864 = vmatmul.bf16.gmra.mxu0 %v945
        %v1865 = vpop.f32.mrf.mxu0
        %v1866 = vadd.f32 %v1817, %v1865
        %v1867 = vpop.f32.mrf.mxu0
        %v1868 = vadd.f32 %v1819, %v1867
        %1869 = vmatmul.bf16.gmra.mxu0 %v949
        %v1870 = vpop.f32.mrf.mxu0
        %v1871 = vadd.f32 %v1822, %v1870
        %v1872 = vpop.f32.mrf.mxu0
        %v1873 = vadd.f32 %v1824, %v1872
        %1874 = vmatmul.bf16.gmra.mxu0 %v953
        %v1875 = vpop.f32.mrf.mxu0
        %v1876 = vadd.f32 %v1827, %v1875
        %v1877 = vpop.f32.mrf.mxu0
        %v1878 = vadd.f32 %v1829, %v1877
        %1879 = vmatmul.bf16.gmra.mxu0 %v957
        %v1880 = vpop.f32.mrf.mxu0
        %v1881 = vadd.f32 %v1832, %v1880
        %v1882 = vpop.f32.mrf.mxu0
        %v1883 = vadd.f32 %v1834, %v1882
        %1884 = vmatmul.bf16.gmra.mxu0 %v961
        %v1885 = vpop.f32.mrf.mxu0
        %v1886 = vadd.f32 %v1837, %v1885
        %v1887 = vpop.f32.mrf.mxu0
        %v1888 = vadd.f32 %v1839, %v1887
        %1889 = vdwg.mxu0
        %1890 = vmatpush.bf16.msra.mxu0 %v1611
        %1891 = vmatpush.bf16.msra.mxu0 %v1607
        %1892 = vmatpush.bf16.msra.mxu0 %v1603
        %1893 = vmatpush.bf16.msra.mxu0 %v1599
        %1894 = vmatpush.bf16.msra.mxu0 %v1595
        %1895 = vmatpush.bf16.msra.mxu0 %v1591
        %1896 = vmatpush.bf16.msra.mxu0 %v1587
        %1897 = vmatpush.bf16.msra.mxu0 %v1583
        %1898 = vmatmul.bf16.gmra.mxu0 %v934
        %v1899 = vpop.f32.mrf.mxu0
        %v1900 = vadd.f32 %v1851, %v1899
        %v1901 = vpop.f32.mrf.mxu0
        %v1902 = vadd.f32 %v1853, %v1901
        %1903 = vmatmul.bf16.gmra.mxu0 %v938
        %v1904 = vpop.f32.mrf.mxu0
        %v1905 = vadd.f32 %v1856, %v1904
        %v1906 = vpop.f32.mrf.mxu0
        %v1907 = vadd.f32 %v1858, %v1906
        %1908 = vmatmul.bf16.gmra.mxu0 %v942
        %v1909 = vpop.f32.mrf.mxu0
        %v1910 = vadd.f32 %v1861, %v1909
        %v1911 = vpop.f32.mrf.mxu0
        %v1912 = vadd.f32 %v1863, %v1911
        %1913 = vmatmul.bf16.gmra.mxu0 %v946
        %v1914 = vpop.f32.mrf.mxu0
        %v1915 = vadd.f32 %v1866, %v1914
        %v1916 = vpop.f32.mrf.mxu0
        %v1917 = vadd.f32 %v1868, %v1916
        %1918 = vmatmul.bf16.gmra.mxu0 %v950
        %v1919 = vpop.f32.mrf.mxu0
        %v1920 = vadd.f32 %v1871, %v1919
        %v1921 = vpop.f32.mrf.mxu0
        %v1922 = vadd.f32 %v1873, %v1921
        %1923 = vmatmul.bf16.gmra.mxu0 %v954
        %v1924 = vpop.f32.mrf.mxu0
        %v1925 = vadd.f32 %v1876, %v1924
        %v1926 = vpop.f32.mrf.mxu0
        %v1927 = vadd.f32 %v1878, %v1926
        %1928 = vmatmul.bf16.gmra.mxu0 %v958
        %v1929 = vpop.f32.mrf.mxu0
        %v1930 = vadd.f32 %v1881, %v1929
        %v1931 = vpop.f32.mrf.mxu0
        %v1932 = vadd.f32 %v1883, %v1931
        %1933 = vmatmul.bf16.gmra.mxu0 %v962
        %v1934 = vpop.f32.mrf.mxu0
        %v1935 = vadd.f32 %v1886, %v1934
        %v1936 = vpop.f32.mrf.mxu0
        %v1937 = vadd.f32 %v1888, %v1936
        %1938 = vdwg.mxu0
        %1939 = vmatpush.bf16.msra.mxu0 %v1516
        %1940 = vmatpush.bf16.msra.mxu0 %v1512
        %1941 = vmatpush.bf16.msra.mxu0 %v1508
        %1942 = vmatpush.bf16.msra.mxu0 %v1504
        %1943 = vmatpush.bf16.msra.mxu0 %v1500
        %1944 = vmatpush.bf16.msra.mxu0 %v1496
        %1945 = vmatpush.bf16.msra.mxu0 %v1492
        %1946 = vmatpush.bf16.msra.mxu0 %v1488
        %1947 = vmatmul.bf16.gmra.mxu0 %v931
        %v1948 = vpop.f32.mrf.mxu0
        %v1949 = vadd.f32 %v1096, %v1948
        %v1950 = vpop.f32.mrf.mxu0
        %v1951 = vadd.f32 %v1096, %v1950
        %1952 = vmatmul.bf16.gmra.mxu0 %v935
        %v1953 = vpop.f32.mrf.mxu0
        %v1954 = vadd.f32 %v1096, %v1953
        %v1955 = vpop.f32.mrf.mxu0
        %v1956 = vadd.f32 %v1096, %v1955
        %1957 = vmatmul.bf16.gmra.mxu0 %v939
        %v1958 = vpop.f32.mrf.mxu0
        %v1959 = vadd.f32 %v1096, %v1958
        %v1960 = vpop.f32.mrf.mxu0
        %v1961 = vadd.f32 %v1096, %v1960
        %1962 = vmatmul.bf16.gmra.mxu0 %v943
        %v1963 = vpop.f32.mrf.mxu0
        %v1964 = vadd.f32 %v1096, %v1963
        %v1965 = vpop.f32.mrf.mxu0
        %v1966 = vadd.f32 %v1096, %v1965
        %1967 = vmatmul.bf16.gmra.mxu0 %v947
        %v1968 = vpop.f32.mrf.mxu0
        %v1969 = vadd.f32 %v1096, %v1968
        %v1970 = vpop.f32.mrf.mxu0
        %v1971 = vadd.f32 %v1096, %v1970
        %1972 = vmatmul.bf16.gmra.mxu0 %v951
        %v1973 = vpop.f32.mrf.mxu0
        %v1974 = vadd.f32 %v1096, %v1973
        %v1975 = vpop.f32.mrf.mxu0
        %v1976 = vadd.f32 %v1096, %v1975
        %1977 = vmatmul.bf16.gmra.mxu0 %v955
        %v1978 = vpop.f32.mrf.mxu0
        %v1979 = vadd.f32 %v1096, %v1978
        %v1980 = vpop.f32.mrf.mxu0
        %v1981 = vadd.f32 %v1096, %v1980
        %1982 = vmatmul.bf16.gmra.mxu0 %v959
        %v1983 = vpop.f32.mrf.mxu0
        %v1984 = vadd.f32 %v1096, %v1983
        %v1985 = vpop.f32.mrf.mxu0
        %v1986 = vadd.f32 %v1096, %v1985
        %1987 = vdwg.mxu0
        %1988 = vmatpush.bf16.msra.mxu0 %v1548
        %1989 = vmatpush.bf16.msra.mxu0 %v1544
        %1990 = vmatpush.bf16.msra.mxu0 %v1540
        %1991 = vmatpush.bf16.msra.mxu0 %v1536
        %1992 = vmatpush.bf16.msra.mxu0 %v1532
        %1993 = vmatpush.bf16.msra.mxu0 %v1528
        %1994 = vmatpush.bf16.msra.mxu0 %v1524
        %1995 = vmatpush.bf16.msra.mxu0 %v1520
        %1996 = vmatmul.bf16.gmra.mxu0 %v932
        %v1997 = vpop.f32.mrf.mxu0
        %v1998 = vadd.f32 %v1949, %v1997
        %v1999 = vpop.f32.mrf.mxu0
        %v2000 = vadd.f32 %v1951, %v1999
        %2001 = vmatmul.bf16.gmra.mxu0 %v936
        %v2002 = vpop.f32.mrf.mxu0
        %v2003 = vadd.f32 %v1954, %v2002
        %v2004 = vpop.f32.mrf.mxu0
        %v2005 = vadd.f32 %v1956, %v2004
        %2006 = vmatmul.bf16.gmra.mxu0 %v940
        %v2007 = vpop.f32.mrf.mxu0
        %v2008 = vadd.f32 %v1959, %v2007
        %v2009 = vpop.f32.mrf.mxu0
        %v2010 = vadd.f32 %v1961, %v2009
        %2011 = vmatmul.bf16.gmra.mxu0 %v944
        %v2012 = vpop.f32.mrf.mxu0
        %v2013 = vadd.f32 %v1964, %v2012
        %v2014 = vpop.f32.mrf.mxu0
        %v2015 = vadd.f32 %v1966, %v2014
        %2016 = vmatmul.bf16.gmra.mxu0 %v948
        %v2017 = vpop.f32.mrf.mxu0
        %v2018 = vadd.f32 %v1969, %v2017
        %v2019 = vpop.f32.mrf.mxu0
        %v2020 = vadd.f32 %v1971, %v2019
        %2021 = vmatmul.bf16.gmra.mxu0 %v952
        %v2022 = vpop.f32.mrf.mxu0
        %v2023 = vadd.f32 %v1974, %v2022
        %v2024 = vpop.f32.mrf.mxu0
        %v2025 = vadd.f32 %v1976, %v2024
        %2026 = vmatmul.bf16.gmra.mxu0 %v956
        %v2027 = vpop.f32.mrf.mxu0
        %v2028 = vadd.f32 %v1979, %v2027
        %v2029 = vpop.f32.mrf.mxu0
        %v2030 = vadd.f32 %v1981, %v2029
        %2031 = vmatmul.bf16.gmra.mxu0 %v960
        %v2032 = vpop.f32.mrf.mxu0
        %v2033 = vadd.f32 %v1984, %v2032
        %v2034 = vpop.f32.mrf.mxu0
        %v2035 = vadd.f32 %v1986, %v2034
        %2036 = vdwg.mxu0
        %2037 = vmatpush.bf16.msra.mxu0 %v1580
        %2038 = vmatpush.bf16.msra.mxu0 %v1576
        %2039 = vmatpush.bf16.msra.mxu0 %v1572
        %2040 = vmatpush.bf16.msra.mxu0 %v1568
        %2041 = vmatpush.bf16.msra.mxu0 %v1564
        %2042 = vmatpush.bf16.msra.mxu0 %v1560
        %2043 = vmatpush.bf16.msra.mxu0 %v1556
        %2044 = vmatpush.bf16.msra.mxu0 %v1552
        %2045 = vmatmul.bf16.gmra.mxu0 %v933
        %v2046 = vpop.f32.mrf.mxu0
        %v2047 = vadd.f32 %v1998, %v2046
        %v2048 = vpop.f32.mrf.mxu0
        %v2049 = vadd.f32 %v2000, %v2048
        %2050 = vmatmul.bf16.gmra.mxu0 %v937
        %v2051 = vpop.f32.mrf.mxu0
        %v2052 = vadd.f32 %v2003, %v2051
        %v2053 = vpop.f32.mrf.mxu0
        %v2054 = vadd.f32 %v2005, %v2053
        %2055 = vmatmul.bf16.gmra.mxu0 %v941
        %v2056 = vpop.f32.mrf.mxu0
        %v2057 = vadd.f32 %v2008, %v2056
        %v2058 = vpop.f32.mrf.mxu0
        %v2059 = vadd.f32 %v2010, %v2058
        %2060 = vmatmul.bf16.gmra.mxu0 %v945
        %v2061 = vpop.f32.mrf.mxu0
        %v2062 = vadd.f32 %v2013, %v2061
        %v2063 = vpop.f32.mrf.mxu0
        %v2064 = vadd.f32 %v2015, %v2063
        %2065 = vmatmul.bf16.gmra.mxu0 %v949
        %v2066 = vpop.f32.mrf.mxu0
        %v2067 = vadd.f32 %v2018, %v2066
        %v2068 = vpop.f32.mrf.mxu0
        %v2069 = vadd.f32 %v2020, %v2068
        %2070 = vmatmul.bf16.gmra.mxu0 %v953
        %v2071 = vpop.f32.mrf.mxu0
        %v2072 = vadd.f32 %v2023, %v2071
        %v2073 = vpop.f32.mrf.mxu0
        %v2074 = vadd.f32 %v2025, %v2073
        %2075 = vmatmul.bf16.gmra.mxu0 %v957
        %v2076 = vpop.f32.mrf.mxu0
        %v2077 = vadd.f32 %v2028, %v2076
        %v2078 = vpop.f32.mrf.mxu0
        %v2079 = vadd.f32 %v2030, %v2078
        %2080 = vmatmul.bf16.gmra.mxu0 %v961
        %v2081 = vpop.f32.mrf.mxu0
        %v2082 = vadd.f32 %v2033, %v2081
        %v2083 = vpop.f32.mrf.mxu0
        %v2084 = vadd.f32 %v2035, %v2083
        %2085 = vdwg.mxu0
        %2086 = vmatpush.bf16.msra.mxu0 %v1612
        %2087 = vmatpush.bf16.msra.mxu0 %v1608
        %2088 = vmatpush.bf16.msra.mxu0 %v1604
        %2089 = vmatpush.bf16.msra.mxu0 %v1600
        %2090 = vmatpush.bf16.msra.mxu0 %v1596
        %2091 = vmatpush.bf16.msra.mxu0 %v1592
        %2092 = vmatpush.bf16.msra.mxu0 %v1588
        %2093 = vmatpush.bf16.msra.mxu0 %v1584
        %2094 = vmatmul.bf16.gmra.mxu0 %v934
        %v2095 = vpop.f32.mrf.mxu0
        %v2096 = vadd.f32 %v2047, %v2095
        %v2097 = vpop.f32.mrf.mxu0
        %v2098 = vadd.f32 %v2049, %v2097
        %2099 = vmatmul.bf16.gmra.mxu0 %v938
        %v2100 = vpop.f32.mrf.mxu0
        %v2101 = vadd.f32 %v2052, %v2100
        %v2102 = vpop.f32.mrf.mxu0
        %v2103 = vadd.f32 %v2054, %v2102
        %2104 = vmatmul.bf16.gmra.mxu0 %v942
        %v2105 = vpop.f32.mrf.mxu0
        %v2106 = vadd.f32 %v2057, %v2105
        %v2107 = vpop.f32.mrf.mxu0
        %v2108 = vadd.f32 %v2059, %v2107
        %2109 = vmatmul.bf16.gmra.mxu0 %v946
        %v2110 = vpop.f32.mrf.mxu0
        %v2111 = vadd.f32 %v2062, %v2110
        %v2112 = vpop.f32.mrf.mxu0
        %v2113 = vadd.f32 %v2064, %v2112
        %2114 = vmatmul.bf16.gmra.mxu0 %v950
        %v2115 = vpop.f32.mrf.mxu0
        %v2116 = vadd.f32 %v2067, %v2115
        %v2117 = vpop.f32.mrf.mxu0
        %v2118 = vadd.f32 %v2069, %v2117
        %2119 = vmatmul.bf16.gmra.mxu0 %v954
        %v2120 = vpop.f32.mrf.mxu0
        %v2121 = vadd.f32 %v2072, %v2120
        %v2122 = vpop.f32.mrf.mxu0
        %v2123 = vadd.f32 %v2074, %v2122
        %2124 = vmatmul.bf16.gmra.mxu0 %v958
        %v2125 = vpop.f32.mrf.mxu0
        %v2126 = vadd.f32 %v2077, %v2125
        %v2127 = vpop.f32.mrf.mxu0
        %v2128 = vadd.f32 %v2079, %v2127
        %2129 = vmatmul.bf16.gmra.mxu0 %v962
        %v2130 = vpop.f32.mrf.mxu0
        %v2131 = vadd.f32 %v2082, %v2130
        %v2132 = vpop.f32.mrf.mxu0
        %v2133 = vadd.f32 %v2084, %v2132
        %2134 = vdwg.mxu0
        %2135 = vmatpush.bf16.msra.mxu0 %v1517
        %2136 = vmatpush.bf16.msra.mxu0 %v1513
        %2137 = vmatpush.bf16.msra.mxu0 %v1509
        %2138 = vmatpush.bf16.msra.mxu0 %v1505
        %2139 = vmatpush.bf16.msra.mxu0 %v1501
        %2140 = vmatpush.bf16.msra.mxu0 %v1497
        %2141 = vmatpush.bf16.msra.mxu0 %v1493
        %2142 = vmatpush.bf16.msra.mxu0 %v1489
        %2143 = vmatmul.bf16.gmra.mxu0 %v931
        %v2144 = vpop.f32.mrf.mxu0
        %v2145 = vadd.f32 %v1097, %v2144
        %v2146 = vpop.f32.mrf.mxu0
        %v2147 = vadd.f32 %v1097, %v2146
        %2148 = vmatmul.bf16.gmra.mxu0 %v935
        %v2149 = vpop.f32.mrf.mxu0
        %v2150 = vadd.f32 %v1097, %v2149
        %v2151 = vpop.f32.mrf.mxu0
        %v2152 = vadd.f32 %v1097, %v2151
        %2153 = vmatmul.bf16.gmra.mxu0 %v939
        %v2154 = vpop.f32.mrf.mxu0
        %v2155 = vadd.f32 %v1097, %v2154
        %v2156 = vpop.f32.mrf.mxu0
        %v2157 = vadd.f32 %v1097, %v2156
        %2158 = vmatmul.bf16.gmra.mxu0 %v943
        %v2159 = vpop.f32.mrf.mxu0
        %v2160 = vadd.f32 %v1097, %v2159
        %v2161 = vpop.f32.mrf.mxu0
        %v2162 = vadd.f32 %v1097, %v2161
        %2163 = vmatmul.bf16.gmra.mxu0 %v947
        %v2164 = vpop.f32.mrf.mxu0
        %v2165 = vadd.f32 %v1097, %v2164
        %v2166 = vpop.f32.mrf.mxu0
        %v2167 = vadd.f32 %v1097, %v2166
        %2168 = vmatmul.bf16.gmra.mxu0 %v951
        %v2169 = vpop.f32.mrf.mxu0
        %v2170 = vadd.f32 %v1097, %v2169
        %v2171 = vpop.f32.mrf.mxu0
        %v2172 = vadd.f32 %v1097, %v2171
        %2173 = vmatmul.bf16.gmra.mxu0 %v955
        %v2174 = vpop.f32.mrf.mxu0
        %v2175 = vadd.f32 %v1097, %v2174
        %v2176 = vpop.f32.mrf.mxu0
        %v2177 = vadd.f32 %v1097, %v2176
        %2178 = vmatmul.bf16.gmra.mxu0 %v959
        %v2179 = vpop.f32.mrf.mxu0
        %v2180 = vadd.f32 %v1097, %v2179
        %v2181 = vpop.f32.mrf.mxu0
        %v2182 = vadd.f32 %v1097, %v2181
        %2183 = vdwg.mxu0
        %2184 = vmatpush.bf16.msra.mxu0 %v1549
        %2185 = vmatpush.bf16.msra.mxu0 %v1545
        %2186 = vmatpush.bf16.msra.mxu0 %v1541
        %2187 = vmatpush.bf16.msra.mxu0 %v1537
        %2188 = vmatpush.bf16.msra.mxu0 %v1533
        %2189 = vmatpush.bf16.msra.mxu0 %v1529
        %2190 = vmatpush.bf16.msra.mxu0 %v1525
        %2191 = vmatpush.bf16.msra.mxu0 %v1521
        %2192 = vmatmul.bf16.gmra.mxu0 %v932
        %v2193 = vpop.f32.mrf.mxu0
        %v2194 = vadd.f32 %v2145, %v2193
        %v2195 = vpop.f32.mrf.mxu0
        %v2196 = vadd.f32 %v2147, %v2195
        %2197 = vmatmul.bf16.gmra.mxu0 %v936
        %v2198 = vpop.f32.mrf.mxu0
        %v2199 = vadd.f32 %v2150, %v2198
        %v2200 = vpop.f32.mrf.mxu0
        %v2201 = vadd.f32 %v2152, %v2200
        %2202 = vmatmul.bf16.gmra.mxu0 %v940
        %v2203 = vpop.f32.mrf.mxu0
        %v2204 = vadd.f32 %v2155, %v2203
        %v2205 = vpop.f32.mrf.mxu0
        %v2206 = vadd.f32 %v2157, %v2205
        %2207 = vmatmul.bf16.gmra.mxu0 %v944
        %v2208 = vpop.f32.mrf.mxu0
        %v2209 = vadd.f32 %v2160, %v2208
        %v2210 = vpop.f32.mrf.mxu0
        %v2211 = vadd.f32 %v2162, %v2210
        %2212 = vmatmul.bf16.gmra.mxu0 %v948
        %v2213 = vpop.f32.mrf.mxu0
        %v2214 = vadd.f32 %v2165, %v2213
        %v2215 = vpop.f32.mrf.mxu0
        %v2216 = vadd.f32 %v2167, %v2215
        %2217 = vmatmul.bf16.gmra.mxu0 %v952
        %v2218 = vpop.f32.mrf.mxu0
        %v2219 = vadd.f32 %v2170, %v2218
        %v2220 = vpop.f32.mrf.mxu0
        %v2221 = vadd.f32 %v2172, %v2220
        %2222 = vmatmul.bf16.gmra.mxu0 %v956
        %v2223 = vpop.f32.mrf.mxu0
        %v2224 = vadd.f32 %v2175, %v2223
        %v2225 = vpop.f32.mrf.mxu0
        %v2226 = vadd.f32 %v2177, %v2225
        %2227 = vmatmul.bf16.gmra.mxu0 %v960
        %v2228 = vpop.f32.mrf.mxu0
        %v2229 = vadd.f32 %v2180, %v2228
        %v2230 = vpop.f32.mrf.mxu0
        %v2231 = vadd.f32 %v2182, %v2230
        %2232 = vdwg.mxu0
        %2233 = vmatpush.bf16.msra.mxu0 %v1581
        %2234 = vmatpush.bf16.msra.mxu0 %v1577
        %2235 = vmatpush.bf16.msra.mxu0 %v1573
        %2236 = vmatpush.bf16.msra.mxu0 %v1569
        %2237 = vmatpush.bf16.msra.mxu0 %v1565
        %2238 = vmatpush.bf16.msra.mxu0 %v1561
        %2239 = vmatpush.bf16.msra.mxu0 %v1557
        %2240 = vmatpush.bf16.msra.mxu0 %v1553
        %2241 = vmatmul.bf16.gmra.mxu0 %v933
        %v2242 = vpop.f32.mrf.mxu0
        %v2243 = vadd.f32 %v2194, %v2242
        %v2244 = vpop.f32.mrf.mxu0
        %v2245 = vadd.f32 %v2196, %v2244
        %2246 = vmatmul.bf16.gmra.mxu0 %v937
        %v2247 = vpop.f32.mrf.mxu0
        %v2248 = vadd.f32 %v2199, %v2247
        %v2249 = vpop.f32.mrf.mxu0
        %v2250 = vadd.f32 %v2201, %v2249
        %2251 = vmatmul.bf16.gmra.mxu0 %v941
        %v2252 = vpop.f32.mrf.mxu0
        %v2253 = vadd.f32 %v2204, %v2252
        %v2254 = vpop.f32.mrf.mxu0
        %v2255 = vadd.f32 %v2206, %v2254
        %2256 = vmatmul.bf16.gmra.mxu0 %v945
        %v2257 = vpop.f32.mrf.mxu0
        %v2258 = vadd.f32 %v2209, %v2257
        %v2259 = vpop.f32.mrf.mxu0
        %v2260 = vadd.f32 %v2211, %v2259
        %2261 = vmatmul.bf16.gmra.mxu0 %v949
        %v2262 = vpop.f32.mrf.mxu0
        %v2263 = vadd.f32 %v2214, %v2262
        %v2264 = vpop.f32.mrf.mxu0
        %v2265 = vadd.f32 %v2216, %v2264
        %2266 = vmatmul.bf16.gmra.mxu0 %v953
        %v2267 = vpop.f32.mrf.mxu0
        %v2268 = vadd.f32 %v2219, %v2267
        %v2269 = vpop.f32.mrf.mxu0
        %v2270 = vadd.f32 %v2221, %v2269
        %2271 = vmatmul.bf16.gmra.mxu0 %v957
        %v2272 = vpop.f32.mrf.mxu0
        %v2273 = vadd.f32 %v2224, %v2272
        %v2274 = vpop.f32.mrf.mxu0
        %v2275 = vadd.f32 %v2226, %v2274
        %2276 = vmatmul.bf16.gmra.mxu0 %v961
        %v2277 = vpop.f32.mrf.mxu0
        %v2278 = vadd.f32 %v2229, %v2277
        %v2279 = vpop.f32.mrf.mxu0
        %v2280 = vadd.f32 %v2231, %v2279
        %2281 = vdwg.mxu0
        %2282 = vmatpush.bf16.msra.mxu0 %v1613
        %2283 = vmatpush.bf16.msra.mxu0 %v1609
        %2284 = vmatpush.bf16.msra.mxu0 %v1605
        %2285 = vmatpush.bf16.msra.mxu0 %v1601
        %2286 = vmatpush.bf16.msra.mxu0 %v1597
        %2287 = vmatpush.bf16.msra.mxu0 %v1593
        %2288 = vmatpush.bf16.msra.mxu0 %v1589
        %2289 = vmatpush.bf16.msra.mxu0 %v1585
        %2290 = vmatmul.bf16.gmra.mxu0 %v934
        %v2291 = vpop.f32.mrf.mxu0
        %v2292 = vadd.f32 %v2243, %v2291
        %v2293 = vpop.f32.mrf.mxu0
        %v2294 = vadd.f32 %v2245, %v2293
        %2295 = vmatmul.bf16.gmra.mxu0 %v938
        %v2296 = vpop.f32.mrf.mxu0
        %v2297 = vadd.f32 %v2248, %v2296
        %v2298 = vpop.f32.mrf.mxu0
        %v2299 = vadd.f32 %v2250, %v2298
        %2300 = vmatmul.bf16.gmra.mxu0 %v942
        %v2301 = vpop.f32.mrf.mxu0
        %v2302 = vadd.f32 %v2253, %v2301
        %v2303 = vpop.f32.mrf.mxu0
        %v2304 = vadd.f32 %v2255, %v2303
        %2305 = vmatmul.bf16.gmra.mxu0 %v946
        %v2306 = vpop.f32.mrf.mxu0
        %v2307 = vadd.f32 %v2258, %v2306
        %v2308 = vpop.f32.mrf.mxu0
        %v2309 = vadd.f32 %v2260, %v2308
        %2310 = vmatmul.bf16.gmra.mxu0 %v950
        %v2311 = vpop.f32.mrf.mxu0
        %v2312 = vadd.f32 %v2263, %v2311
        %v2313 = vpop.f32.mrf.mxu0
        %v2314 = vadd.f32 %v2265, %v2313
        %2315 = vmatmul.bf16.gmra.mxu0 %v954
        %v2316 = vpop.f32.mrf.mxu0
        %v2317 = vadd.f32 %v2268, %v2316
        %v2318 = vpop.f32.mrf.mxu0
        %v2319 = vadd.f32 %v2270, %v2318
        %2320 = vmatmul.bf16.gmra.mxu0 %v958
        %v2321 = vpop.f32.mrf.mxu0
        %v2322 = vadd.f32 %v2273, %v2321
        %v2323 = vpop.f32.mrf.mxu0
        %v2324 = vadd.f32 %v2275, %v2323
        %2325 = vmatmul.bf16.gmra.mxu0 %v962
        %v2326 = vpop.f32.mrf.mxu0
        %v2327 = vadd.f32 %v2278, %v2326
        %v2328 = vpop.f32.mrf.mxu0
        %v2329 = vadd.f32 %v2280, %v2328
        %2330 = vdwg.mxu0
        %2331 = vmatpush.bf16.msra.mxu0 %v1518
        %2332 = vmatpush.bf16.msra.mxu0 %v1514
        %2333 = vmatpush.bf16.msra.mxu0 %v1510
        %2334 = vmatpush.bf16.msra.mxu0 %v1506
        %2335 = vmatpush.bf16.msra.mxu0 %v1502
        %2336 = vmatpush.bf16.msra.mxu0 %v1498
        %2337 = vmatpush.bf16.msra.mxu0 %v1494
        %2338 = vmatpush.bf16.msra.mxu0 %v1490
        %2339 = vmatmul.bf16.gmra.mxu0 %v931
        %v2340 = vpop.f32.mrf.mxu0
        %v2341 = vadd.f32 %v1098, %v2340
        %v2342 = vpop.f32.mrf.mxu0
        %v2343 = vadd.f32 %v1098, %v2342
        %2344 = vmatmul.bf16.gmra.mxu0 %v935
        %v2345 = vpop.f32.mrf.mxu0
        %v2346 = vadd.f32 %v1098, %v2345
        %v2347 = vpop.f32.mrf.mxu0
        %v2348 = vadd.f32 %v1098, %v2347
        %2349 = vmatmul.bf16.gmra.mxu0 %v939
        %v2350 = vpop.f32.mrf.mxu0
        %v2351 = vadd.f32 %v1098, %v2350
        %v2352 = vpop.f32.mrf.mxu0
        %v2353 = vadd.f32 %v1098, %v2352
        %2354 = vmatmul.bf16.gmra.mxu0 %v943
        %v2355 = vpop.f32.mrf.mxu0
        %v2356 = vadd.f32 %v1098, %v2355
        %v2357 = vpop.f32.mrf.mxu0
        %v2358 = vadd.f32 %v1098, %v2357
        %2359 = vmatmul.bf16.gmra.mxu0 %v947
        %v2360 = vpop.f32.mrf.mxu0
        %v2361 = vadd.f32 %v1098, %v2360
        %v2362 = vpop.f32.mrf.mxu0
        %v2363 = vadd.f32 %v1098, %v2362
        %2364 = vmatmul.bf16.gmra.mxu0 %v951
        %v2365 = vpop.f32.mrf.mxu0
        %v2366 = vadd.f32 %v1098, %v2365
        %v2367 = vpop.f32.mrf.mxu0
        %v2368 = vadd.f32 %v1098, %v2367
        %2369 = vmatmul.bf16.gmra.mxu0 %v955
        %v2370 = vpop.f32.mrf.mxu0
        %v2371 = vadd.f32 %v1098, %v2370
        %v2372 = vpop.f32.mrf.mxu0
        %v2373 = vadd.f32 %v1098, %v2372
        %2374 = vmatmul.bf16.gmra.mxu0 %v959
        %v2375 = vpop.f32.mrf.mxu0
        %v2376 = vadd.f32 %v1098, %v2375
        %v2377 = vpop.f32.mrf.mxu0
        %v2378 = vadd.f32 %v1098, %v2377
        %2379 = vdwg.mxu0
        %2380 = vmatpush.bf16.msra.mxu0 %v1550
        %2381 = vmatpush.bf16.msra.mxu0 %v1546
        %2382 = vmatpush.bf16.msra.mxu0 %v1542
        %2383 = vmatpush.bf16.msra.mxu0 %v1538
        %2384 = vmatpush.bf16.msra.mxu0 %v1534
        %2385 = vmatpush.bf16.msra.mxu0 %v1530
        %2386 = vmatpush.bf16.msra.mxu0 %v1526
        %2387 = vmatpush.bf16.msra.mxu0 %v1522
        %2388 = vmatmul.bf16.gmra.mxu0 %v932
        %v2389 = vpop.f32.mrf.mxu0
        %v2390 = vadd.f32 %v2341, %v2389
        %v2391 = vpop.f32.mrf.mxu0
        %v2392 = vadd.f32 %v2343, %v2391
        %2393 = vmatmul.bf16.gmra.mxu0 %v936
        %v2394 = vpop.f32.mrf.mxu0
        %v2395 = vadd.f32 %v2346, %v2394
        %v2396 = vpop.f32.mrf.mxu0
        %v2397 = vadd.f32 %v2348, %v2396
        %2398 = vmatmul.bf16.gmra.mxu0 %v940
        %v2399 = vpop.f32.mrf.mxu0
        %v2400 = vadd.f32 %v2351, %v2399
        %v2401 = vpop.f32.mrf.mxu0
        %v2402 = vadd.f32 %v2353, %v2401
        %2403 = vmatmul.bf16.gmra.mxu0 %v944
        %v2404 = vpop.f32.mrf.mxu0
        %v2405 = vadd.f32 %v2356, %v2404
        %v2406 = vpop.f32.mrf.mxu0
        %v2407 = vadd.f32 %v2358, %v2406
        %2408 = vmatmul.bf16.gmra.mxu0 %v948
        %v2409 = vpop.f32.mrf.mxu0
        %v2410 = vadd.f32 %v2361, %v2409
        %v2411 = vpop.f32.mrf.mxu0
        %v2412 = vadd.f32 %v2363, %v2411
        %2413 = vmatmul.bf16.gmra.mxu0 %v952
        %v2414 = vpop.f32.mrf.mxu0
        %v2415 = vadd.f32 %v2366, %v2414
        %v2416 = vpop.f32.mrf.mxu0
        %v2417 = vadd.f32 %v2368, %v2416
        %2418 = vmatmul.bf16.gmra.mxu0 %v956
        %v2419 = vpop.f32.mrf.mxu0
        %v2420 = vadd.f32 %v2371, %v2419
        %v2421 = vpop.f32.mrf.mxu0
        %v2422 = vadd.f32 %v2373, %v2421
        %2423 = vmatmul.bf16.gmra.mxu0 %v960
        %v2424 = vpop.f32.mrf.mxu0
        %v2425 = vadd.f32 %v2376, %v2424
        %v2426 = vpop.f32.mrf.mxu0
        %v2427 = vadd.f32 %v2378, %v2426
        %2428 = vdwg.mxu0
        %2429 = vmatpush.bf16.msra.mxu0 %v1582
        %2430 = vmatpush.bf16.msra.mxu0 %v1578
        %2431 = vmatpush.bf16.msra.mxu0 %v1574
        %2432 = vmatpush.bf16.msra.mxu0 %v1570
        %2433 = vmatpush.bf16.msra.mxu0 %v1566
        %2434 = vmatpush.bf16.msra.mxu0 %v1562
        %2435 = vmatpush.bf16.msra.mxu0 %v1558
        %2436 = vmatpush.bf16.msra.mxu0 %v1554
        %2437 = vmatmul.bf16.gmra.mxu0 %v933
        %v2438 = vpop.f32.mrf.mxu0
        %v2439 = vadd.f32 %v2390, %v2438
        %v2440 = vpop.f32.mrf.mxu0
        %v2441 = vadd.f32 %v2392, %v2440
        %2442 = vmatmul.bf16.gmra.mxu0 %v937
        %v2443 = vpop.f32.mrf.mxu0
        %v2444 = vadd.f32 %v2395, %v2443
        %v2445 = vpop.f32.mrf.mxu0
        %v2446 = vadd.f32 %v2397, %v2445
        %2447 = vmatmul.bf16.gmra.mxu0 %v941
        %v2448 = vpop.f32.mrf.mxu0
        %v2449 = vadd.f32 %v2400, %v2448
        %v2450 = vpop.f32.mrf.mxu0
        %v2451 = vadd.f32 %v2402, %v2450
        %2452 = vmatmul.bf16.gmra.mxu0 %v945
        %v2453 = vpop.f32.mrf.mxu0
        %v2454 = vadd.f32 %v2405, %v2453
        %v2455 = vpop.f32.mrf.mxu0
        %v2456 = vadd.f32 %v2407, %v2455
        %2457 = vmatmul.bf16.gmra.mxu0 %v949
        %v2458 = vpop.f32.mrf.mxu0
        %v2459 = vadd.f32 %v2410, %v2458
        %v2460 = vpop.f32.mrf.mxu0
        %v2461 = vadd.f32 %v2412, %v2460
        %2462 = vmatmul.bf16.gmra.mxu0 %v953
        %v2463 = vpop.f32.mrf.mxu0
        %v2464 = vadd.f32 %v2415, %v2463
        %v2465 = vpop.f32.mrf.mxu0
        %v2466 = vadd.f32 %v2417, %v2465
        %2467 = vmatmul.bf16.gmra.mxu0 %v957
        %v2468 = vpop.f32.mrf.mxu0
        %v2469 = vadd.f32 %v2420, %v2468
        %v2470 = vpop.f32.mrf.mxu0
        %v2471 = vadd.f32 %v2422, %v2470
        %2472 = vmatmul.bf16.gmra.mxu0 %v961
        %v2473 = vpop.f32.mrf.mxu0
        %v2474 = vadd.f32 %v2425, %v2473
        %v2475 = vpop.f32.mrf.mxu0
        %v2476 = vadd.f32 %v2427, %v2475
        %2477 = vdwg.mxu0
        %2478 = vmatpush.bf16.msra.mxu0 %v1614
        %2479 = vmatpush.bf16.msra.mxu0 %v1610
        %2480 = vmatpush.bf16.msra.mxu0 %v1606
        %2481 = vmatpush.bf16.msra.mxu0 %v1602
        %2482 = vmatpush.bf16.msra.mxu0 %v1598
        %2483 = vmatpush.bf16.msra.mxu0 %v1594
        %2484 = vmatpush.bf16.msra.mxu0 %v1590
        %2485 = vmatpush.bf16.msra.mxu0 %v1586
        %2486 = vmatmul.bf16.gmra.mxu0 %v934
        %v2487 = vpop.f32.mrf.mxu0
        %v2488 = vadd.f32 %v2439, %v2487
        %v2489 = vpop.f32.mrf.mxu0
        %v2490 = vadd.f32 %v2441, %v2489
        %2491 = vmatmul.bf16.gmra.mxu0 %v938
        %v2492 = vpop.f32.mrf.mxu0
        %v2493 = vadd.f32 %v2444, %v2492
        %v2494 = vpop.f32.mrf.mxu0
        %v2495 = vadd.f32 %v2446, %v2494
        %2496 = vmatmul.bf16.gmra.mxu0 %v942
        %v2497 = vpop.f32.mrf.mxu0
        %v2498 = vadd.f32 %v2449, %v2497
        %v2499 = vpop.f32.mrf.mxu0
        %v2500 = vadd.f32 %v2451, %v2499
        %2501 = vmatmul.bf16.gmra.mxu0 %v946
        %v2502 = vpop.f32.mrf.mxu0
        %v2503 = vadd.f32 %v2454, %v2502
        %v2504 = vpop.f32.mrf.mxu0
        %v2505 = vadd.f32 %v2456, %v2504
        %2506 = vmatmul.bf16.gmra.mxu0 %v950
        %v2507 = vpop.f32.mrf.mxu0
        %v2508 = vadd.f32 %v2459, %v2507
        %v2509 = vpop.f32.mrf.mxu0
        %v2510 = vadd.f32 %v2461, %v2509
        %2511 = vmatmul.bf16.gmra.mxu0 %v954
        %v2512 = vpop.f32.mrf.mxu0
        %v2513 = vadd.f32 %v2464, %v2512
        %v2514 = vpop.f32.mrf.mxu0
        %v2515 = vadd.f32 %v2466, %v2514
        %2516 = vmatmul.bf16.gmra.mxu0 %v958
        %v2517 = vpop.f32.mrf.mxu0
        %v2518 = vadd.f32 %v2469, %v2517
        %v2519 = vpop.f32.mrf.mxu0
        %v2520 = vadd.f32 %v2471, %v2519
        %2521 = vmatmul.bf16.gmra.mxu0 %v962
        %v2522 = vpop.f32.mrf.mxu0
        %v2523 = vadd.f32 %v2474, %v2522
        %v2524 = vpop.f32.mrf.mxu0
        %v2525 = vadd.f32 %v2476, %v2524
        %2526 = vdwg.mxu0
        %v2527 = vld [vmem:[%s6] sm:$0xf]
        %v2529 = vperm.slane %v2527, 0
        %v2530 = vperm.slane %v2527, 1
        %v2531 = vperm.slane %v2527, 2
        %v2532 = vperm.slane %v2527, 3
        %v2537 = vadd.f32 %v1900, %v2529
        %v2538 = vadd.f32 %v2096, %v2530
        %v2539 = vadd.f32 %v2292, %v2531
        %v2540 = vadd.f32 %v2488, %v2532
        %v2541 = vadd.f32 %v1902, %v2529
        %v2542 = vadd.f32 %v2098, %v2530
        %v2543 = vadd.f32 %v2294, %v2531
        %v2544 = vadd.f32 %v2490, %v2532
        %v2545 = vadd.f32 %v1905, %v2529
        %v2546 = vadd.f32 %v2101, %v2530
        %v2547 = vadd.f32 %v2297, %v2531
        %v2548 = vadd.f32 %v2493, %v2532
        %v2549 = vadd.f32 %v1907, %v2529
        %v2550 = vadd.f32 %v2103, %v2530
        %v2551 = vadd.f32 %v2299, %v2531
        %v2552 = vadd.f32 %v2495, %v2532
        %v2553 = vadd.f32 %v1910, %v2529
        %v2554 = vadd.f32 %v2106, %v2530
        %v2555 = vadd.f32 %v2302, %v2531
        %v2556 = vadd.f32 %v2498, %v2532
        %v2557 = vadd.f32 %v1912, %v2529
        %v2558 = vadd.f32 %v2108, %v2530
        %v2559 = vadd.f32 %v2304, %v2531
        %v2560 = vadd.f32 %v2500, %v2532
        %v2561 = vadd.f32 %v1915, %v2529
        %v2562 = vadd.f32 %v2111, %v2530
        %v2563 = vadd.f32 %v2307, %v2531
        %v2564 = vadd.f32 %v2503, %v2532
        %v2565 = vadd.f32 %v1917, %v2529
        %v2566 = vadd.f32 %v2113, %v2530
        %v2567 = vadd.f32 %v2309, %v2531
        %v2568 = vadd.f32 %v2505, %v2532
        %v2569 = vadd.f32 %v1920, %v2529
        %v2570 = vadd.f32 %v2116, %v2530
        %v2571 = vadd.f32 %v2312, %v2531
        %v2572 = vadd.f32 %v2508, %v2532
        %v2573 = vadd.f32 %v1922, %v2529
        %v2574 = vadd.f32 %v2118, %v2530
        %v2575 = vadd.f32 %v2314, %v2531
        %v2576 = vadd.f32 %v2510, %v2532
        %v2577 = vadd.f32 %v1925, %v2529
        %v2578 = vadd.f32 %v2121, %v2530
        %v2579 = vadd.f32 %v2317, %v2531
        %v2580 = vadd.f32 %v2513, %v2532
        %v2581 = vadd.f32 %v1927, %v2529
        %v2582 = vadd.f32 %v2123, %v2530
        %v2583 = vadd.f32 %v2319, %v2531
        %v2584 = vadd.f32 %v2515, %v2532
        %v2585 = vadd.f32 %v1930, %v2529
        %v2586 = vadd.f32 %v2126, %v2530
        %v2587 = vadd.f32 %v2322, %v2531
        %v2588 = vadd.f32 %v2518, %v2532
        %v2589 = vadd.f32 %v1932, %v2529
        %v2590 = vadd.f32 %v2128, %v2530
        %v2591 = vadd.f32 %v2324, %v2531
        %v2592 = vadd.f32 %v2520, %v2532
        %v2593 = vadd.f32 %v1935, %v2529
        %v2594 = vadd.f32 %v2131, %v2530
        %v2595 = vadd.f32 %v2327, %v2531
        %v2596 = vadd.f32 %v2523, %v2532
        %v2597 = vadd.f32 %v1937, %v2529
        %v2598 = vadd.f32 %v2133, %v2530
        %v2599 = vadd.f32 %v2329, %v2531
        %v2600 = vadd.f32 %v2525, %v2532
        %vm2601 = vcmp.ge.f32.partialorder %v2537, 0.0
        %vm2602 = vcmp.ge.f32.partialorder %v2538, 0.0
        %vm2603 = vcmp.ge.f32.partialorder %v2539, 0.0
        %vm2604 = vcmp.ge.f32.partialorder %v2540, 0.0
        %vm2605 = vcmp.ge.f32.partialorder %v2541, 0.0
        %vm2606 = vcmp.ge.f32.partialorder %v2542, 0.0
        %vm2607 = vcmp.ge.f32.partialorder %v2543, 0.0
        %vm2608 = vcmp.ge.f32.partialorder %v2544, 0.0
        %vm2609 = vcmp.ge.f32.partialorder %v2545, 0.0
        %vm2610 = vcmp.ge.f32.partialorder %v2546, 0.0
        %vm2611 = vcmp.ge.f32.partialorder %v2547, 0.0
        %vm2612 = vcmp.ge.f32.partialorder %v2548, 0.0
        %vm2613 = vcmp.ge.f32.partialorder %v2549, 0.0
        %vm2614 = vcmp.ge.f32.partialorder %v2550, 0.0
        %vm2615 = vcmp.ge.f32.partialorder %v2551, 0.0
        %vm2616 = vcmp.ge.f32.partialorder %v2552, 0.0
        %vm2617 = vcmp.ge.f32.partialorder %v2553, 0.0
        %vm2618 = vcmp.ge.f32.partialorder %v2554, 0.0
        %vm2619 = vcmp.ge.f32.partialorder %v2555, 0.0
        %vm2620 = vcmp.ge.f32.partialorder %v2556, 0.0
        %vm2621 = vcmp.ge.f32.partialorder %v2557, 0.0
        %vm2622 = vcmp.ge.f32.partialorder %v2558, 0.0
        %vm2623 = vcmp.ge.f32.partialorder %v2559, 0.0
        %vm2624 = vcmp.ge.f32.partialorder %v2560, 0.0
        %vm2625 = vcmp.ge.f32.partialorder %v2561, 0.0
        %vm2626 = vcmp.ge.f32.partialorder %v2562, 0.0
        %vm2627 = vcmp.ge.f32.partialorder %v2563, 0.0
        %vm2628 = vcmp.ge.f32.partialorder %v2564, 0.0
        %vm2629 = vcmp.ge.f32.partialorder %v2565, 0.0
        %vm2630 = vcmp.ge.f32.partialorder %v2566, 0.0
        %vm2631 = vcmp.ge.f32.partialorder %v2567, 0.0
        %vm2632 = vcmp.ge.f32.partialorder %v2568, 0.0
        %vm2633 = vcmp.ge.f32.partialorder %v2569, 0.0
        %vm2634 = vcmp.ge.f32.partialorder %v2570, 0.0
        %vm2635 = vcmp.ge.f32.partialorder %v2571, 0.0
        %vm2636 = vcmp.ge.f32.partialorder %v2572, 0.0
        %vm2637 = vcmp.ge.f32.partialorder %v2573, 0.0
        %vm2638 = vcmp.ge.f32.partialorder %v2574, 0.0
        %vm2639 = vcmp.ge.f32.partialorder %v2575, 0.0
        %vm2640 = vcmp.ge.f32.partialorder %v2576, 0.0
        %vm2641 = vcmp.ge.f32.partialorder %v2577, 0.0
        %vm2642 = vcmp.ge.f32.partialorder %v2578, 0.0
        %vm2643 = vcmp.ge.f32.partialorder %v2579, 0.0
        %vm2644 = vcmp.ge.f32.partialorder %v2580, 0.0
        %vm2645 = vcmp.ge.f32.partialorder %v2581, 0.0
        %vm2646 = vcmp.ge.f32.partialorder %v2582, 0.0
        %vm2647 = vcmp.ge.f32.partialorder %v2583, 0.0
        %vm2648 = vcmp.ge.f32.partialorder %v2584, 0.0
        %vm2649 = vcmp.ge.f32.partialorder %v2585, 0.0
        %vm2650 = vcmp.ge.f32.partialorder %v2586, 0.0
        %vm2651 = vcmp.ge.f32.partialorder %v2587, 0.0
        %vm2652 = vcmp.ge.f32.partialorder %v2588, 0.0
        %vm2653 = vcmp.ge.f32.partialorder %v2589, 0.0
        %vm2654 = vcmp.ge.f32.partialorder %v2590, 0.0
        %vm2655 = vcmp.ge.f32.partialorder %v2591, 0.0
        %vm2656 = vcmp.ge.f32.partialorder %v2592, 0.0
        %vm2657 = vcmp.ge.f32.partialorder %v2593, 0.0
        %vm2658 = vcmp.ge.f32.partialorder %v2594, 0.0
        %vm2659 = vcmp.ge.f32.partialorder %v2595, 0.0
        %vm2660 = vcmp.ge.f32.partialorder %v2596, 0.0
        %vm2661 = vcmp.ge.f32.partialorder %v2597, 0.0
        %vm2662 = vcmp.ge.f32.partialorder %v2598, 0.0
        %vm2663 = vcmp.ge.f32.partialorder %v2599, 0.0
        %vm2664 = vcmp.ge.f32.partialorder %v2600, 0.0
        %v2665 = vmul.f32 %v2537, 0.2
        %v2666 = vmul.f32 %v2538, 0.2
        %v2667 = vmul.f32 %v2539, 0.2
        %v2668 = vmul.f32 %v2540, 0.2
        %v2669 = vmul.f32 %v2541, 0.2
        %v2670 = vmul.f32 %v2542, 0.2
        %v2671 = vmul.f32 %v2543, 0.2
        %v2672 = vmul.f32 %v2544, 0.2
        %v2673 = vmul.f32 %v2545, 0.2
        %v2674 = vmul.f32 %v2546, 0.2
        %v2675 = vmul.f32 %v2547, 0.2
        %v2676 = vmul.f32 %v2548, 0.2
        %v2677 = vmul.f32 %v2549, 0.2
        %v2678 = vmul.f32 %v2550, 0.2
        %v2679 = vmul.f32 %v2551, 0.2
        %v2680 = vmul.f32 %v2552, 0.2
        %v2681 = vmul.f32 %v2553, 0.2
        %v2682 = vmul.f32 %v2554, 0.2
        %v2683 = vmul.f32 %v2555, 0.2
        %v2684 = vmul.f32 %v2556, 0.2
        %v2685 = vmul.f32 %v2557, 0.2
        %v2686 = vmul.f32 %v2558, 0.2
        %v2687 = vmul.f32 %v2559, 0.2
        %v2688 = vmul.f32 %v2560, 0.2
        %v2689 = vmul.f32 %v2561, 0.2
        %v2690 = vmul.f32 %v2562, 0.2
        %v2691 = vmul.f32 %v2563, 0.2
        %v2692 = vmul.f32 %v2564, 0.2
        %v2693 = vmul.f32 %v2565, 0.2
        %v2694 = vmul.f32 %v2566, 0.2
        %v2695 = vmul.f32 %v2567, 0.2
        %v2696 = vmul.f32 %v2568, 0.2
        %v2697 = vmul.f32 %v2569, 0.2
        %v2698 = vmul.f32 %v2570, 0.2
        %v2699 = vmul.f32 %v2571, 0.2
        %v2700 = vmul.f32 %v2572, 0.2
        %v2701 = vmul.f32 %v2573, 0.2
        %v2702 = vmul.f32 %v2574, 0.2
        %v2703 = vmul.f32 %v2575, 0.2
        %v2704 = vmul.f32 %v2576, 0.2
        %v2705 = vmul.f32 %v2577, 0.2
        %v2706 = vmul.f32 %v2578, 0.2
        %v2707 = vmul.f32 %v2579, 0.2
        %v2708 = vmul.f32 %v2580, 0.2
        %v2709 = vmul.f32 %v2581, 0.2
        %v2710 = vmul.f32 %v2582, 0.2
        %v2711 = vmul.f32 %v2583, 0.2
        %v2712 = vmul.f32 %v2584, 0.2
        %v2713 = vmul.f32 %v2585, 0.2
        %v2714 = vmul.f32 %v2586, 0.2
        %v2715 = vmul.f32 %v2587, 0.2
        %v2716 = vmul.f32 %v2588, 0.2
        %v2717 = vmul.f32 %v2589, 0.2
        %v2718 = vmul.f32 %v2590, 0.2
        %v2719 = vmul.f32 %v2591, 0.2
        %v2720 = vmul.f32 %v2592, 0.2
        %v2721 = vmul.f32 %v2593, 0.2
        %v2722 = vmul.f32 %v2594, 0.2
        %v2723 = vmul.f32 %v2595, 0.2
        %v2724 = vmul.f32 %v2596, 0.2
        %v2725 = vmul.f32 %v2597, 0.2
        %v2726 = vmul.f32 %v2598, 0.2
        %v2727 = vmul.f32 %v2599, 0.2
        %v2728 = vmul.f32 %v2600, 0.2
        %v2729 = vsel %vm2601, %v2537, %v2665
        %v2730 = vsel %vm2602, %v2538, %v2666
        %v2731 = vsel %vm2603, %v2539, %v2667
        %v2732 = vsel %vm2604, %v2540, %v2668
        %v2733 = vsel %vm2605, %v2541, %v2669
        %v2734 = vsel %vm2606, %v2542, %v2670
        %v2735 = vsel %vm2607, %v2543, %v2671
        %v2736 = vsel %vm2608, %v2544, %v2672
        %v2737 = vsel %vm2609, %v2545, %v2673
        %v2738 = vsel %vm2610, %v2546, %v2674
        %v2739 = vsel %vm2611, %v2547, %v2675
        %v2740 = vsel %vm2612, %v2548, %v2676
        %v2741 = vsel %vm2613, %v2549, %v2677
        %v2742 = vsel %vm2614, %v2550, %v2678
        %v2743 = vsel %vm2615, %v2551, %v2679
        %v2744 = vsel %vm2616, %v2552, %v2680
        %v2745 = vsel %vm2617, %v2553, %v2681
        %v2746 = vsel %vm2618, %v2554, %v2682
        %v2747 = vsel %vm2619, %v2555, %v2683
        %v2748 = vsel %vm2620, %v2556, %v2684
        %v2749 = vsel %vm2621, %v2557, %v2685
        %v2750 = vsel %vm2622, %v2558, %v2686
        %v2751 = vsel %vm2623, %v2559, %v2687
        %v2752 = vsel %vm2624, %v2560, %v2688
        %v2753 = vsel %vm2625, %v2561, %v2689
        %v2754 = vsel %vm2626, %v2562, %v2690
        %v2755 = vsel %vm2627, %v2563, %v2691
        %v2756 = vsel %vm2628, %v2564, %v2692
        %v2757 = vsel %vm2629, %v2565, %v2693
        %v2758 = vsel %vm2630, %v2566, %v2694
        %v2759 = vsel %vm2631, %v2567, %v2695
        %v2760 = vsel %vm2632, %v2568, %v2696
        %v2761 = vsel %vm2633, %v2569, %v2697
        %v2762 = vsel %vm2634, %v2570, %v2698
        %v2763 = vsel %vm2635, %v2571, %v2699
        %v2764 = vsel %vm2636, %v2572, %v2700
        %v2765 = vsel %vm2637, %v2573, %v2701
        %v2766 = vsel %vm2638, %v2574, %v2702
        %v2767 = vsel %vm2639, %v2575, %v2703
        %v2768 = vsel %vm2640, %v2576, %v2704
        %v2769 = vsel %vm2641, %v2577, %v2705
        %v2770 = vsel %vm2642, %v2578, %v2706
        %v2771 = vsel %vm2643, %v2579, %v2707
        %v2772 = vsel %vm2644, %v2580, %v2708
        %v2773 = vsel %vm2645, %v2581, %v2709
        %v2774 = vsel %vm2646, %v2582, %v2710
        %v2775 = vsel %vm2647, %v2583, %v2711
        %v2776 = vsel %vm2648, %v2584, %v2712
        %v2777 = vsel %vm2649, %v2585, %v2713
        %v2778 = vsel %vm2650, %v2586, %v2714
        %v2779 = vsel %vm2651, %v2587, %v2715
        %v2780 = vsel %vm2652, %v2588, %v2716
        %v2781 = vsel %vm2653, %v2589, %v2717
        %v2782 = vsel %vm2654, %v2590, %v2718
        %v2783 = vsel %vm2655, %v2591, %v2719
        %v2784 = vsel %vm2656, %v2592, %v2720
        %v2785 = vsel %vm2657, %v2593, %v2721
        %v2786 = vsel %vm2658, %v2594, %v2722
        %v2787 = vsel %vm2659, %v2595, %v2723
        %v2788 = vsel %vm2660, %v2596, %v2724
        %v2789 = vsel %vm2661, %v2597, %v2725
        %v2790 = vsel %vm2662, %v2598, %v2726
        %v2791 = vsel %vm2663, %v2599, %v2727
        %v2792 = vsel %vm2664, %v2600, %v2728
        %v2793 = vpack.c.bf16 %v2733, %v2729
        %v2794 = vpack.c.bf16 %v2734, %v2730
        %v2795 = vpack.c.bf16 %v2735, %v2731
        %v2796 = vpack.c.bf16 %v2736, %v2732
        %v2797 = vpack.c.bf16 %v2741, %v2737
        %v2798 = vpack.c.bf16 %v2742, %v2738
        %v2799 = vpack.c.bf16 %v2743, %v2739
        %v2800 = vpack.c.bf16 %v2744, %v2740
        %v2801 = vpack.c.bf16 %v2749, %v2745
        %v2802 = vpack.c.bf16 %v2750, %v2746
        %v2803 = vpack.c.bf16 %v2751, %v2747
        %v2804 = vpack.c.bf16 %v2752, %v2748
        %v2805 = vpack.c.bf16 %v2757, %v2753
        %v2806 = vpack.c.bf16 %v2758, %v2754
        %v2807 = vpack.c.bf16 %v2759, %v2755
        %v2808 = vpack.c.bf16 %v2760, %v2756
        %v2809 = vpack.c.bf16 %v2765, %v2761
        %v2810 = vpack.c.bf16 %v2766, %v2762
        %v2811 = vpack.c.bf16 %v2767, %v2763
        %v2812 = vpack.c.bf16 %v2768, %v2764
        %v2813 = vpack.c.bf16 %v2773, %v2769
        %v2814 = vpack.c.bf16 %v2774, %v2770
        %v2815 = vpack.c.bf16 %v2775, %v2771
        %v2816 = vpack.c.bf16 %v2776, %v2772
        %v2817 = vpack.c.bf16 %v2781, %v2777
        %v2818 = vpack.c.bf16 %v2782, %v2778
        %v2819 = vpack.c.bf16 %v2783, %v2779
        %v2820 = vpack.c.bf16 %v2784, %v2780
        %v2821 = vpack.c.bf16 %v2789, %v2785
        %v2822 = vpack.c.bf16 %v2790, %v2786
        %v2823 = vpack.c.bf16 %v2791, %v2787
        %v2824 = vpack.c.bf16 %v2792, %v2788
        %v2825 = vld [vmem:[%s7] sm:$0xf]
        %v2826 = vld [vmem:[%s7 + $0x4] sm:$0xf]
        %v2827 = vld [vmem:[%s7 + $0x8] sm:$0xf]
        %v2828 = vld [vmem:[%s7 + $0xc] sm:$0xf]
        %v2829 = vld [vmem:[%s7 + $0x10] sm:$0xf]
        %v2830 = vld [vmem:[%s7 + $0x14] sm:$0xf]
        %v2831 = vld [vmem:[%s7 + $0x18] sm:$0xf]
        %v2832 = vld [vmem:[%s7 + $0x1c] sm:$0xf]
        %v2833 = vld [vmem:[%s7 + $0x20] sm:$0xf]
        %v2834 = vld [vmem:[%s7 + $0x24] sm:$0xf]
        %v2835 = vld [vmem:[%s7 + $0x28] sm:$0xf]
        %v2836 = vld [vmem:[%s7 + $0x2c] sm:$0xf]
        %v2837 = vld [vmem:[%s7 + $0x30] sm:$0xf]
        %v2838 = vld [vmem:[%s7 + $0x34] sm:$0xf]
        %v2839 = vld [vmem:[%s7 + $0x38] sm:$0xf]
        %v2840 = vld [vmem:[%s7 + $0x3c] sm:$0xf]
        %v2841 = vld [vmem:[%s7 + $0x40] sm:$0xf]
        %v2842 = vld [vmem:[%s7 + $0x44] sm:$0xf]
        %v2843 = vld [vmem:[%s7 + $0x48] sm:$0xf]
        %v2844 = vld [vmem:[%s7 + $0x4c] sm:$0xf]
        %v2845 = vld [vmem:[%s7 + $0x50] sm:$0xf]
        %v2846 = vld [vmem:[%s7 + $0x54] sm:$0xf]
        %v2847 = vld [vmem:[%s7 + $0x58] sm:$0xf]
        %v2848 = vld [vmem:[%s7 + $0x5c] sm:$0xf]
        %v2849 = vld [vmem:[%s7 + $0x60] sm:$0xf]
        %v2850 = vld [vmem:[%s7 + $0x64] sm:$0xf]
        %v2851 = vld [vmem:[%s7 + $0x68] sm:$0xf]
        %v2852 = vld [vmem:[%s7 + $0x6c] sm:$0xf]
        %v2853 = vld [vmem:[%s7 + $0x70] sm:$0xf]
        %v2854 = vld [vmem:[%s7 + $0x74] sm:$0xf]
        %v2855 = vld [vmem:[%s7 + $0x78] sm:$0xf]
        %v2856 = vld [vmem:[%s7 + $0x7c] sm:$0xf]
        %v2857 = vld [vmem:[%s7 + $0x80] sm:$0xf]
        %v2858 = vld [vmem:[%s7 + $0x84] sm:$0xf]
        %v2859 = vld [vmem:[%s7 + $0x88] sm:$0xf]
        %v2860 = vld [vmem:[%s7 + $0x8c] sm:$0xf]
        %v2861 = vld [vmem:[%s7 + $0x90] sm:$0xf]
        %v2862 = vld [vmem:[%s7 + $0x94] sm:$0xf]
        %v2863 = vld [vmem:[%s7 + $0x98] sm:$0xf]
        %v2864 = vld [vmem:[%s7 + $0x9c] sm:$0xf]
        %v2865 = vld [vmem:[%s7 + $0xa0] sm:$0xf]
        %v2866 = vld [vmem:[%s7 + $0xa4] sm:$0xf]
        %v2867 = vld [vmem:[%s7 + $0xa8] sm:$0xf]
        %v2868 = vld [vmem:[%s7 + $0xac] sm:$0xf]
        %v2869 = vld [vmem:[%s7 + $0xb0] sm:$0xf]
        %v2870 = vld [vmem:[%s7 + $0xb4] sm:$0xf]
        %v2871 = vld [vmem:[%s7 + $0xb8] sm:$0xf]
        %v2872 = vld [vmem:[%s7 + $0xbc] sm:$0xf]
        %v2873 = vld [vmem:[%s7 + $0xc0] sm:$0xf]
        %v2874 = vld [vmem:[%s7 + $0xc4] sm:$0xf]
        %v2875 = vld [vmem:[%s7 + $0xc8] sm:$0xf]
        %v2876 = vld [vmem:[%s7 + $0xcc] sm:$0xf]
        %v2877 = vld [vmem:[%s7 + $0xd0] sm:$0xf]
        %v2878 = vld [vmem:[%s7 + $0xd4] sm:$0xf]
        %v2879 = vld [vmem:[%s7 + $0xd8] sm:$0xf]
        %v2880 = vld [vmem:[%s7 + $0xdc] sm:$0xf]
        %v2881 = vld [vmem:[%s7 + $0xe0] sm:$0xf]
        %v2882 = vld [vmem:[%s7 + $0xe4] sm:$0xf]
        %v2883 = vld [vmem:[%s7 + $0xe8] sm:$0xf]
        %v2884 = vld [vmem:[%s7 + $0xec] sm:$0xf]
        %v2885 = vld [vmem:[%s7 + $0xf0] sm:$0xf]
        %v2886 = vld [vmem:[%s7 + $0xf4] sm:$0xf]
        %v2887 = vld [vmem:[%s7 + $0xf8] sm:$0xf]
        %v2888 = vld [vmem:[%s7 + $0xfc] sm:$0xf]
        %v2889 = vld [vmem:[%s8] sm:$0x1]
        %v2891 = vperm.slane %v2889, 0
        %v2957 = vunpack.c.l.b16 %v2825
        %v2958 = vunpack.c.l.b16 %v2826
        %v2959 = vunpack.c.l.b16 %v2827
        %v2960 = vunpack.c.l.b16 %v2828
        %v2961 = vunpack.c.l.b16 %v2829
        %v2962 = vunpack.c.l.b16 %v2830
        %v2963 = vunpack.c.l.b16 %v2831
        %v2964 = vunpack.c.l.b16 %v2832
        %v2965 = vunpack.c.l.b16 %v2833
        %v2966 = vunpack.c.l.b16 %v2834
        %v2967 = vunpack.c.l.b16 %v2835
        %v2968 = vunpack.c.l.b16 %v2836
        %v2969 = vunpack.c.l.b16 %v2837
        %v2970 = vunpack.c.l.b16 %v2838
        %v2971 = vunpack.c.l.b16 %v2839
        %v2972 = vunpack.c.l.b16 %v2840
        %v2973 = vunpack.c.l.b16 %v2841
        %v2974 = vunpack.c.l.b16 %v2842
        %v2975 = vunpack.c.l.b16 %v2843
        %v2976 = vunpack.c.l.b16 %v2844
        %v2977 = vunpack.c.l.b16 %v2845
        %v2978 = vunpack.c.l.b16 %v2846
        %v2979 = vunpack.c.l.b16 %v2847
        %v2980 = vunpack.c.l.b16 %v2848
        %v2981 = vunpack.c.l.b16 %v2849
        %v2982 = vunpack.c.l.b16 %v2850
        %v2983 = vunpack.c.l.b16 %v2851
        %v2984 = vunpack.c.l.b16 %v2852
        %v2985 = vunpack.c.l.b16 %v2853
        %v2986 = vunpack.c.l.b16 %v2854
        %v2987 = vunpack.c.l.b16 %v2855
        %v2988 = vunpack.c.l.b16 %v2856
        %v2989 = vunpack.c.l.b16 %v2857
        %v2990 = vunpack.c.l.b16 %v2858
        %v2991 = vunpack.c.l.b16 %v2859
        %v2992 = vunpack.c.l.b16 %v2860
        %v2993 = vunpack.c.l.b16 %v2861
        %v2994 = vunpack.c.l.b16 %v2862
        %v2995 = vunpack.c.l.b16 %v2863
        %v2996 = vunpack.c.l.b16 %v2864
        %v2997 = vunpack.c.l.b16 %v2865
        %v2998 = vunpack.c.l.b16 %v2866
        %v2999 = vunpack.c.l.b16 %v2867
        %v3000 = vunpack.c.l.b16 %v2868
        %v3001 = vunpack.c.l.b16 %v2869
        %v3002 = vunpack.c.l.b16 %v2870
        %v3003 = vunpack.c.l.b16 %v2871
        %v3004 = vunpack.c.l.b16 %v2872
        %v3005 = vunpack.c.l.b16 %v2873
        %v3006 = vunpack.c.l.b16 %v2874
        %v3007 = vunpack.c.l.b16 %v2875
        %v3008 = vunpack.c.l.b16 %v2876
        %v3009 = vunpack.c.l.b16 %v2877
        %v3010 = vunpack.c.l.b16 %v2878
        %v3011 = vunpack.c.l.b16 %v2879
        %v3012 = vunpack.c.l.b16 %v2880
        %v3013 = vunpack.c.l.b16 %v2881
        %v3014 = vunpack.c.l.b16 %v2882
        %v3015 = vunpack.c.l.b16 %v2883
        %v3016 = vunpack.c.l.b16 %v2884
        %v3017 = vunpack.c.l.b16 %v2885
        %v3018 = vunpack.c.l.b16 %v2886
        %v3019 = vunpack.c.l.b16 %v2887
        %v3020 = vunpack.c.l.b16 %v2888
        %v3021 = vpack.c.b16 %v2958, %v2957
        %v3022 = vpack.c.b16 %v2960, %v2959
        %v3023 = vpack.c.b16 %v2962, %v2961
        %v3024 = vpack.c.b16 %v2964, %v2963
        %v3025 = vpack.c.b16 %v2966, %v2965
        %v3026 = vpack.c.b16 %v2968, %v2967
        %v3027 = vpack.c.b16 %v2970, %v2969
        %v3028 = vpack.c.b16 %v2972, %v2971
        %v3029 = vpack.c.b16 %v2974, %v2973
        %v3030 = vpack.c.b16 %v2976, %v2975
        %v3031 = vpack.c.b16 %v2978, %v2977
        %v3032 = vpack.c.b16 %v2980, %v2979
        %v3033 = vpack.c.b16 %v2982, %v2981
        %v3034 = vpack.c.b16 %v2984, %v2983
        %v3035 = vpack.c.b16 %v2986, %v2985
        %v3036 = vpack.c.b16 %v2988, %v2987
        %v3037 = vpack.c.b16 %v2990, %v2989
        %v3038 = vpack.c.b16 %v2992, %v2991
        %v3039 = vpack.c.b16 %v2994, %v2993
        %v3040 = vpack.c.b16 %v2996, %v2995
        %v3041 = vpack.c.b16 %v2998, %v2997
        %v3042 = vpack.c.b16 %v3000, %v2999
        %v3043 = vpack.c.b16 %v3002, %v3001
        %v3044 = vpack.c.b16 %v3004, %v3003
        %v3045 = vpack.c.b16 %v3006, %v3005
        %v3046 = vpack.c.b16 %v3008, %v3007
        %v3047 = vpack.c.b16 %v3010, %v3009
        %v3048 = vpack.c.b16 %v3012, %v3011
        %v3049 = vpack.c.b16 %v3014, %v3013
        %v3050 = vpack.c.b16 %v3016, %v3015
        %v3051 = vpack.c.b16 %v3018, %v3017
        %v3052 = vpack.c.b16 %v3020, %v3019
        %3085 = vmatpush.bf16.msra.mxu0 %v3028
        %3086 = vmatpush.bf16.msra.mxu0 %v3027
        %3087 = vmatpush.bf16.msra.mxu0 %v3026
        %3088 = vmatpush.bf16.msra.mxu0 %v3025
        %3089 = vmatpush.bf16.msra.mxu0 %v3024
        %3090 = vmatpush.bf16.msra.mxu0 %v3023
        %3091 = vmatpush.bf16.msra.mxu0 %v3022
        %3092 = vmatpush.bf16.msra.mxu0 %v3021
        %3093 = vmatmul.bf16.gmra.mxu0 %v2793
        %v3094 = vpop.f32.mrf.mxu0
        %v3095 = vadd.f32 %v2891, %v3094
        %v3096 = vpop.f32.mrf.mxu0
        %v3097 = vadd.f32 %v2891, %v3096
        %3098 = vmatmul.bf16.gmra.mxu0 %v2797
        %v3099 = vpop.f32.mrf.mxu0
        %v3100 = vadd.f32 %v2891, %v3099
        %v3101 = vpop.f32.mrf.mxu0
        %v3102 = vadd.f32 %v2891, %v3101
        %3103 = vmatmul.bf16.gmra.mxu0 %v2801
        %v3104 = vpop.f32.mrf.mxu0
        %v3105 = vadd.f32 %v2891, %v3104
        %v3106 = vpop.f32.mrf.mxu0
        %v3107 = vadd.f32 %v2891, %v3106
        %3108 = vmatmul.bf16.gmra.mxu0 %v2805
        %v3109 = vpop.f32.mrf.mxu0
        %v3110 = vadd.f32 %v2891, %v3109
        %v3111 = vpop.f32.mrf.mxu0
        %v3112 = vadd.f32 %v2891, %v3111
        %3113 = vmatmul.bf16.gmra.mxu0 %v2809
        %v3114 = vpop.f32.mrf.mxu0
        %v3115 = vadd.f32 %v2891, %v3114
        %v3116 = vpop.f32.mrf.mxu0
        %v3117 = vadd.f32 %v2891, %v3116
        %3118 = vmatmul.bf16.gmra.mxu0 %v2813
        %v3119 = vpop.f32.mrf.mxu0
        %v3120 = vadd.f32 %v2891, %v3119
        %v3121 = vpop.f32.mrf.mxu0
        %v3122 = vadd.f32 %v2891, %v3121
        %3123 = vmatmul.bf16.gmra.mxu0 %v2817
        %v3124 = vpop.f32.mrf.mxu0
        %v3125 = vadd.f32 %v2891, %v3124
        %v3126 = vpop.f32.mrf.mxu0
        %v3127 = vadd.f32 %v2891, %v3126
        %3128 = vmatmul.bf16.gmra.mxu0 %v2821
        %v3129 = vpop.f32.mrf.mxu0
        %v3130 = vadd.f32 %v2891, %v3129
        %v3131 = vpop.f32.mrf.mxu0
        %v3132 = vadd.f32 %v2891, %v3131
        %3133 = vdwg.mxu0
        %3134 = vmatpush.bf16.msra.mxu0 %v3036
        %3135 = vmatpush.bf16.msra.mxu0 %v3035
        %3136 = vmatpush.bf16.msra.mxu0 %v3034
        %3137 = vmatpush.bf16.msra.mxu0 %v3033
        %3138 = vmatpush.bf16.msra.mxu0 %v3032
        %3139 = vmatpush.bf16.msra.mxu0 %v3031
        %3140 = vmatpush.bf16.msra.mxu0 %v3030
        %3141 = vmatpush.bf16.msra.mxu0 %v3029
        %3142 = vmatmul.bf16.gmra.mxu0 %v2794
        %v3143 = vpop.f32.mrf.mxu0
        %v3144 = vadd.f32 %v3095, %v3143
        %v3145 = vpop.f32.mrf.mxu0
        %v3146 = vadd.f32 %v3097, %v3145
        %3147 = vmatmul.bf16.gmra.mxu0 %v2798
        %v3148 = vpop.f32.mrf.mxu0
        %v3149 = vadd.f32 %v3100, %v3148
        %v3150 = vpop.f32.mrf.mxu0
        %v3151 = vadd.f32 %v3102, %v3150
        %3152 = vmatmul.bf16.gmra.mxu0 %v2802
        %v3153 = vpop.f32.mrf.mxu0
        %v3154 = vadd.f32 %v3105, %v3153
        %v3155 = vpop.f32.mrf.mxu0
        %v3156 = vadd.f32 %v3107, %v3155
        %3157 = vmatmul.bf16.gmra.mxu0 %v2806
        %v3158 = vpop.f32.mrf.mxu0
        %v3159 = vadd.f32 %v3110, %v3158
        %v3160 = vpop.f32.mrf.mxu0
        %v3161 = vadd.f32 %v3112, %v3160
        %3162 = vmatmul.bf16.gmra.mxu0 %v2810
        %v3163 = vpop.f32.mrf.mxu0
        %v3164 = vadd.f32 %v3115, %v3163
        %v3165 = vpop.f32.mrf.mxu0
        %v3166 = vadd.f32 %v3117, %v3165
        %3167 = vmatmul.bf16.gmra.mxu0 %v2814
        %v3168 = vpop.f32.mrf.mxu0
        %v3169 = vadd.f32 %v3120, %v3168
        %v3170 = vpop.f32.mrf.mxu0
        %v3171 = vadd.f32 %v3122, %v3170
        %3172 = vmatmul.bf16.gmra.mxu0 %v2818
        %v3173 = vpop.f32.mrf.mxu0
        %v3174 = vadd.f32 %v3125, %v3173
        %v3175 = vpop.f32.mrf.mxu0
        %v3176 = vadd.f32 %v3127, %v3175
        %3177 = vmatmul.bf16.gmra.mxu0 %v2822
        %v3178 = vpop.f32.mrf.mxu0
        %v3179 = vadd.f32 %v3130, %v3178
        %v3180 = vpop.f32.mrf.mxu0
        %v3181 = vadd.f32 %v3132, %v3180
        %3182 = vdwg.mxu0
        %3183 = vmatpush.bf16.msra.mxu0 %v3044
        %3184 = vmatpush.bf16.msra.mxu0 %v3043
        %3185 = vmatpush.bf16.msra.mxu0 %v3042
        %3186 = vmatpush.bf16.msra.mxu0 %v3041
        %3187 = vmatpush.bf16.msra.mxu0 %v3040
        %3188 = vmatpush.bf16.msra.mxu0 %v3039
        %3189 = vmatpush.bf16.msra.mxu0 %v3038
        %3190 = vmatpush.bf16.msra.mxu0 %v3037
        %3191 = vmatmul.bf16.gmra.mxu0 %v2795
        %v3192 = vpop.f32.mrf.mxu0
        %v3193 = vadd.f32 %v3144, %v3192
        %v3194 = vpop.f32.mrf.mxu0
        %v3195 = vadd.f32 %v3146, %v3194
        %3196 = vmatmul.bf16.gmra.mxu0 %v2799
        %v3197 = vpop.f32.mrf.mxu0
        %v3198 = vadd.f32 %v3149, %v3197
        %v3199 = vpop.f32.mrf.mxu0
        %v3200 = vadd.f32 %v3151, %v3199
        %3201 = vmatmul.bf16.gmra.mxu0 %v2803
        %v3202 = vpop.f32.mrf.mxu0
        %v3203 = vadd.f32 %v3154, %v3202
        %v3204 = vpop.f32.mrf.mxu0
        %v3205 = vadd.f32 %v3156, %v3204
        %3206 = vmatmul.bf16.gmra.mxu0 %v2807
        %v3207 = vpop.f32.mrf.mxu0
        %v3208 = vadd.f32 %v3159, %v3207
        %v3209 = vpop.f32.mrf.mxu0
        %v3210 = vadd.f32 %v3161, %v3209
        %3211 = vmatmul.bf16.gmra.mxu0 %v2811
        %v3212 = vpop.f32.mrf.mxu0
        %v3213 = vadd.f32 %v3164, %v3212
        %v3214 = vpop.f32.mrf.mxu0
        %v3215 = vadd.f32 %v3166, %v3214
        %3216 = vmatmul.bf16.gmra.mxu0 %v2815
        %v3217 = vpop.f32.mrf.mxu0
        %v3218 = vadd.f32 %v3169, %v3217
        %v3219 = vpop.f32.mrf.mxu0
        %v3220 = vadd.f32 %v3171, %v3219
        %3221 = vmatmul.bf16.gmra.mxu0 %v2819
        %v3222 = vpop.f32.mrf.mxu0
        %v3223 = vadd.f32 %v3174, %v3222
        %v3224 = vpop.f32.mrf.mxu0
        %v3225 = vadd.f32 %v3176, %v3224
        %3226 = vmatmul.bf16.gmra.mxu0 %v2823
        %v3227 = vpop.f32.mrf.mxu0
        %v3228 = vadd.f32 %v3179, %v3227
        %v3229 = vpop.f32.mrf.mxu0
        %v3230 = vadd.f32 %v3181, %v3229
        %3231 = vdwg.mxu0
        %3232 = vmatpush.bf16.msra.mxu0 %v3052
        %3233 = vmatpush.bf16.msra.mxu0 %v3051
        %3234 = vmatpush.bf16.msra.mxu0 %v3050
        %3235 = vmatpush.bf16.msra.mxu0 %v3049
        %3236 = vmatpush.bf16.msra.mxu0 %v3048
        %3237 = vmatpush.bf16.msra.mxu0 %v3047
        %3238 = vmatpush.bf16.msra.mxu0 %v3046
        %3239 = vmatpush.bf16.msra.mxu0 %v3045
        %3240 = vmatmul.bf16.gmra.mxu0 %v2796
        %v3241 = vpop.f32.mrf.mxu0
        %v3242 = vadd.f32 %v3193, %v3241
        %v3243 = vpop.f32.mrf.mxu0
        %v3244 = vadd.f32 %v3195, %v3243
        %3245 = vmatmul.bf16.gmra.mxu0 %v2800
        %v3246 = vpop.f32.mrf.mxu0
        %v3247 = vadd.f32 %v3198, %v3246
        %v3248 = vpop.f32.mrf.mxu0
        %v3249 = vadd.f32 %v3200, %v3248
        %3250 = vmatmul.bf16.gmra.mxu0 %v2804
        %v3251 = vpop.f32.mrf.mxu0
        %v3252 = vadd.f32 %v3203, %v3251
        %v3253 = vpop.f32.mrf.mxu0
        %v3254 = vadd.f32 %v3205, %v3253
        %3255 = vmatmul.bf16.gmra.mxu0 %v2808
        %v3256 = vpop.f32.mrf.mxu0
        %v3257 = vadd.f32 %v3208, %v3256
        %v3258 = vpop.f32.mrf.mxu0
        %v3259 = vadd.f32 %v3210, %v3258
        %3260 = vmatmul.bf16.gmra.mxu0 %v2812
        %v3261 = vpop.f32.mrf.mxu0
        %v3262 = vadd.f32 %v3213, %v3261
        %v3263 = vpop.f32.mrf.mxu0
        %v3264 = vadd.f32 %v3215, %v3263
        %3265 = vmatmul.bf16.gmra.mxu0 %v2816
        %v3266 = vpop.f32.mrf.mxu0
        %v3267 = vadd.f32 %v3218, %v3266
        %v3268 = vpop.f32.mrf.mxu0
        %v3269 = vadd.f32 %v3220, %v3268
        %3270 = vmatmul.bf16.gmra.mxu0 %v2820
        %v3271 = vpop.f32.mrf.mxu0
        %v3272 = vadd.f32 %v3223, %v3271
        %v3273 = vpop.f32.mrf.mxu0
        %v3274 = vadd.f32 %v3225, %v3273
        %3275 = vmatmul.bf16.gmra.mxu0 %v2824
        %v3276 = vpop.f32.mrf.mxu0
        %v3277 = vadd.f32 %v3228, %v3276
        %v3278 = vpop.f32.mrf.mxu0
        %v3279 = vadd.f32 %v3230, %v3278
        %3280 = vdwg.mxu0
        %vm3281 = vcmp.ge.f32.partialorder %v3242, 0.0
        %vm3282 = vcmp.ge.f32.partialorder %v3244, 0.0
        %vm3283 = vcmp.ge.f32.partialorder %v3247, 0.0
        %vm3284 = vcmp.ge.f32.partialorder %v3249, 0.0
        %vm3285 = vcmp.ge.f32.partialorder %v3252, 0.0
        %vm3286 = vcmp.ge.f32.partialorder %v3254, 0.0
        %vm3287 = vcmp.ge.f32.partialorder %v3257, 0.0
        %vm3288 = vcmp.ge.f32.partialorder %v3259, 0.0
        %vm3289 = vcmp.ge.f32.partialorder %v3262, 0.0
        %vm3290 = vcmp.ge.f32.partialorder %v3264, 0.0
        %vm3291 = vcmp.ge.f32.partialorder %v3267, 0.0
        %vm3292 = vcmp.ge.f32.partialorder %v3269, 0.0
        %vm3293 = vcmp.ge.f32.partialorder %v3272, 0.0
        %vm3294 = vcmp.ge.f32.partialorder %v3274, 0.0
        %vm3295 = vcmp.ge.f32.partialorder %v3277, 0.0
        %vm3296 = vcmp.ge.f32.partialorder %v3279, 0.0
        %v3297 = vmul.f32 %v3242, 0.2
        %v3298 = vmul.f32 %v3244, 0.2
        %v3299 = vmul.f32 %v3247, 0.2
        %v3300 = vmul.f32 %v3249, 0.2
        %v3301 = vmul.f32 %v3252, 0.2
        %v3302 = vmul.f32 %v3254, 0.2
        %v3303 = vmul.f32 %v3257, 0.2
        %v3304 = vmul.f32 %v3259, 0.2
        %v3305 = vmul.f32 %v3262, 0.2
        %v3306 = vmul.f32 %v3264, 0.2
        %v3307 = vmul.f32 %v3267, 0.2
        %v3308 = vmul.f32 %v3269, 0.2
        %v3309 = vmul.f32 %v3272, 0.2
        %v3310 = vmul.f32 %v3274, 0.2
        %v3311 = vmul.f32 %v3277, 0.2
        %v3312 = vmul.f32 %v3279, 0.2
        %v3313 = vsel %vm3281, %v3242, %v3297
        %v3314 = vsel %vm3282, %v3244, %v3298
        %v3315 = vsel %vm3283, %v3247, %v3299
        %v3316 = vsel %vm3284, %v3249, %v3300
        %v3317 = vsel %vm3285, %v3252, %v3301
        %v3318 = vsel %vm3286, %v3254, %v3302
        %v3319 = vsel %vm3287, %v3257, %v3303
        %v3320 = vsel %vm3288, %v3259, %v3304
        %v3321 = vsel %vm3289, %v3262, %v3305
        %v3322 = vsel %vm3290, %v3264, %v3306
        %v3323 = vsel %vm3291, %v3267, %v3307
        %v3324 = vsel %vm3292, %v3269, %v3308
        %v3325 = vsel %vm3293, %v3272, %v3309
        %v3326 = vsel %vm3294, %v3274, %v3310
        %v3327 = vsel %vm3295, %v3277, %v3311
        %v3328 = vsel %vm3296, %v3279, %v3312
        %v3329 = vld [vmem:[%s9] sm:$0xff]
        %v3330 = vld [vmem:[%s9 + $0x8] sm:$0xff]
        %v3331 = vld [vmem:[%s9 + $0x10] sm:$0xff]
        %v3332 = vld [vmem:[%s9 + $0x18] sm:$0xff]
        %v3333 = vld [vmem:[#allocation3] sm:$0x1]
        %v3335 = vperm.slane %v3333, 0
        %vm3337 = vcmask 261120
        %v3339 = vsel %vm3337, %v3313, 0
        %v3342 = vsel %vm3337, %v3314, 0
        %v3345 = vsel %vm3337, %v3315, 0
        %v3348 = vsel %vm3337, %v3316, 0
        %v3351 = vsel %vm3337, %v3317, 0
        %v3354 = vsel %vm3337, %v3318, 0
        %v3357 = vsel %vm3337, %v3319, 0
        %v3360 = vsel %vm3337, %v3320, 0
        %v3363 = vsel %vm3337, %v3321, 0
        %v3366 = vsel %vm3337, %v3322, 0
        %v3369 = vsel %vm3337, %v3323, 0
        %v3372 = vsel %vm3337, %v3324, 0
        %v3375 = vsel %vm3337, %v3325, 0
        %v3378 = vsel %vm3337, %v3326, 0
        %v3381 = vsel %vm3337, %v3327, 0
        %v3384 = vsel %vm3337, %v3328, 0
        %3386 = vmatpush.msra.mxu0 0.0
        %3387 = vmatpush.msra.mxu0 0.0
        %3388 = vmatpush.msra.mxu0 0.0
        %3389 = vmatpush.msra.mxu0 0.0
        %3390 = vmatpush.msra.mxu0 0.0
        %3391 = vmatpush.msra.mxu0 0.0
        %3392 = vmatpush.msra.mxu0 0.0
        %3393 = vmatpush.msra.mxu0 0.0
        %3394 = vmatpush.msra.mxu0 0.0
        %3395 = vmatpush.msra.mxu0 0.0
        %3396 = vmatpush.msra.mxu0 0.0
        %3397 = vmatpush.msra.mxu0 0.0
        %3398 = vmatpush.msra.mxu0 %v3332
        %3399 = vmatpush.msra.mxu0 %v3331
        %3400 = vmatpush.msra.mxu0 %v3330
        %3401 = vmatpush.msra.mxu0 %v3329
        %3402 = vmatmul.f32.gmra.mxu0 %v3339
        %v3403 = vpop.f32.mrf.mxu0
        %v3404 = vadd.f32 %v3335, %v3403
        %3405 = vmatmul.f32.gmra.mxu0 %v3342
        %v3406 = vpop.f32.mrf.mxu0
        %v3407 = vadd.f32 %v3335, %v3406
        %3408 = vmatmul.f32.gmra.mxu0 %v3345
        %v3409 = vpop.f32.mrf.mxu0
        %v3410 = vadd.f32 %v3335, %v3409
        %3411 = vmatmul.f32.gmra.mxu0 %v3348
        %v3412 = vpop.f32.mrf.mxu0
        %v3413 = vadd.f32 %v3335, %v3412
        %3414 = vmatmul.f32.gmra.mxu0 %v3351
        %v3415 = vpop.f32.mrf.mxu0
        %v3416 = vadd.f32 %v3335, %v3415
        %3417 = vmatmul.f32.gmra.mxu0 %v3354
        %v3418 = vpop.f32.mrf.mxu0
        %v3419 = vadd.f32 %v3335, %v3418
        %3420 = vmatmul.f32.gmra.mxu0 %v3357
        %v3421 = vpop.f32.mrf.mxu0
        %v3422 = vadd.f32 %v3335, %v3421
        %3423 = vmatmul.f32.gmra.mxu0 %v3360
        %v3424 = vpop.f32.mrf.mxu0
        %v3425 = vadd.f32 %v3335, %v3424
        %3426 = vmatmul.f32.gmra.mxu0 %v3363
        %v3427 = vpop.f32.mrf.mxu0
        %v3428 = vadd.f32 %v3335, %v3427
        %3429 = vmatmul.f32.gmra.mxu0 %v3366
        %v3430 = vpop.f32.mrf.mxu0
        %v3431 = vadd.f32 %v3335, %v3430
        %3432 = vmatmul.f32.gmra.mxu0 %v3369
        %v3433 = vpop.f32.mrf.mxu0
        %v3434 = vadd.f32 %v3335, %v3433
        %3435 = vmatmul.f32.gmra.mxu0 %v3372
        %v3436 = vpop.f32.mrf.mxu0
        %v3437 = vadd.f32 %v3335, %v3436
        %3438 = vmatmul.f32.gmra.mxu0 %v3375
        %v3439 = vpop.f32.mrf.mxu0
        %v3440 = vadd.f32 %v3335, %v3439
        %3441 = vmatmul.f32.gmra.mxu0 %v3378
        %v3442 = vpop.f32.mrf.mxu0
        %v3443 = vadd.f32 %v3335, %v3442
        %3444 = vmatmul.f32.gmra.mxu0 %v3381
        %v3445 = vpop.f32.mrf.mxu0
        %v3446 = vadd.f32 %v3335, %v3445
        %3447 = vmatmul.f32.gmra.mxu0 %v3384
        %v3448 = vpop.f32.mrf.mxu0
        %v3449 = vadd.f32 %v3335, %v3448
        %3450 = vdwg.mxu0
        %vm3451 = vcmask 7168
        %3452 = vst.msk [vmem:[%s408] sm:$0xff] %vm3451, %v3404
        %3453 = vst.msk [vmem:[%s408 + $0x8] sm:$0xff] %vm3451, %v3407
        %3454 = vst.msk [vmem:[%s408 + $0x10] sm:$0xff] %vm3451, %v3410
        %3455 = vst.msk [vmem:[%s408 + $0x18] sm:$0xff] %vm3451, %v3413
        %3456 = vst.msk [vmem:[%s408 + $0x20] sm:$0xff] %vm3451, %v3416
        %3457 = vst.msk [vmem:[%s408 + $0x28] sm:$0xff] %vm3451, %v3419
        %3458 = vst.msk [vmem:[%s408 + $0x30] sm:$0xff] %vm3451, %v3422
        %3459 = vst.msk [vmem:[%s408 + $0x38] sm:$0xff] %vm3451, %v3425
        %3460 = vst.msk [vmem:[%s408 + $0x40] sm:$0xff] %vm3451, %v3428
        %3461 = vst.msk [vmem:[%s408 + $0x48] sm:$0xff] %vm3451, %v3431
        %3462 = vst.msk [vmem:[%s408 + $0x50] sm:$0xff] %vm3451, %v3434
        %3463 = vst.msk [vmem:[%s408 + $0x58] sm:$0xff] %vm3451, %v3437
        %3464 = vst.msk [vmem:[%s408 + $0x60] sm:$0xff] %vm3451, %v3440
        %3465 = vst.msk [vmem:[%s408 + $0x68] sm:$0xff] %vm3451, %v3443
        %3466 = vst.msk [vmem:[%s408 + $0x70] sm:$0xff] %vm3451, %v3446
        %3467 = vst.msk [vmem:[%s408 + $0x78] sm:$0xff] %vm3451, %v3449
        %s3468 = smul.u32 16, %s26
        %p3469 = scmp.lt.s32.totalorder %s3468, 31
        %s3470 = scalar_select %p3469, %s3468, 31
        %s3471 = smul.addr %s3470, 8
        %s3472 = scalar_lea.vmem %s11, %s3471
        // Predicated region
        $region69: #{discriminator_forward.3} parent=63 // pred_check
          %p3473 = pneg %p280
        $region70: #{discriminator_forward.3} parent=63 // pred_check_branch
          %3475 = sbr.rel (%p3473) target = $region72
        $region71: #{discriminator_forward.3} parent=63 // pred_region
          %s3476 = smul.u32 16, %s26
        $region72: #{discriminator_forward.3} parent=63 // pred_fallthru
          _
      $region64: #{discriminator_forward.3} parent=5 // pred_fallthru
        _
      %p3477 = scmp.le.s32.totalorder 2, %s21
      // Predicated region
      $region73: #{discriminator_forward.3} parent=5 // pred_check
        %p3478 = pneg %p3477
      $region74: #{discriminator_forward.3} parent=5 // pred_check_branch
        %3480 = sbr.rel (%p3478) target = $region76
      $region75: #{discriminator_forward.3} parent=5 // pred_region
        %s3481 = ssub.s32 %s21, 2
        // Predicated region
        $region77: #{discriminator_forward.3} parent=75 // pred_check
          %p3482 = pneg %p286
        $region78: #{discriminator_forward.3} parent=75 // pred_check_branch
          %3484 = sbr.rel (%p3482) target = $region80
        $region79: #{discriminator_forward.3} parent=75 // pred_region
          %s3485 = smul.u32 16, %s27
          %p3486 = scmp.lt.s32.totalorder %s3485, 31
          %s3487 = scalar_select %p3486, %s3485, 31
          %s3488 = smul.addr %s3487, 8
          %s3489 = scalar_lea.vmem %s11, %s3488
        $region80: #{discriminator_forward.3} parent=75 // pred_fallthru
          _
      $region76: #{discriminator_forward.3} parent=5 // pred_fallthru
        _
    $region6: #{discriminator_forward.3} parent=1 // loop_footer
      %s25 = sadd.s32 1, %s21
    $region7: #{discriminator_forward.3} parent=1 // loop_footer_branch
      %20 = sbr.rel target = $region3
    $region8: #{discriminator_forward.3} parent=1 // loop_exit
      _
    %3490 = vsyncpa [#allocation5], 1
    %s3491 = scalar_lea.sflag [#allocation5], 1
    %3492 = vsyncpa %s3491, 1

</llo_original>
